<compile_context>
chip_gen: v5e
topology: v5e:2x2
jax: 0.10.0
libtpu: 0.0.40
codegen_flags: <defaults>
</compile_context>

<pallas_src>
import math

import numpy as np

import jax
import jax.numpy as jnp
from jax.experimental import pallas as pl
from jax.experimental.pallas import tpu as pltpu


# ----------------------------------------------------------------------------
# Host-side constructors: express conv / pool / norm / interleave as matmuls.
# ----------------------------------------------------------------------------
def _banded_conv(w, w_in, pad):
    """Conv2d weight (Cout,Cin,K,K) -> (K, W*Cin, W*Cout) banded matrices.
    Horizontal zero-padding is folded into the band (OOB columns get 0)."""
    w = np.asarray(w, np.float32)
    cout, cin, k, _ = w.shape
    assert w_in + 2 * pad - k + 1 == w_in
    band = np.zeros((k, w_in * cin, w_in * cout), np.float32)
    for kh in range(k):
        for kw in range(k):
            for wo in range(w_in):
                wi = wo + kw - pad
                if 0 <= wi < w_in:
                    band[kh, wi * cin:(wi + 1) * cin,
                         wo * cout:(wo + 1) * cout] = w[:, :, kh, kw].T
    return band


def _banded_convT(wt, w_in, cin_split):
    """ConvTranspose2d(k=4,s=2,p=1) weight (Cin,Cout,4,4) -> 4-phase sub-pixel
    banded matrices packed as (4*2*n_src, W*cin_s, W*Cout),
    indexed by (phase*2 + tap)*n_src + src.  The channel concat of the two
    sources is fused by splitting the weight along Cin."""
    wt = np.asarray(wt, np.float32)
    cin_tot, cout, k, _ = wt.shape
    assert k == 4 and sum(cin_split) == cin_tot
    cs = cin_split[0]
    assert all(c == cs for c in cin_split)
    n_src = len(cin_split)
    offs = np.cumsum([0] + list(cin_split))
    band = np.zeros((4 * 2 * n_src, w_in * cs, w_in * cout), np.float32)
    for dy in range(2):
        for dx in range(2):
            ph = 2 * dy + dx
            for a in range(2):
                ky = 3 - dy - 2 * a
                for s in range(n_src):
                    idx = (ph * 2 + a) * n_src + s
                    for b in range(2):
                        kx = 3 - dx - 2 * b
                        for n in range(w_in):
                            wi = n + dx - 1 + b
                            if 0 <= wi < w_in:
                                band[idx, wi * cs:(wi + 1) * cs,
                                     n * cout:(n + 1) * cout] = \
                                    wt[offs[s]:offs[s + 1], :, ky, kx]
    return band


def _channel_mix(w_in, c):
    """(W*C, W*C): x @ cm = per-channel mean over W, broadcast back to lanes."""
    n = w_in * c
    cm = np.zeros((n, n), np.float32)
    for j in range(n):
        ch = j % c
        for w2 in range(w_in):
            cm[j, w2 * c + ch] = 1.0 / w_in
    return cm


def _pool_rows(h):
    v = np.zeros((h // 2, h), np.float32)
    for h2 in range(h // 2):
        v[h2, 2 * h2] = 0.5
        v[h2, 2 * h2 + 1] = 0.5
    return v


def _pool_cols(w_in, c):
    p = np.zeros((w_in * c, (w_in // 2) * c), np.float32)
    for w2 in range(w_in // 2):
        for dx in range(2):
            for ch in range(c):
                p[(2 * w2 + dx) * c + ch, w2 * c + ch] = 0.5
    return p


def _lane_scatter(w_in, c):
    s = np.zeros((2, w_in * c, 2 * w_in * c), np.float32)
    for dx in range(2):
        for n in range(w_in):
            for ch in range(c):
                s[dx, n * c + ch, (2 * n + dx) * c + ch] = 1.0
    return s


def _row_scatter(h):
    r = np.zeros((2, 2 * h, h), np.float32)
    for dy in range(2):
        for m in range(h):
            r[dy, 2 * m + dy, m] = 1.0
    return r


def _tile_bias(b, w_in):
    return np.tile(np.asarray(b, np.float32), w_in).reshape(1, -1)


# ----------------------------------------------------------------------------
# Parameters (torch layout) + kernel operand preparation.
# ----------------------------------------------------------------------------
def init_torch_params(key, c, num_res):
    keys = iter(jax.random.split(key, 32))

    def conv_w(cout, cin, k):
        std = 1.0 / math.sqrt(cin * k * k)
        return jax.random.normal(next(keys), (cout, cin, k, k), jnp.float32) * std

    def convT_w(cin, cout, k=4):
        std = 1.0 / math.sqrt(cin * k * k)
        return jax.random.normal(next(keys), (cin, cout, k, k), jnp.float32) * std

    def bias(nc):
        return jax.random.normal(next(keys), (nc,), jnp.float32) * 0.1

    tp = {}
    tp["b1c1_w"], tp["b1c1_b"] = conv_w(c, c, 3), bias(c)
    tp["b1c2_w"], tp["b1c2_b"] = conv_w(2 * c, c, 3), bias(2 * c)
    tp["b2c1_w"], tp["b2c1_b"] = conv_w(2 * c, 2 * c, 3), bias(2 * c)
    tp["b2c2_w"], tp["b2c2_b"] = conv_w(4 * c, 2 * c, 3), bias(4 * c)
    tp["res"] = [(conv_w(2 * c, 4 * c, 3), conv_w(4 * c, 2 * c, 1))
                 for _ in range(num_res)]
    tp["up1_w"], tp["up1_b"] = convT_w(8 * c, 2 * c), bias(2 * c)
    tp["up2_w"], tp["up2_b"] = convT_w(4 * c, c), bias(c)
    return tp


def prepare_operands(tp, c, num_res, h, w):
    h2, w2 = h // 2, w // 2
    h3, w3 = h // 4, w // 4
    ops = [
        _banded_conv(tp["b1c1_w"], w, 1), _tile_bias(tp["b1c1_b"], w),
        _banded_conv(tp["b1c2_w"], w, 1), _tile_bias(tp["b1c2_b"], w),
        _channel_mix(w, c), _channel_mix(w, 2 * c),
        _pool_rows(h), _pool_cols(w, 2 * c),
        _banded_conv(tp["b2c1_w"], w2, 1), _tile_bias(tp["b2c1_b"], w2),
        _banded_conv(tp["b2c2_w"], w2, 1), _tile_bias(tp["b2c2_b"], w2),
        _channel_mix(w2, 2 * c), _channel_mix(w2, 4 * c),
        _pool_rows(h2), _pool_cols(w2, 4 * c),
        np.concatenate([_banded_conv(r3, w3, 1) for r3, _ in tp["res"]], axis=0),
        np.stack([_banded_conv(r1, w3, 0)[0] for _, r1 in tp["res"]], axis=0),
        _banded_convT(tp["up1_w"], w3, [4 * c, 4 * c]),
        _tile_bias(tp["up1_b"], w3),
        _lane_scatter(w3, 2 * c), _row_scatter(h3),
        _banded_convT(tp["up2_w"], w2, [2 * c, 2 * c]),
        _tile_bias(tp["up2_b"], w2),
        _lane_scatter(w2, c), _row_scatter(h2),
    ]
    return tuple(jnp.asarray(a) for a in ops)


# ----------------------------------------------------------------------------
# The fused Pallas kernel (one grid step = one batch sample).
# ----------------------------------------------------------------------------
def _make_kernel(num_res):
    f32 = jnp.float32

    def shift_rows(a, d):
        # result[r] = a[r + d] (zero outside [0,H)); done as a tiny MXU matmul.
        if d == 0:
            return a
        h = a.shape[0]
        row = jax.lax.broadcasted_iota(jnp.int32, (h, h), 0)
        col = jax.lax.broadcasted_iota(jnp.int32, (h, h), 1)
        sh = jnp.where(col == row + d, 1.0, 0.0).astype(f32)
        return jnp.dot(sh, a, preferred_element_type=f32)

    def conv3(a, wref, base, bias=None):
        out = None
        for kh in range(3):
            full = jnp.dot(a, wref[base + kh], preferred_element_type=f32)
            contrib = shift_rows(full, kh - 1)
            out = contrib if out is None else out + contrib
        return out if bias is None else out + bias

    def inorm_relu(a, cm):
        mean_b = jnp.mean(jnp.dot(a, cm, preferred_element_type=f32),
                          axis=0, keepdims=True)
        cen = a - mean_b
        var_b = jnp.mean(jnp.dot(cen * cen, cm, preferred_element_type=f32),
                         axis=0, keepdims=True)
        return jnp.maximum(cen * jax.lax.rsqrt(var_b + 1e-5), 0.0)

    def pool(a, v, p):
        return jnp.dot(jnp.dot(v, a, preferred_element_type=f32), p,
                       preferred_element_type=f32)

    def conv_transpose(src0, src1, wref, bias, sref, rref):
        ph_out = []
        for dy in range(2):
            for dx in range(2):
                ph = 2 * dy + dx
                acc = None
                for a_tap in range(2):
                    base = (ph * 2 + a_tap) * 2
                    f = (jnp.dot(src0, wref[base + 0], preferred_element_type=f32)
                         + jnp.dot(src1, wref[base + 1], preferred_element_type=f32))
                    contrib = shift_rows(f, dy - 1 + a_tap)
                    acc = contrib if acc is None else acc + contrib
                ph_out.append(acc + bias)
        even = (jnp.dot(ph_out[0], sref[0], preferred_element_type=f32)
                + jnp.dot(ph_out[1], sref[1], preferred_element_type=f32))
        odd = (jnp.dot(ph_out[2], sref[0], preferred_element_type=f32)
               + jnp.dot(ph_out[3], sref[1], preferred_element_type=f32))
        return (jnp.dot(rref[0], even, preferred_element_type=f32)
                + jnp.dot(rref[1], odd, preferred_element_type=f32))

    def kernel(x_ref,
               w_b1c1, b_b1c1, w_b1c2, b_b1c2, cm1, cm2, v1, p1,
               w_b2c1, b_b2c1, w_b2c2, b_b2c2, cm3, cm4, v2, p2,
               w_res3, w_res1,
               w_up1, b_up1, s_up1, r_up1,
               w_up2, b_up2, s_up2, r_up2,
               o_ref):
        x = x_ref[0]                                      # (H, W*C), f32

        # block1 + mp1
        h = conv3(x, w_b1c1, 0, b_b1c1[...])
        h = inorm_relu(h, cm1[...])
        h = conv3(h, w_b1c2, 0, b_b1c2[...])
        h = inorm_relu(h, cm2[...])
        b1 = pool(h, v1[...], p1[...])                    # (H/2, (W/2)*2C)

        # block2 + mp2
        h = conv3(b1, w_b2c1, 0, b_b2c1[...])
        h = inorm_relu(h, cm3[...])
        h = conv3(h, w_b2c2, 0, b_b2c2[...])
        h = inorm_relu(h, cm4[...])
        b2 = pool(h, v2[...], p2[...])                    # (H/4, (W/4)*4C)

        # residual stack: r += Conv1x1(ReLU(Conv3x3(ReLU(r)))); final ReLU
        r = b2
        for i in range(num_res):
            t = conv3(jnp.maximum(r, 0.0), w_res3, 3 * i)
            u = jnp.dot(jnp.maximum(t, 0.0), w_res1[i],
                        preferred_element_type=f32)
            r = r + u
        r = jnp.maximum(r, 0.0)

        # upblock1 (cat fused via weight split) + ReLU, then upblock2
        u1 = conv_transpose(r, b2, w_up1, b_up1[...], s_up1, r_up1)
        u1 = jnp.maximum(u1, 0.0)
        out = conv_transpose(u1, b1, w_up2, b_up2[...], s_up2, r_up2)

        o_ref[0] = out.astype(o_ref.dtype)

    return kernel


def simple_unet_pallas(x_nchw, ops):
    n, c, h, w = x_nchw.shape
    num_res = ops[16].shape[0] // 3
    wc = w * c
    x_rf = jnp.transpose(x_nchw, (0, 2, 3, 1)).reshape(n, h, wc).astype(jnp.float32)

    in_specs = [pl.BlockSpec((1, h, wc), lambda i: (i, 0, 0))]
    for a in ops:
        in_specs.append(pl.BlockSpec(a.shape, lambda i, _nd=a.ndim: (0,) * _nd))

    bytes_accessed = (int(x_rf.size) + sum(int(a.size) for a in ops)
                      + n * h * wc) * 4
    cost = pl.CostEstimate(flops=12_000_000 * n, transcendentals=512 * n,
                           bytes_accessed=bytes_accessed)

    out_rf = pl.pallas_call(
        _make_kernel(num_res),
        grid=(n,),
        in_specs=in_specs,
        out_specs=pl.BlockSpec((1, h, wc), lambda i: (i, 0, 0)),
        out_shape=jax.ShapeDtypeStruct((n, h, wc), jnp.float32),
        compiler_params=pltpu.CompilerParams(dimension_semantics=("parallel",)),
        cost_estimate=cost,
    )(x_rf, *ops)

    return jnp.transpose(out_rf.reshape(n, h, w, c), (0, 3, 1, 2))


# ----------------------------------------------------------------------------
# Pure-JAX reference (mirrors the PyTorch module) for in-script verification.
# ----------------------------------------------------------------------------
def _conv_ref(x, w, b, pad):
    out = jax.lax.conv_general_dilated(
        x, w, window_strides=(1, 1), padding=((pad, pad), (pad, pad)),
        dimension_numbers=("NCHW", "OIHW", "NCHW"),
        precision=jax.lax.Precision.HIGHEST)
    return out if b is None else out + b.reshape(1, -1, 1, 1)


def _convT_ref(x, wt, b):
    w_eq = jnp.transpose(jnp.flip(wt, (2, 3)), (1, 0, 2, 3))
    out = jax.lax.conv_general_dilated(
        x, w_eq, window_strides=(1, 1), padding=((2, 2), (2, 2)),
        lhs_dilation=(2, 2), dimension_numbers=("NCHW", "OIHW", "NCHW"),
        precision=jax.lax.Precision.HIGHEST)
    return out + b.reshape(1, -1, 1, 1)


def _in_relu_ref(x, eps=1e-5):
    m = jnp.mean(x, axis=(2, 3), keepdims=True)
    v = jnp.mean((x - m) ** 2, axis=(2, 3), keepdims=True)
    return jax.nn.relu((x - m) * jax.lax.rsqrt(v + eps))


def _pool_ref(x):
    n, c, h, w = x.shape
    return x.reshape(n, c, h // 2, 2, w // 2, 2).mean(axis=(3, 5))


def reference_forward(x, tp, num_res):
    h = _in_relu_ref(_conv_ref(x, tp["b1c1_w"], tp["b1c1_b"], 1))
    h = _in_relu_ref(_conv_ref(h, tp["b1c2_w"], tp["b1c2_b"], 1))
    b1 = _pool_ref(h)
    h = _in_relu_ref(_conv_ref(b1, tp["b2c1_w"], tp["b2c1_b"], 1))
    h = _in_relu_ref(_conv_ref(h, tp["b2c2_w"], tp["b2c2_b"], 1))
    b2 = _pool_ref(h)
    r = b2
    for i in range(num_res):
        w3, w1 = tp["res"][i]
        t = _conv_ref(jax.nn.relu(r), w3, None, 1)
        r = r + _conv_ref(jax.nn.relu(t), w1, None, 0)
    r = jax.nn.relu(r)
    u1 = jax.nn.relu(_convT_ref(jnp.concatenate([r, b2], axis=1),
                                tp["up1_w"], tp["up1_b"]))
    return _convT_ref(jnp.concatenate([u1, b1], axis=1),
                      tp["up2_w"], tp["up2_b"])


# ----------------------------------------------------------------------------
if __name__ == "__main__":
    in_channels = 4
    num_residual_layers = 2
    n, h, w = 2, 16, 16

    key = jax.random.PRNGKey(0)
    pkey, xkey = jax.random.split(key)
    tp = init_torch_params(pkey, in_channels, num_residual_layers)
    ops = prepare_operands(tp, in_channels, num_residual_layers, h, w)
    x = jax.random.normal(xkey, (n, in_channels, h, w), jnp.float32)

    fwd = jax.jit(simple_unet_pallas)
    out = jax.block_until_ready(fwd(x, ops))

    assert out.shape == (n, in_channels, h, w), out.shape
    assert bool(jnp.all(jnp.isfinite(out)))

    ref = reference_forward(x, tp, num_residual_layers)
    err = float(jnp.max(jnp.abs(out - ref)))
    scale = float(jnp.max(jnp.abs(ref))) + 1e-6
    assert err <= 3e-2 * scale, f"mismatch: max|diff|={err:.3e}, max|ref|={scale:.3e}"

    print("KERNEL_OK")
</pallas_src>

<mosaic_0001>
module attributes {stable_mosaic.version = 11 : i64} {
  func.func @kernel(%arg0: i32, %arg1: memref<1x16x64xf32, #tpu.memory_space<vmem>>, %arg2: memref<3x64x64xf32, #tpu.memory_space<vmem>>, %arg3: memref<1x64xf32, #tpu.memory_space<vmem>>, %arg4: memref<3x64x128xf32, #tpu.memory_space<vmem>>, %arg5: memref<1x128xf32, #tpu.memory_space<vmem>>, %arg6: memref<64x64xf32, #tpu.memory_space<vmem>>, %arg7: memref<128x128xf32, #tpu.memory_space<vmem>>, %arg8: memref<8x16xf32, #tpu.memory_space<vmem>>, %arg9: memref<128x64xf32, #tpu.memory_space<vmem>>, %arg10: memref<3x64x64xf32, #tpu.memory_space<vmem>>, %arg11: memref<1x64xf32, #tpu.memory_space<vmem>>, %arg12: memref<3x64x128xf32, #tpu.memory_space<vmem>>, %arg13: memref<1x128xf32, #tpu.memory_space<vmem>>, %arg14: memref<64x64xf32, #tpu.memory_space<vmem>>, %arg15: memref<128x128xf32, #tpu.memory_space<vmem>>, %arg16: memref<4x8xf32, #tpu.memory_space<vmem>>, %arg17: memref<128x64xf32, #tpu.memory_space<vmem>>, %arg18: memref<6x64x32xf32, #tpu.memory_space<vmem>>, %arg19: memref<2x32x64xf32, #tpu.memory_space<vmem>>, %arg20: memref<16x64x32xf32, #tpu.memory_space<vmem>>, %arg21: memref<1x32xf32, #tpu.memory_space<vmem>>, %arg22: memref<2x32x64xf32, #tpu.memory_space<vmem>>, %arg23: memref<2x8x4xf32, #tpu.memory_space<vmem>>, %arg24: memref<16x64x32xf32, #tpu.memory_space<vmem>>, %arg25: memref<1x32xf32, #tpu.memory_space<vmem>>, %arg26: memref<2x32x64xf32, #tpu.memory_space<vmem>>, %arg27: memref<2x16x8xf32, #tpu.memory_space<vmem>>, %arg28: memref<1x16x64xf32, #tpu.memory_space<vmem>>) attributes {dimension_semantics = [#tpu.dimension_semantics<parallel>], iteration_bounds = array<i64: 2>, scalar_prefetch = 0 : i64, scratch_operands = 0 : i64, tpu.core_type = #tpu.core_type<tc>, window_params = [{transform_indices = @transform_0, window_bounds = array<i64: 1, 16, 64>}, {pipeline_mode = #tpu.pipeline_mode<synchronous>, transform_indices = @transform_1, window_bounds = array<i64: 3, 64, 64>}, {pipeline_mode = #tpu.pipeline_mode<synchronous>, transform_indices = @transform_2, window_bounds = array<i64: 1, 64>}, {pipeline_mode = #tpu.pipeline_mode<synchronous>, transform_indices = @transform_3, window_bounds = array<i64: 3, 64, 128>}, {pipeline_mode = #tpu.pipeline_mode<synchronous>, transform_indices = @transform_4, window_bounds = array<i64: 1, 128>}, {pipeline_mode = #tpu.pipeline_mode<synchronous>, transform_indices = @transform_5, window_bounds = array<i64: 64, 64>}, {pipeline_mode = #tpu.pipeline_mode<synchronous>, transform_indices = @transform_6, window_bounds = array<i64: 128, 128>}, {pipeline_mode = #tpu.pipeline_mode<synchronous>, transform_indices = @transform_7, window_bounds = array<i64: 8, 16>}, {pipeline_mode = #tpu.pipeline_mode<synchronous>, transform_indices = @transform_8, window_bounds = array<i64: 128, 64>}, {pipeline_mode = #tpu.pipeline_mode<synchronous>, transform_indices = @transform_9, window_bounds = array<i64: 3, 64, 64>}, {pipeline_mode = #tpu.pipeline_mode<synchronous>, transform_indices = @transform_10, window_bounds = array<i64: 1, 64>}, {pipeline_mode = #tpu.pipeline_mode<synchronous>, transform_indices = @transform_11, window_bounds = array<i64: 3, 64, 128>}, {pipeline_mode = #tpu.pipeline_mode<synchronous>, transform_indices = @transform_12, window_bounds = array<i64: 1, 128>}, {pipeline_mode = #tpu.pipeline_mode<synchronous>, transform_indices = @transform_13, window_bounds = array<i64: 64, 64>}, {pipeline_mode = #tpu.pipeline_mode<synchronous>, transform_indices = @transform_14, window_bounds = array<i64: 128, 128>}, {pipeline_mode = #tpu.pipeline_mode<synchronous>, transform_indices = @transform_15, window_bounds = array<i64: 4, 8>}, {pipeline_mode = #tpu.pipeline_mode<synchronous>, transform_indices = @transform_16, window_bounds = array<i64: 128, 64>}, {pipeline_mode = #tpu.pipeline_mode<synchronous>, transform_indices = @transform_17, window_bounds = array<i64: 6, 64, 32>}, {pipeline_mode = #tpu.pipeline_mode<synchronous>, transform_indices = @transform_18, window_bounds = array<i64: 2, 32, 64>}, {pipeline_mode = #tpu.pipeline_mode<synchronous>, transform_indices = @transform_19, window_bounds = array<i64: 16, 64, 32>}, {pipeline_mode = #tpu.pipeline_mode<synchronous>, transform_indices = @transform_20, window_bounds = array<i64: 1, 32>}, {pipeline_mode = #tpu.pipeline_mode<synchronous>, transform_indices = @transform_21, window_bounds = array<i64: 2, 32, 64>}, {pipeline_mode = #tpu.pipeline_mode<synchronous>, transform_indices = @transform_22, window_bounds = array<i64: 2, 8, 4>}, {pipeline_mode = #tpu.pipeline_mode<synchronous>, transform_indices = @transform_23, window_bounds = array<i64: 16, 64, 32>}, {pipeline_mode = #tpu.pipeline_mode<synchronous>, transform_indices = @transform_24, window_bounds = array<i64: 1, 32>}, {pipeline_mode = #tpu.pipeline_mode<synchronous>, transform_indices = @transform_25, window_bounds = array<i64: 2, 32, 64>}, {pipeline_mode = #tpu.pipeline_mode<synchronous>, transform_indices = @transform_26, window_bounds = array<i64: 2, 16, 8>}, {transform_indices = @transform_27, window_bounds = array<i64: 1, 16, 64>}]} {
    %c0 = arith.constant 0 : index
    %c0_0 = arith.constant 0 : index
    %c0_1 = arith.constant 0 : index
    %0 = vector.load %arg1[%c0, %c0_0, %c0_1] : memref<1x16x64xf32, #tpu.memory_space<vmem>>, vector<1x16x64xf32>
    %1 = vector.shape_cast %0 : vector<1x16x64xf32> to vector<16x64xf32>
    %c0_2 = arith.constant 0 : index
    %c0_3 = arith.constant 0 : index
    %2 = vector.load %arg3[%c0_2, %c0_3] : memref<1x64xf32, #tpu.memory_space<vmem>>, vector<1x64xf32>
    %c0_4 = arith.constant 0 : index
    %c0_5 = arith.constant 0 : index
    %c0_6 = arith.constant 0 : index
    %3 = vector.load %arg2[%c0_4, %c0_5, %c0_6] : memref<3x64x64xf32, #tpu.memory_space<vmem>>, vector<1x64x64xf32>
    %4 = vector.shape_cast %3 : vector<1x64x64xf32> to vector<64x64xf32>
    %cst = arith.constant dense<0.000000e+00> : vector<16x64xf32>
    %5 = tpu.matmul %1, %4, %cst {dimension_numbers = #tpu.dot_dimension_numbers<[1], [0], [0], [1], [0, 0, 1, 1], [], []>} : vector<16x64xf32>, vector<64x64xf32>, vector<16x64xf32> -> vector<16x64xf32>
    %6 = tpu.iota {dimensions = array<i32: 0>} : vector<16x16xi32>
    %7 = tpu.iota {dimensions = array<i32: 1>} : vector<16x16xi32>
    %c-1_i32 = arith.constant -1 : i32
    %8 = vector.broadcast %c-1_i32 : i32 to vector<16x16xi32>
    %9 = arith.addi %6, %8 : vector<16x16xi32>
    %10 = arith.cmpi eq, %7, %9 : vector<16x16xi32>
    %cst_7 = arith.constant 1.000000e+00 : f32
    %cst_8 = arith.constant 0.000000e+00 : f32
    %11 = vector.broadcast %cst_7 : f32 to vector<16x16xf32>
    %12 = vector.broadcast %cst_8 : f32 to vector<16x16xf32>
    %13 = arith.select %10, %11, %12 : vector<16x16xi1>, vector<16x16xf32>
    %cst_9 = arith.constant dense<0.000000e+00> : vector<16x64xf32>
    %14 = tpu.matmul %13, %5, %cst_9 {dimension_numbers = #tpu.dot_dimension_numbers<[1], [0], [0], [1], [0, 0, 1, 1], [], []>} : vector<16x16xf32>, vector<16x64xf32>, vector<16x64xf32> -> vector<16x64xf32>
    %c1 = arith.constant 1 : index
    %c0_10 = arith.constant 0 : index
    %c0_11 = arith.constant 0 : index
    %15 = vector.load %arg2[%c1, %c0_10, %c0_11] : memref<3x64x64xf32, #tpu.memory_space<vmem>>, vector<1x64x64xf32>
    %16 = vector.shape_cast %15 : vector<1x64x64xf32> to vector<64x64xf32>
    %cst_12 = arith.constant dense<0.000000e+00> : vector<16x64xf32>
    %17 = tpu.matmul %1, %16, %cst_12 {dimension_numbers = #tpu.dot_dimension_numbers<[1], [0], [0], [1], [0, 0, 1, 1], [], []>} : vector<16x64xf32>, vector<64x64xf32>, vector<16x64xf32> -> vector<16x64xf32>
    %18 = arith.addf %14, %17 : vector<16x64xf32>
    %c2 = arith.constant 2 : index
    %c0_13 = arith.constant 0 : index
    %c0_14 = arith.constant 0 : index
    %19 = vector.load %arg2[%c2, %c0_13, %c0_14] : memref<3x64x64xf32, #tpu.memory_space<vmem>>, vector<1x64x64xf32>
    %20 = vector.shape_cast %19 : vector<1x64x64xf32> to vector<64x64xf32>
    %cst_15 = arith.constant dense<0.000000e+00> : vector<16x64xf32>
    %21 = tpu.matmul %1, %20, %cst_15 {dimension_numbers = #tpu.dot_dimension_numbers<[1], [0], [0], [1], [0, 0, 1, 1], [], []>} : vector<16x64xf32>, vector<64x64xf32>, vector<16x64xf32> -> vector<16x64xf32>
    %22 = tpu.iota {dimensions = array<i32: 0>} : vector<16x16xi32>
    %23 = tpu.iota {dimensions = array<i32: 1>} : vector<16x16xi32>
    %c1_i32 = arith.constant 1 : i32
    %24 = vector.broadcast %c1_i32 : i32 to vector<16x16xi32>
    %25 = arith.addi %22, %24 : vector<16x16xi32>
    %26 = arith.cmpi eq, %23, %25 : vector<16x16xi32>
    %cst_16 = arith.constant 1.000000e+00 : f32
    %cst_17 = arith.constant 0.000000e+00 : f32
    %27 = vector.broadcast %cst_16 : f32 to vector<16x16xf32>
    %28 = vector.broadcast %cst_17 : f32 to vector<16x16xf32>
    %29 = arith.select %26, %27, %28 : vector<16x16xi1>, vector<16x16xf32>
    %cst_18 = arith.constant dense<0.000000e+00> : vector<16x64xf32>
    %30 = tpu.matmul %29, %21, %cst_18 {dimension_numbers = #tpu.dot_dimension_numbers<[1], [0], [0], [1], [0, 0, 1, 1], [], []>} : vector<16x16xf32>, vector<16x64xf32>, vector<16x64xf32> -> vector<16x64xf32>
    %31 = arith.addf %18, %30 : vector<16x64xf32>
    %32 = vector.broadcast %2 : vector<1x64xf32> to vector<16x64xf32>
    %33 = arith.addf %31, %32 : vector<16x64xf32>
    %c0_19 = arith.constant 0 : index
    %c0_20 = arith.constant 0 : index
    %34 = vector.load %arg6[%c0_19, %c0_20] : memref<64x64xf32, #tpu.memory_space<vmem>>, vector<64x64xf32>
    %cst_21 = arith.constant dense<0.000000e+00> : vector<16x64xf32>
    %35 = tpu.matmul %33, %34, %cst_21 {dimension_numbers = #tpu.dot_dimension_numbers<[1], [0], [0], [1], [0, 0, 1, 1], [], []>} : vector<16x64xf32>, vector<64x64xf32>, vector<16x64xf32> -> vector<16x64xf32>
    %cst_22 = arith.constant dense<0.000000e+00> : vector<64xf32>
    %36 = vector.multi_reduction <add>, %35, %cst_22 [0] : vector<16x64xf32> to vector<64xf32>
    %37 = vector.shape_cast %36 : vector<64xf32> to vector<1x64xf32>
    %cst_23 = arith.constant 1.600000e+01 : f32
    %38 = vector.broadcast %cst_23 : f32 to vector<1x64xf32>
    %39 = arith.divf %37, %38 : vector<1x64xf32>
    %40 = vector.broadcast %39 : vector<1x64xf32> to vector<16x64xf32>
    %41 = arith.subf %33, %40 : vector<16x64xf32>
    %42 = arith.mulf %41, %41 : vector<16x64xf32>
    %cst_24 = arith.constant dense<0.000000e+00> : vector<16x64xf32>
    %43 = tpu.matmul %42, %34, %cst_24 {dimension_numbers = #tpu.dot_dimension_numbers<[1], [0], [0], [1], [0, 0, 1, 1], [], []>} : vector<16x64xf32>, vector<64x64xf32>, vector<16x64xf32> -> vector<16x64xf32>
    %cst_25 = arith.constant dense<0.000000e+00> : vector<64xf32>
    %44 = vector.multi_reduction <add>, %43, %cst_25 [0] : vector<16x64xf32> to vector<64xf32>
    %45 = vector.shape_cast %44 : vector<64xf32> to vector<1x64xf32>
    %cst_26 = arith.constant 1.600000e+01 : f32
    %46 = vector.broadcast %cst_26 : f32 to vector<1x64xf32>
    %47 = arith.divf %45, %46 : vector<1x64xf32>
    %cst_27 = arith.constant 9.99999974E-6 : f32
    %48 = vector.broadcast %cst_27 : f32 to vector<1x64xf32>
    %49 = arith.addf %47, %48 : vector<1x64xf32>
    %50 = math.rsqrt %49 : vector<1x64xf32>
    %51 = vector.broadcast %50 : vector<1x64xf32> to vector<16x64xf32>
    %52 = arith.mulf %41, %51 : vector<16x64xf32>
    %cst_28 = arith.constant 0.000000e+00 : f32
    %53 = vector.broadcast %cst_28 : f32 to vector<16x64xf32>
    %54 = arith.maximumf %52, %53 : vector<16x64xf32>
    %c0_29 = arith.constant 0 : index
    %c0_30 = arith.constant 0 : index
    %55 = vector.load %arg5[%c0_29, %c0_30] : memref<1x128xf32, #tpu.memory_space<vmem>>, vector<1x128xf32>
    %c0_31 = arith.constant 0 : index
    %c0_32 = arith.constant 0 : index
    %c0_33 = arith.constant 0 : index
    %56 = vector.load %arg4[%c0_31, %c0_32, %c0_33] : memref<3x64x128xf32, #tpu.memory_space<vmem>>, vector<1x64x128xf32>
    %57 = vector.shape_cast %56 : vector<1x64x128xf32> to vector<64x128xf32>
    %cst_34 = arith.constant dense<0.000000e+00> : vector<16x128xf32>
    %58 = tpu.matmul %54, %57, %cst_34 {dimension_numbers = #tpu.dot_dimension_numbers<[1], [0], [0], [1], [0, 0, 1, 1], [], []>} : vector<16x64xf32>, vector<64x128xf32>, vector<16x128xf32> -> vector<16x128xf32>
    %59 = tpu.iota {dimensions = array<i32: 0>} : vector<16x16xi32>
    %60 = tpu.iota {dimensions = array<i32: 1>} : vector<16x16xi32>
    %c-1_i32_35 = arith.constant -1 : i32
    %61 = vector.broadcast %c-1_i32_35 : i32 to vector<16x16xi32>
    %62 = arith.addi %59, %61 : vector<16x16xi32>
    %63 = arith.cmpi eq, %60, %62 : vector<16x16xi32>
    %cst_36 = arith.constant 1.000000e+00 : f32
    %cst_37 = arith.constant 0.000000e+00 : f32
    %64 = vector.broadcast %cst_36 : f32 to vector<16x16xf32>
    %65 = vector.broadcast %cst_37 : f32 to vector<16x16xf32>
    %66 = arith.select %63, %64, %65 : vector<16x16xi1>, vector<16x16xf32>
    %cst_38 = arith.constant dense<0.000000e+00> : vector<16x128xf32>
    %67 = tpu.matmul %66, %58, %cst_38 {dimension_numbers = #tpu.dot_dimension_numbers<[1], [0], [0], [1], [0, 0, 1, 1], [], []>} : vector<16x16xf32>, vector<16x128xf32>, vector<16x128xf32> -> vector<16x128xf32>
    %c1_39 = arith.constant 1 : index
    %c0_40 = arith.constant 0 : index
    %c0_41 = arith.constant 0 : index
    %68 = vector.load %arg4[%c1_39, %c0_40, %c0_41] : memref<3x64x128xf32, #tpu.memory_space<vmem>>, vector<1x64x128xf32>
    %69 = vector.shape_cast %68 : vector<1x64x128xf32> to vector<64x128xf32>
    %cst_42 = arith.constant dense<0.000000e+00> : vector<16x128xf32>
    %70 = tpu.matmul %54, %69, %cst_42 {dimension_numbers = #tpu.dot_dimension_numbers<[1], [0], [0], [1], [0, 0, 1, 1], [], []>} : vector<16x64xf32>, vector<64x128xf32>, vector<16x128xf32> -> vector<16x128xf32>
    %71 = arith.addf %67, %70 : vector<16x128xf32>
    %c2_43 = arith.constant 2 : index
    %c0_44 = arith.constant 0 : index
    %c0_45 = arith.constant 0 : index
    %72 = vector.load %arg4[%c2_43, %c0_44, %c0_45] : memref<3x64x128xf32, #tpu.memory_space<vmem>>, vector<1x64x128xf32>
    %73 = vector.shape_cast %72 : vector<1x64x128xf32> to vector<64x128xf32>
    %cst_46 = arith.constant dense<0.000000e+00> : vector<16x128xf32>
    %74 = tpu.matmul %54, %73, %cst_46 {dimension_numbers = #tpu.dot_dimension_numbers<[1], [0], [0], [1], [0, 0, 1, 1], [], []>} : vector<16x64xf32>, vector<64x128xf32>, vector<16x128xf32> -> vector<16x128xf32>
    %75 = tpu.iota {dimensions = array<i32: 0>} : vector<16x16xi32>
    %76 = tpu.iota {dimensions = array<i32: 1>} : vector<16x16xi32>
    %c1_i32_47 = arith.constant 1 : i32
    %77 = vector.broadcast %c1_i32_47 : i32 to vector<16x16xi32>
    %78 = arith.addi %75, %77 : vector<16x16xi32>
    %79 = arith.cmpi eq, %76, %78 : vector<16x16xi32>
    %cst_48 = arith.constant 1.000000e+00 : f32
    %cst_49 = arith.constant 0.000000e+00 : f32
    %80 = vector.broadcast %cst_48 : f32 to vector<16x16xf32>
    %81 = vector.broadcast %cst_49 : f32 to vector<16x16xf32>
    %82 = arith.select %79, %80, %81 : vector<16x16xi1>, vector<16x16xf32>
    %cst_50 = arith.constant dense<0.000000e+00> : vector<16x128xf32>
    %83 = tpu.matmul %82, %74, %cst_50 {dimension_numbers = #tpu.dot_dimension_numbers<[1], [0], [0], [1], [0, 0, 1, 1], [], []>} : vector<16x16xf32>, vector<16x128xf32>, vector<16x128xf32> -> vector<16x128xf32>
    %84 = arith.addf %71, %83 : vector<16x128xf32>
    %85 = vector.broadcast %55 : vector<1x128xf32> to vector<16x128xf32>
    %86 = arith.addf %84, %85 : vector<16x128xf32>
    %c0_51 = arith.constant 0 : index
    %c0_52 = arith.constant 0 : index
    %87 = vector.load %arg7[%c0_51, %c0_52] : memref<128x128xf32, #tpu.memory_space<vmem>>, vector<128x128xf32>
    %cst_53 = arith.constant dense<0.000000e+00> : vector<16x128xf32>
    %88 = tpu.matmul %86, %87, %cst_53 {dimension_numbers = #tpu.dot_dimension_numbers<[1], [0], [0], [1], [0, 0, 1, 1], [], []>} : vector<16x128xf32>, vector<128x128xf32>, vector<16x128xf32> -> vector<16x128xf32>
    %cst_54 = arith.constant dense<0.000000e+00> : vector<128xf32>
    %89 = vector.multi_reduction <add>, %88, %cst_54 [0] : vector<16x128xf32> to vector<128xf32>
    %90 = vector.shape_cast %89 : vector<128xf32> to vector<1x128xf32>
    %cst_55 = arith.constant 1.600000e+01 : f32
    %91 = vector.broadcast %cst_55 : f32 to vector<1x128xf32>
    %92 = arith.divf %90, %91 : vector<1x128xf32>
    %93 = vector.broadcast %92 : vector<1x128xf32> to vector<16x128xf32>
    %94 = arith.subf %86, %93 : vector<16x128xf32>
    %95 = arith.mulf %94, %94 : vector<16x128xf32>
    %cst_56 = arith.constant dense<0.000000e+00> : vector<16x128xf32>
    %96 = tpu.matmul %95, %87, %cst_56 {dimension_numbers = #tpu.dot_dimension_numbers<[1], [0], [0], [1], [0, 0, 1, 1], [], []>} : vector<16x128xf32>, vector<128x128xf32>, vector<16x128xf32> -> vector<16x128xf32>
    %cst_57 = arith.constant dense<0.000000e+00> : vector<128xf32>
    %97 = vector.multi_reduction <add>, %96, %cst_57 [0] : vector<16x128xf32> to vector<128xf32>
    %98 = vector.shape_cast %97 : vector<128xf32> to vector<1x128xf32>
    %cst_58 = arith.constant 1.600000e+01 : f32
    %99 = vector.broadcast %cst_58 : f32 to vector<1x128xf32>
    %100 = arith.divf %98, %99 : vector<1x128xf32>
    %cst_59 = arith.constant 9.99999974E-6 : f32
    %101 = vector.broadcast %cst_59 : f32 to vector<1x128xf32>
    %102 = arith.addf %100, %101 : vector<1x128xf32>
    %103 = math.rsqrt %102 : vector<1x128xf32>
    %104 = vector.broadcast %103 : vector<1x128xf32> to vector<16x128xf32>
    %105 = arith.mulf %94, %104 : vector<16x128xf32>
    %cst_60 = arith.constant 0.000000e+00 : f32
    %106 = vector.broadcast %cst_60 : f32 to vector<16x128xf32>
    %107 = arith.maximumf %105, %106 : vector<16x128xf32>
    %c0_61 = arith.constant 0 : index
    %c0_62 = arith.constant 0 : index
    %108 = vector.load %arg8[%c0_61, %c0_62] : memref<8x16xf32, #tpu.memory_space<vmem>>, vector<8x16xf32>
    %c0_63 = arith.constant 0 : index
    %c0_64 = arith.constant 0 : index
    %109 = vector.load %arg9[%c0_63, %c0_64] : memref<128x64xf32, #tpu.memory_space<vmem>>, vector<128x64xf32>
    %cst_65 = arith.constant dense<0.000000e+00> : vector<8x128xf32>
    %110 = tpu.matmul %108, %107, %cst_65 {dimension_numbers = #tpu.dot_dimension_numbers<[1], [0], [0], [1], [0, 0, 1, 1], [], []>} : vector<8x16xf32>, vector<16x128xf32>, vector<8x128xf32> -> vector<8x128xf32>
    %cst_66 = arith.constant dense<0.000000e+00> : vector<8x64xf32>
    %111 = tpu.matmul %110, %109, %cst_66 {dimension_numbers = #tpu.dot_dimension_numbers<[1], [0], [0], [1], [0, 0, 1, 1], [], []>} : vector<8x128xf32>, vector<128x64xf32>, vector<8x64xf32> -> vector<8x64xf32>
    %c0_67 = arith.constant 0 : index
    %c0_68 = arith.constant 0 : index
    %112 = vector.load %arg11[%c0_67, %c0_68] : memref<1x64xf32, #tpu.memory_space<vmem>>, vector<1x64xf32>
    %c0_69 = arith.constant 0 : index
    %c0_70 = arith.constant 0 : index
    %c0_71 = arith.constant 0 : index
    %113 = vector.load %arg10[%c0_69, %c0_70, %c0_71] : memref<3x64x64xf32, #tpu.memory_space<vmem>>, vector<1x64x64xf32>
    %114 = vector.shape_cast %113 : vector<1x64x64xf32> to vector<64x64xf32>
    %cst_72 = arith.constant dense<0.000000e+00> : vector<8x64xf32>
    %115 = tpu.matmul %111, %114, %cst_72 {dimension_numbers = #tpu.dot_dimension_numbers<[1], [0], [0], [1], [0, 0, 1, 1], [], []>} : vector<8x64xf32>, vector<64x64xf32>, vector<8x64xf32> -> vector<8x64xf32>
    %116 = tpu.iota {dimensions = array<i32: 0>} : vector<8x8xi32>
    %117 = tpu.iota {dimensions = array<i32: 1>} : vector<8x8xi32>
    %c-1_i32_73 = arith.constant -1 : i32
    %118 = vector.broadcast %c-1_i32_73 : i32 to vector<8x8xi32>
    %119 = arith.addi %116, %118 : vector<8x8xi32>
    %120 = arith.cmpi eq, %117, %119 : vector<8x8xi32>
    %cst_74 = arith.constant 1.000000e+00 : f32
    %cst_75 = arith.constant 0.000000e+00 : f32
    %121 = vector.broadcast %cst_74 : f32 to vector<8x8xf32>
    %122 = vector.broadcast %cst_75 : f32 to vector<8x8xf32>
    %123 = arith.select %120, %121, %122 : vector<8x8xi1>, vector<8x8xf32>
    %cst_76 = arith.constant dense<0.000000e+00> : vector<8x64xf32>
    %124 = tpu.matmul %123, %115, %cst_76 {dimension_numbers = #tpu.dot_dimension_numbers<[1], [0], [0], [1], [0, 0, 1, 1], [], []>} : vector<8x8xf32>, vector<8x64xf32>, vector<8x64xf32> -> vector<8x64xf32>
    %c1_77 = arith.constant 1 : index
    %c0_78 = arith.constant 0 : index
    %c0_79 = arith.constant 0 : index
    %125 = vector.load %arg10[%c1_77, %c0_78, %c0_79] : memref<3x64x64xf32, #tpu.memory_space<vmem>>, vector<1x64x64xf32>
    %126 = vector.shape_cast %125 : vector<1x64x64xf32> to vector<64x64xf32>
    %cst_80 = arith.constant dense<0.000000e+00> : vector<8x64xf32>
    %127 = tpu.matmul %111, %126, %cst_80 {dimension_numbers = #tpu.dot_dimension_numbers<[1], [0], [0], [1], [0, 0, 1, 1], [], []>} : vector<8x64xf32>, vector<64x64xf32>, vector<8x64xf32> -> vector<8x64xf32>
    %128 = arith.addf %124, %127 : vector<8x64xf32>
    %c2_81 = arith.constant 2 : index
    %c0_82 = arith.constant 0 : index
    %c0_83 = arith.constant 0 : index
    %129 = vector.load %arg10[%c2_81, %c0_82, %c0_83] : memref<3x64x64xf32, #tpu.memory_space<vmem>>, vector<1x64x64xf32>
    %130 = vector.shape_cast %129 : vector<1x64x64xf32> to vector<64x64xf32>
    %cst_84 = arith.constant dense<0.000000e+00> : vector<8x64xf32>
    %131 = tpu.matmul %111, %130, %cst_84 {dimension_numbers = #tpu.dot_dimension_numbers<[1], [0], [0], [1], [0, 0, 1, 1], [], []>} : vector<8x64xf32>, vector<64x64xf32>, vector<8x64xf32> -> vector<8x64xf32>
    %132 = tpu.iota {dimensions = array<i32: 0>} : vector<8x8xi32>
    %133 = tpu.iota {dimensions = array<i32: 1>} : vector<8x8xi32>
    %c1_i32_85 = arith.constant 1 : i32
    %134 = vector.broadcast %c1_i32_85 : i32 to vector<8x8xi32>
    %135 = arith.addi %132, %134 : vector<8x8xi32>
    %136 = arith.cmpi eq, %133, %135 : vector<8x8xi32>
    %cst_86 = arith.constant 1.000000e+00 : f32
    %cst_87 = arith.constant 0.000000e+00 : f32
    %137 = vector.broadcast %cst_86 : f32 to vector<8x8xf32>
    %138 = vector.broadcast %cst_87 : f32 to vector<8x8xf32>
    %139 = arith.select %136, %137, %138 : vector<8x8xi1>, vector<8x8xf32>
    %cst_88 = arith.constant dense<0.000000e+00> : vector<8x64xf32>
    %140 = tpu.matmul %139, %131, %cst_88 {dimension_numbers = #tpu.dot_dimension_numbers<[1], [0], [0], [1], [0, 0, 1, 1], [], []>} : vector<8x8xf32>, vector<8x64xf32>, vector<8x64xf32> -> vector<8x64xf32>
    %141 = arith.addf %128, %140 : vector<8x64xf32>
    %142 = vector.broadcast %112 : vector<1x64xf32> to vector<8x64xf32>
    %143 = arith.addf %141, %142 : vector<8x64xf32>
    %c0_89 = arith.constant 0 : index
    %c0_90 = arith.constant 0 : index
    %144 = vector.load %arg14[%c0_89, %c0_90] : memref<64x64xf32, #tpu.memory_space<vmem>>, vector<64x64xf32>
    %cst_91 = arith.constant dense<0.000000e+00> : vector<8x64xf32>
    %145 = tpu.matmul %143, %144, %cst_91 {dimension_numbers = #tpu.dot_dimension_numbers<[1], [0], [0], [1], [0, 0, 1, 1], [], []>} : vector<8x64xf32>, vector<64x64xf32>, vector<8x64xf32> -> vector<8x64xf32>
    %cst_92 = arith.constant dense<0.000000e+00> : vector<64xf32>
    %146 = vector.multi_reduction <add>, %145, %cst_92 [0] : vector<8x64xf32> to vector<64xf32>
    %147 = vector.shape_cast %146 : vector<64xf32> to vector<1x64xf32>
    %cst_93 = arith.constant 8.000000e+00 : f32
    %148 = vector.broadcast %cst_93 : f32 to vector<1x64xf32>
    %149 = arith.divf %147, %148 : vector<1x64xf32>
    %150 = vector.broadcast %149 : vector<1x64xf32> to vector<8x64xf32>
    %151 = arith.subf %143, %150 : vector<8x64xf32>
    %152 = arith.mulf %151, %151 : vector<8x64xf32>
    %cst_94 = arith.constant dense<0.000000e+00> : vector<8x64xf32>
    %153 = tpu.matmul %152, %144, %cst_94 {dimension_numbers = #tpu.dot_dimension_numbers<[1], [0], [0], [1], [0, 0, 1, 1], [], []>} : vector<8x64xf32>, vector<64x64xf32>, vector<8x64xf32> -> vector<8x64xf32>
    %cst_95 = arith.constant dense<0.000000e+00> : vector<64xf32>
    %154 = vector.multi_reduction <add>, %153, %cst_95 [0] : vector<8x64xf32> to vector<64xf32>
    %155 = vector.shape_cast %154 : vector<64xf32> to vector<1x64xf32>
    %cst_96 = arith.constant 8.000000e+00 : f32
    %156 = vector.broadcast %cst_96 : f32 to vector<1x64xf32>
    %157 = arith.divf %155, %156 : vector<1x64xf32>
    %cst_97 = arith.constant 9.99999974E-6 : f32
    %158 = vector.broadcast %cst_97 : f32 to vector<1x64xf32>
    %159 = arith.addf %157, %158 : vector<1x64xf32>
    %160 = math.rsqrt %159 : vector<1x64xf32>
    %161 = vector.broadcast %160 : vector<1x64xf32> to vector<8x64xf32>
    %162 = arith.mulf %151, %161 : vector<8x64xf32>
    %cst_98 = arith.constant 0.000000e+00 : f32
    %163 = vector.broadcast %cst_98 : f32 to vector<8x64xf32>
    %164 = arith.maximumf %162, %163 : vector<8x64xf32>
    %c0_99 = arith.constant 0 : index
    %c0_100 = arith.constant 0 : index
    %165 = vector.load %arg13[%c0_99, %c0_100] : memref<1x128xf32, #tpu.memory_space<vmem>>, vector<1x128xf32>
    %c0_101 = arith.constant 0 : index
    %c0_102 = arith.constant 0 : index
    %c0_103 = arith.constant 0 : index
    %166 = vector.load %arg12[%c0_101, %c0_102, %c0_103] : memref<3x64x128xf32, #tpu.memory_space<vmem>>, vector<1x64x128xf32>
    %167 = vector.shape_cast %166 : vector<1x64x128xf32> to vector<64x128xf32>
    %cst_104 = arith.constant dense<0.000000e+00> : vector<8x128xf32>
    %168 = tpu.matmul %164, %167, %cst_104 {dimension_numbers = #tpu.dot_dimension_numbers<[1], [0], [0], [1], [0, 0, 1, 1], [], []>} : vector<8x64xf32>, vector<64x128xf32>, vector<8x128xf32> -> vector<8x128xf32>
    %169 = tpu.iota {dimensions = array<i32: 0>} : vector<8x8xi32>
    %170 = tpu.iota {dimensions = array<i32: 1>} : vector<8x8xi32>
    %c-1_i32_105 = arith.constant -1 : i32
    %171 = vector.broadcast %c-1_i32_105 : i32 to vector<8x8xi32>
    %172 = arith.addi %169, %171 : vector<8x8xi32>
    %173 = arith.cmpi eq, %170, %172 : vector<8x8xi32>
    %cst_106 = arith.constant 1.000000e+00 : f32
    %cst_107 = arith.constant 0.000000e+00 : f32
    %174 = vector.broadcast %cst_106 : f32 to vector<8x8xf32>
    %175 = vector.broadcast %cst_107 : f32 to vector<8x8xf32>
    %176 = arith.select %173, %174, %175 : vector<8x8xi1>, vector<8x8xf32>
    %cst_108 = arith.constant dense<0.000000e+00> : vector<8x128xf32>
    %177 = tpu.matmul %176, %168, %cst_108 {dimension_numbers = #tpu.dot_dimension_numbers<[1], [0], [0], [1], [0, 0, 1, 1], [], []>} : vector<8x8xf32>, vector<8x128xf32>, vector<8x128xf32> -> vector<8x128xf32>
    %c1_109 = arith.constant 1 : index
    %c0_110 = arith.constant 0 : index
    %c0_111 = arith.constant 0 : index
    %178 = vector.load %arg12[%c1_109, %c0_110, %c0_111] : memref<3x64x128xf32, #tpu.memory_space<vmem>>, vector<1x64x128xf32>
    %179 = vector.shape_cast %178 : vector<1x64x128xf32> to vector<64x128xf32>
    %cst_112 = arith.constant dense<0.000000e+00> : vector<8x128xf32>
    %180 = tpu.matmul %164, %179, %cst_112 {dimension_numbers = #tpu.dot_dimension_numbers<[1], [0], [0], [1], [0, 0, 1, 1], [], []>} : vector<8x64xf32>, vector<64x128xf32>, vector<8x128xf32> -> vector<8x128xf32>
    %181 = arith.addf %177, %180 : vector<8x128xf32>
    %c2_113 = arith.constant 2 : index
    %c0_114 = arith.constant 0 : index
    %c0_115 = arith.constant 0 : index
    %182 = vector.load %arg12[%c2_113, %c0_114, %c0_115] : memref<3x64x128xf32, #tpu.memory_space<vmem>>, vector<1x64x128xf32>
    %183 = vector.shape_cast %182 : vector<1x64x128xf32> to vector<64x128xf32>
    %cst_116 = arith.constant dense<0.000000e+00> : vector<8x128xf32>
    %184 = tpu.matmul %164, %183, %cst_116 {dimension_numbers = #tpu.dot_dimension_numbers<[1], [0], [0], [1], [0, 0, 1, 1], [], []>} : vector<8x64xf32>, vector<64x128xf32>, vector<8x128xf32> -> vector<8x128xf32>
    %185 = tpu.iota {dimensions = array<i32: 0>} : vector<8x8xi32>
    %186 = tpu.iota {dimensions = array<i32: 1>} : vector<8x8xi32>
    %c1_i32_117 = arith.constant 1 : i32
    %187 = vector.broadcast %c1_i32_117 : i32 to vector<8x8xi32>
    %188 = arith.addi %185, %187 : vector<8x8xi32>
    %189 = arith.cmpi eq, %186, %188 : vector<8x8xi32>
    %cst_118 = arith.constant 1.000000e+00 : f32
    %cst_119 = arith.constant 0.000000e+00 : f32
    %190 = vector.broadcast %cst_118 : f32 to vector<8x8xf32>
    %191 = vector.broadcast %cst_119 : f32 to vector<8x8xf32>
    %192 = arith.select %189, %190, %191 : vector<8x8xi1>, vector<8x8xf32>
    %cst_120 = arith.constant dense<0.000000e+00> : vector<8x128xf32>
    %193 = tpu.matmul %192, %184, %cst_120 {dimension_numbers = #tpu.dot_dimension_numbers<[1], [0], [0], [1], [0, 0, 1, 1], [], []>} : vector<8x8xf32>, vector<8x128xf32>, vector<8x128xf32> -> vector<8x128xf32>
    %194 = arith.addf %181, %193 : vector<8x128xf32>
    %195 = vector.broadcast %165 : vector<1x128xf32> to vector<8x128xf32>
    %196 = arith.addf %194, %195 : vector<8x128xf32>
    %c0_121 = arith.constant 0 : index
    %c0_122 = arith.constant 0 : index
    %197 = vector.load %arg15[%c0_121, %c0_122] : memref<128x128xf32, #tpu.memory_space<vmem>>, vector<128x128xf32>
    %cst_123 = arith.constant dense<0.000000e+00> : vector<8x128xf32>
    %198 = tpu.matmul %196, %197, %cst_123 {dimension_numbers = #tpu.dot_dimension_numbers<[1], [0], [0], [1], [0, 0, 1, 1], [], []>} : vector<8x128xf32>, vector<128x128xf32>, vector<8x128xf32> -> vector<8x128xf32>
    %cst_124 = arith.constant dense<0.000000e+00> : vector<128xf32>
    %199 = vector.multi_reduction <add>, %198, %cst_124 [0] : vector<8x128xf32> to vector<128xf32>
    %200 = vector.shape_cast %199 : vector<128xf32> to vector<1x128xf32>
    %cst_125 = arith.constant 8.000000e+00 : f32
    %201 = vector.broadcast %cst_125 : f32 to vector<1x128xf32>
    %202 = arith.divf %200, %201 : vector<1x128xf32>
    %203 = vector.broadcast %202 : vector<1x128xf32> to vector<8x128xf32>
    %204 = arith.subf %196, %203 : vector<8x128xf32>
    %205 = arith.mulf %204, %204 : vector<8x128xf32>
    %cst_126 = arith.constant dense<0.000000e+00> : vector<8x128xf32>
    %206 = tpu.matmul %205, %197, %cst_126 {dimension_numbers = #tpu.dot_dimension_numbers<[1], [0], [0], [1], [0, 0, 1, 1], [], []>} : vector<8x128xf32>, vector<128x128xf32>, vector<8x128xf32> -> vector<8x128xf32>
    %cst_127 = arith.constant dense<0.000000e+00> : vector<128xf32>
    %207 = vector.multi_reduction <add>, %206, %cst_127 [0] : vector<8x128xf32> to vector<128xf32>
    %208 = vector.shape_cast %207 : vector<128xf32> to vector<1x128xf32>
    %cst_128 = arith.constant 8.000000e+00 : f32
    %209 = vector.broadcast %cst_128 : f32 to vector<1x128xf32>
    %210 = arith.divf %208, %209 : vector<1x128xf32>
    %cst_129 = arith.constant 9.99999974E-6 : f32
    %211 = vector.broadcast %cst_129 : f32 to vector<1x128xf32>
    %212 = arith.addf %210, %211 : vector<1x128xf32>
    %213 = math.rsqrt %212 : vector<1x128xf32>
    %214 = vector.broadcast %213 : vector<1x128xf32> to vector<8x128xf32>
    %215 = arith.mulf %204, %214 : vector<8x128xf32>
    %cst_130 = arith.constant 0.000000e+00 : f32
    %216 = vector.broadcast %cst_130 : f32 to vector<8x128xf32>
    %217 = arith.maximumf %215, %216 : vector<8x128xf32>
    %c0_131 = arith.constant 0 : index
    %c0_132 = arith.constant 0 : index
    %218 = vector.load %arg16[%c0_131, %c0_132] : memref<4x8xf32, #tpu.memory_space<vmem>>, vector<4x8xf32>
    %c0_133 = arith.constant 0 : index
    %c0_134 = arith.constant 0 : index
    %219 = vector.load %arg17[%c0_133, %c0_134] : memref<128x64xf32, #tpu.memory_space<vmem>>, vector<128x64xf32>
    %cst_135 = arith.constant dense<0.000000e+00> : vector<4x128xf32>
    %220 = tpu.matmul %218, %217, %cst_135 {dimension_numbers = #tpu.dot_dimension_numbers<[1], [0], [0], [1], [0, 0, 1, 1], [], []>} : vector<4x8xf32>, vector<8x128xf32>, vector<4x128xf32> -> vector<4x128xf32>
    %cst_136 = arith.constant dense<0.000000e+00> : vector<4x64xf32>
    %221 = tpu.matmul %220, %219, %cst_136 {dimension_numbers = #tpu.dot_dimension_numbers<[1], [0], [0], [1], [0, 0, 1, 1], [], []>} : vector<4x128xf32>, vector<128x64xf32>, vector<4x64xf32> -> vector<4x64xf32>
    %cst_137 = arith.constant 0.000000e+00 : f32
    %222 = vector.broadcast %cst_137 : f32 to vector<4x64xf32>
    %223 = arith.maximumf %221, %222 : vector<4x64xf32>
    %c0_138 = arith.constant 0 : index
    %c0_139 = arith.constant 0 : index
    %c0_140 = arith.constant 0 : index
    %224 = vector.load %arg18[%c0_138, %c0_139, %c0_140] : memref<6x64x32xf32, #tpu.memory_space<vmem>>, vector<1x64x32xf32>
    %225 = vector.shape_cast %224 : vector<1x64x32xf32> to vector<64x32xf32>
    %cst_141 = arith.constant dense<0.000000e+00> : vector<4x32xf32>
    %226 = tpu.matmul %223, %225, %cst_141 {dimension_numbers = #tpu.dot_dimension_numbers<[1], [0], [0], [1], [0, 0, 1, 1], [], []>} : vector<4x64xf32>, vector<64x32xf32>, vector<4x32xf32> -> vector<4x32xf32>
    %227 = tpu.iota {dimensions = array<i32: 0>} : vector<4x4xi32>
    %228 = tpu.iota {dimensions = array<i32: 1>} : vector<4x4xi32>
    %c-1_i32_142 = arith.constant -1 : i32
    %229 = vector.broadcast %c-1_i32_142 : i32 to vector<4x4xi32>
    %230 = arith.addi %227, %229 : vector<4x4xi32>
    %231 = arith.cmpi eq, %228, %230 : vector<4x4xi32>
    %cst_143 = arith.constant 1.000000e+00 : f32
    %cst_144 = arith.constant 0.000000e+00 : f32
    %232 = vector.broadcast %cst_143 : f32 to vector<4x4xf32>
    %233 = vector.broadcast %cst_144 : f32 to vector<4x4xf32>
    %234 = arith.select %231, %232, %233 : vector<4x4xi1>, vector<4x4xf32>
    %cst_145 = arith.constant dense<0.000000e+00> : vector<4x32xf32>
    %235 = tpu.matmul %234, %226, %cst_145 {dimension_numbers = #tpu.dot_dimension_numbers<[1], [0], [0], [1], [0, 0, 1, 1], [], []>} : vector<4x4xf32>, vector<4x32xf32>, vector<4x32xf32> -> vector<4x32xf32>
    %c1_146 = arith.constant 1 : index
    %c0_147 = arith.constant 0 : index
    %c0_148 = arith.constant 0 : index
    %236 = vector.load %arg18[%c1_146, %c0_147, %c0_148] : memref<6x64x32xf32, #tpu.memory_space<vmem>>, vector<1x64x32xf32>
    %237 = vector.shape_cast %236 : vector<1x64x32xf32> to vector<64x32xf32>
    %cst_149 = arith.constant dense<0.000000e+00> : vector<4x32xf32>
    %238 = tpu.matmul %223, %237, %cst_149 {dimension_numbers = #tpu.dot_dimension_numbers<[1], [0], [0], [1], [0, 0, 1, 1], [], []>} : vector<4x64xf32>, vector<64x32xf32>, vector<4x32xf32> -> vector<4x32xf32>
    %239 = arith.addf %235, %238 : vector<4x32xf32>
    %c2_150 = arith.constant 2 : index
    %c0_151 = arith.constant 0 : index
    %c0_152 = arith.constant 0 : index
    %240 = vector.load %arg18[%c2_150, %c0_151, %c0_152] : memref<6x64x32xf32, #tpu.memory_space<vmem>>, vector<1x64x32xf32>
    %241 = vector.shape_cast %240 : vector<1x64x32xf32> to vector<64x32xf32>
    %cst_153 = arith.constant dense<0.000000e+00> : vector<4x32xf32>
    %242 = tpu.matmul %223, %241, %cst_153 {dimension_numbers = #tpu.dot_dimension_numbers<[1], [0], [0], [1], [0, 0, 1, 1], [], []>} : vector<4x64xf32>, vector<64x32xf32>, vector<4x32xf32> -> vector<4x32xf32>
    %243 = tpu.iota {dimensions = array<i32: 0>} : vector<4x4xi32>
    %244 = tpu.iota {dimensions = array<i32: 1>} : vector<4x4xi32>
    %c1_i32_154 = arith.constant 1 : i32
    %245 = vector.broadcast %c1_i32_154 : i32 to vector<4x4xi32>
    %246 = arith.addi %243, %245 : vector<4x4xi32>
    %247 = arith.cmpi eq, %244, %246 : vector<4x4xi32>
    %cst_155 = arith.constant 1.000000e+00 : f32
    %cst_156 = arith.constant 0.000000e+00 : f32
    %248 = vector.broadcast %cst_155 : f32 to vector<4x4xf32>
    %249 = vector.broadcast %cst_156 : f32 to vector<4x4xf32>
    %250 = arith.select %247, %248, %249 : vector<4x4xi1>, vector<4x4xf32>
    %cst_157 = arith.constant dense<0.000000e+00> : vector<4x32xf32>
    %251 = tpu.matmul %250, %242, %cst_157 {dimension_numbers = #tpu.dot_dimension_numbers<[1], [0], [0], [1], [0, 0, 1, 1], [], []>} : vector<4x4xf32>, vector<4x32xf32>, vector<4x32xf32> -> vector<4x32xf32>
    %252 = arith.addf %239, %251 : vector<4x32xf32>
    %cst_158 = arith.constant 0.000000e+00 : f32
    %253 = vector.broadcast %cst_158 : f32 to vector<4x32xf32>
    %254 = arith.maximumf %252, %253 : vector<4x32xf32>
    %c0_159 = arith.constant 0 : index
    %c0_160 = arith.constant 0 : index
    %c0_161 = arith.constant 0 : index
    %255 = vector.load %arg19[%c0_159, %c0_160, %c0_161] : memref<2x32x64xf32, #tpu.memory_space<vmem>>, vector<1x32x64xf32>
    %256 = vector.shape_cast %255 : vector<1x32x64xf32> to vector<32x64xf32>
    %cst_162 = arith.constant dense<0.000000e+00> : vector<4x64xf32>
    %257 = tpu.matmul %254, %256, %cst_162 {dimension_numbers = #tpu.dot_dimension_numbers<[1], [0], [0], [1], [0, 0, 1, 1], [], []>} : vector<4x32xf32>, vector<32x64xf32>, vector<4x64xf32> -> vector<4x64xf32>
    %258 = arith.addf %221, %257 : vector<4x64xf32>
    %cst_163 = arith.constant 0.000000e+00 : f32
    %259 = vector.broadcast %cst_163 : f32 to vector<4x64xf32>
    %260 = arith.maximumf %258, %259 : vector<4x64xf32>
    %c3 = arith.constant 3 : index
    %c0_164 = arith.constant 0 : index
    %c0_165 = arith.constant 0 : index
    %261 = vector.load %arg18[%c3, %c0_164, %c0_165] : memref<6x64x32xf32, #tpu.memory_space<vmem>>, vector<1x64x32xf32>
    %262 = vector.shape_cast %261 : vector<1x64x32xf32> to vector<64x32xf32>
    %cst_166 = arith.constant dense<0.000000e+00> : vector<4x32xf32>
    %263 = tpu.matmul %260, %262, %cst_166 {dimension_numbers = #tpu.dot_dimension_numbers<[1], [0], [0], [1], [0, 0, 1, 1], [], []>} : vector<4x64xf32>, vector<64x32xf32>, vector<4x32xf32> -> vector<4x32xf32>
    %264 = tpu.iota {dimensions = array<i32: 0>} : vector<4x4xi32>
    %265 = tpu.iota {dimensions = array<i32: 1>} : vector<4x4xi32>
    %c-1_i32_167 = arith.constant -1 : i32
    %266 = vector.broadcast %c-1_i32_167 : i32 to vector<4x4xi32>
    %267 = arith.addi %264, %266 : vector<4x4xi32>
    %268 = arith.cmpi eq, %265, %267 : vector<4x4xi32>
    %cst_168 = arith.constant 1.000000e+00 : f32
    %cst_169 = arith.constant 0.000000e+00 : f32
    %269 = vector.broadcast %cst_168 : f32 to vector<4x4xf32>
    %270 = vector.broadcast %cst_169 : f32 to vector<4x4xf32>
    %271 = arith.select %268, %269, %270 : vector<4x4xi1>, vector<4x4xf32>
    %cst_170 = arith.constant dense<0.000000e+00> : vector<4x32xf32>
    %272 = tpu.matmul %271, %263, %cst_170 {dimension_numbers = #tpu.dot_dimension_numbers<[1], [0], [0], [1], [0, 0, 1, 1], [], []>} : vector<4x4xf32>, vector<4x32xf32>, vector<4x32xf32> -> vector<4x32xf32>
    %c4 = arith.constant 4 : index
    %c0_171 = arith.constant 0 : index
    %c0_172 = arith.constant 0 : index
    %273 = vector.load %arg18[%c4, %c0_171, %c0_172] : memref<6x64x32xf32, #tpu.memory_space<vmem>>, vector<1x64x32xf32>
    %274 = vector.shape_cast %273 : vector<1x64x32xf32> to vector<64x32xf32>
    %cst_173 = arith.constant dense<0.000000e+00> : vector<4x32xf32>
    %275 = tpu.matmul %260, %274, %cst_173 {dimension_numbers = #tpu.dot_dimension_numbers<[1], [0], [0], [1], [0, 0, 1, 1], [], []>} : vector<4x64xf32>, vector<64x32xf32>, vector<4x32xf32> -> vector<4x32xf32>
    %276 = arith.addf %272, %275 : vector<4x32xf32>
    %c5 = arith.constant 5 : index
    %c0_174 = arith.constant 0 : index
    %c0_175 = arith.constant 0 : index
    %277 = vector.load %arg18[%c5, %c0_174, %c0_175] : memref<6x64x32xf32, #tpu.memory_space<vmem>>, vector<1x64x32xf32>
    %278 = vector.shape_cast %277 : vector<1x64x32xf32> to vector<64x32xf32>
    %cst_176 = arith.constant dense<0.000000e+00> : vector<4x32xf32>
    %279 = tpu.matmul %260, %278, %cst_176 {dimension_numbers = #tpu.dot_dimension_numbers<[1], [0], [0], [1], [0, 0, 1, 1], [], []>} : vector<4x64xf32>, vector<64x32xf32>, vector<4x32xf32> -> vector<4x32xf32>
    %280 = tpu.iota {dimensions = array<i32: 0>} : vector<4x4xi32>
    %281 = tpu.iota {dimensions = array<i32: 1>} : vector<4x4xi32>
    %c1_i32_177 = arith.constant 1 : i32
    %282 = vector.broadcast %c1_i32_177 : i32 to vector<4x4xi32>
    %283 = arith.addi %280, %282 : vector<4x4xi32>
    %284 = arith.cmpi eq, %281, %283 : vector<4x4xi32>
    %cst_178 = arith.constant 1.000000e+00 : f32
    %cst_179 = arith.constant 0.000000e+00 : f32
    %285 = vector.broadcast %cst_178 : f32 to vector<4x4xf32>
    %286 = vector.broadcast %cst_179 : f32 to vector<4x4xf32>
    %287 = arith.select %284, %285, %286 : vector<4x4xi1>, vector<4x4xf32>
    %cst_180 = arith.constant dense<0.000000e+00> : vector<4x32xf32>
    %288 = tpu.matmul %287, %279, %cst_180 {dimension_numbers = #tpu.dot_dimension_numbers<[1], [0], [0], [1], [0, 0, 1, 1], [], []>} : vector<4x4xf32>, vector<4x32xf32>, vector<4x32xf32> -> vector<4x32xf32>
    %289 = arith.addf %276, %288 : vector<4x32xf32>
    %cst_181 = arith.constant 0.000000e+00 : f32
    %290 = vector.broadcast %cst_181 : f32 to vector<4x32xf32>
    %291 = arith.maximumf %289, %290 : vector<4x32xf32>
    %c1_182 = arith.constant 1 : index
    %c0_183 = arith.constant 0 : index
    %c0_184 = arith.constant 0 : index
    %292 = vector.load %arg19[%c1_182, %c0_183, %c0_184] : memref<2x32x64xf32, #tpu.memory_space<vmem>>, vector<1x32x64xf32>
    %293 = vector.shape_cast %292 : vector<1x32x64xf32> to vector<32x64xf32>
    %cst_185 = arith.constant dense<0.000000e+00> : vector<4x64xf32>
    %294 = tpu.matmul %291, %293, %cst_185 {dimension_numbers = #tpu.dot_dimension_numbers<[1], [0], [0], [1], [0, 0, 1, 1], [], []>} : vector<4x32xf32>, vector<32x64xf32>, vector<4x64xf32> -> vector<4x64xf32>
    %295 = arith.addf %258, %294 : vector<4x64xf32>
    %cst_186 = arith.constant 0.000000e+00 : f32
    %296 = vector.broadcast %cst_186 : f32 to vector<4x64xf32>
    %297 = arith.maximumf %295, %296 : vector<4x64xf32>
    %c0_187 = arith.constant 0 : index
    %c0_188 = arith.constant 0 : index
    %298 = vector.load %arg21[%c0_187, %c0_188] : memref<1x32xf32, #tpu.memory_space<vmem>>, vector<1x32xf32>
    %c0_189 = arith.constant 0 : index
    %c0_190 = arith.constant 0 : index
    %c0_191 = arith.constant 0 : index
    %299 = vector.load %arg20[%c0_189, %c0_190, %c0_191] : memref<16x64x32xf32, #tpu.memory_space<vmem>>, vector<1x64x32xf32>
    %300 = vector.shape_cast %299 : vector<1x64x32xf32> to vector<64x32xf32>
    %cst_192 = arith.constant dense<0.000000e+00> : vector<4x32xf32>
    %301 = tpu.matmul %297, %300, %cst_192 {dimension_numbers = #tpu.dot_dimension_numbers<[1], [0], [0], [1], [0, 0, 1, 1], [], []>} : vector<4x64xf32>, vector<64x32xf32>, vector<4x32xf32> -> vector<4x32xf32>
    %c1_193 = arith.constant 1 : index
    %c0_194 = arith.constant 0 : index
    %c0_195 = arith.constant 0 : index
    %302 = vector.load %arg20[%c1_193, %c0_194, %c0_195] : memref<16x64x32xf32, #tpu.memory_space<vmem>>, vector<1x64x32xf32>
    %303 = vector.shape_cast %302 : vector<1x64x32xf32> to vector<64x32xf32>
    %cst_196 = arith.constant dense<0.000000e+00> : vector<4x32xf32>
    %304 = tpu.matmul %221, %303, %cst_196 {dimension_numbers = #tpu.dot_dimension_numbers<[1], [0], [0], [1], [0, 0, 1, 1], [], []>} : vector<4x64xf32>, vector<64x32xf32>, vector<4x32xf32> -> vector<4x32xf32>
    %305 = arith.addf %301, %304 : vector<4x32xf32>
    %306 = tpu.iota {dimensions = array<i32: 0>} : vector<4x4xi32>
    %307 = tpu.iota {dimensions = array<i32: 1>} : vector<4x4xi32>
    %c-1_i32_197 = arith.constant -1 : i32
    %308 = vector.broadcast %c-1_i32_197 : i32 to vector<4x4xi32>
    %309 = arith.addi %306, %308 : vector<4x4xi32>
    %310 = arith.cmpi eq, %307, %309 : vector<4x4xi32>
    %cst_198 = arith.constant 1.000000e+00 : f32
    %cst_199 = arith.constant 0.000000e+00 : f32
    %311 = vector.broadcast %cst_198 : f32 to vector<4x4xf32>
    %312 = vector.broadcast %cst_199 : f32 to vector<4x4xf32>
    %313 = arith.select %310, %311, %312 : vector<4x4xi1>, vector<4x4xf32>
    %cst_200 = arith.constant dense<0.000000e+00> : vector<4x32xf32>
    %314 = tpu.matmul %313, %305, %cst_200 {dimension_numbers = #tpu.dot_dimension_numbers<[1], [0], [0], [1], [0, 0, 1, 1], [], []>} : vector<4x4xf32>, vector<4x32xf32>, vector<4x32xf32> -> vector<4x32xf32>
    %c2_201 = arith.constant 2 : index
    %c0_202 = arith.constant 0 : index
    %c0_203 = arith.constant 0 : index
    %315 = vector.load %arg20[%c2_201, %c0_202, %c0_203] : memref<16x64x32xf32, #tpu.memory_space<vmem>>, vector<1x64x32xf32>
    %316 = vector.shape_cast %315 : vector<1x64x32xf32> to vector<64x32xf32>
    %cst_204 = arith.constant dense<0.000000e+00> : vector<4x32xf32>
    %317 = tpu.matmul %297, %316, %cst_204 {dimension_numbers = #tpu.dot_dimension_numbers<[1], [0], [0], [1], [0, 0, 1, 1], [], []>} : vector<4x64xf32>, vector<64x32xf32>, vector<4x32xf32> -> vector<4x32xf32>
    %c3_205 = arith.constant 3 : index
    %c0_206 = arith.constant 0 : index
    %c0_207 = arith.constant 0 : index
    %318 = vector.load %arg20[%c3_205, %c0_206, %c0_207] : memref<16x64x32xf32, #tpu.memory_space<vmem>>, vector<1x64x32xf32>
    %319 = vector.shape_cast %318 : vector<1x64x32xf32> to vector<64x32xf32>
    %cst_208 = arith.constant dense<0.000000e+00> : vector<4x32xf32>
    %320 = tpu.matmul %221, %319, %cst_208 {dimension_numbers = #tpu.dot_dimension_numbers<[1], [0], [0], [1], [0, 0, 1, 1], [], []>} : vector<4x64xf32>, vector<64x32xf32>, vector<4x32xf32> -> vector<4x32xf32>
    %321 = arith.addf %317, %320 : vector<4x32xf32>
    %322 = arith.addf %314, %321 : vector<4x32xf32>
    %323 = vector.broadcast %298 : vector<1x32xf32> to vector<4x32xf32>
    %324 = arith.addf %322, %323 : vector<4x32xf32>
    %c4_209 = arith.constant 4 : index
    %c0_210 = arith.constant 0 : index
    %c0_211 = arith.constant 0 : index
    %325 = vector.load %arg20[%c4_209, %c0_210, %c0_211] : memref<16x64x32xf32, #tpu.memory_space<vmem>>, vector<1x64x32xf32>
    %326 = vector.shape_cast %325 : vector<1x64x32xf32> to vector<64x32xf32>
    %cst_212 = arith.constant dense<0.000000e+00> : vector<4x32xf32>
    %327 = tpu.matmul %297, %326, %cst_212 {dimension_numbers = #tpu.dot_dimension_numbers<[1], [0], [0], [1], [0, 0, 1, 1], [], []>} : vector<4x64xf32>, vector<64x32xf32>, vector<4x32xf32> -> vector<4x32xf32>
    %c5_213 = arith.constant 5 : index
    %c0_214 = arith.constant 0 : index
    %c0_215 = arith.constant 0 : index
    %328 = vector.load %arg20[%c5_213, %c0_214, %c0_215] : memref<16x64x32xf32, #tpu.memory_space<vmem>>, vector<1x64x32xf32>
    %329 = vector.shape_cast %328 : vector<1x64x32xf32> to vector<64x32xf32>
    %cst_216 = arith.constant dense<0.000000e+00> : vector<4x32xf32>
    %330 = tpu.matmul %221, %329, %cst_216 {dimension_numbers = #tpu.dot_dimension_numbers<[1], [0], [0], [1], [0, 0, 1, 1], [], []>} : vector<4x64xf32>, vector<64x32xf32>, vector<4x32xf32> -> vector<4x32xf32>
    %331 = arith.addf %327, %330 : vector<4x32xf32>
    %332 = tpu.iota {dimensions = array<i32: 0>} : vector<4x4xi32>
    %333 = tpu.iota {dimensions = array<i32: 1>} : vector<4x4xi32>
    %c-1_i32_217 = arith.constant -1 : i32
    %334 = vector.broadcast %c-1_i32_217 : i32 to vector<4x4xi32>
    %335 = arith.addi %332, %334 : vector<4x4xi32>
    %336 = arith.cmpi eq, %333, %335 : vector<4x4xi32>
    %cst_218 = arith.constant 1.000000e+00 : f32
    %cst_219 = arith.constant 0.000000e+00 : f32
    %337 = vector.broadcast %cst_218 : f32 to vector<4x4xf32>
    %338 = vector.broadcast %cst_219 : f32 to vector<4x4xf32>
    %339 = arith.select %336, %337, %338 : vector<4x4xi1>, vector<4x4xf32>
    %cst_220 = arith.constant dense<0.000000e+00> : vector<4x32xf32>
    %340 = tpu.matmul %339, %331, %cst_220 {dimension_numbers = #tpu.dot_dimension_numbers<[1], [0], [0], [1], [0, 0, 1, 1], [], []>} : vector<4x4xf32>, vector<4x32xf32>, vector<4x32xf32> -> vector<4x32xf32>
    %c6 = arith.constant 6 : index
    %c0_221 = arith.constant 0 : index
    %c0_222 = arith.constant 0 : index
    %341 = vector.load %arg20[%c6, %c0_221, %c0_222] : memref<16x64x32xf32, #tpu.memory_space<vmem>>, vector<1x64x32xf32>
    %342 = vector.shape_cast %341 : vector<1x64x32xf32> to vector<64x32xf32>
    %cst_223 = arith.constant dense<0.000000e+00> : vector<4x32xf32>
    %343 = tpu.matmul %297, %342, %cst_223 {dimension_numbers = #tpu.dot_dimension_numbers<[1], [0], [0], [1], [0, 0, 1, 1], [], []>} : vector<4x64xf32>, vector<64x32xf32>, vector<4x32xf32> -> vector<4x32xf32>
    %c7 = arith.constant 7 : index
    %c0_224 = arith.constant 0 : index
    %c0_225 = arith.constant 0 : index
    %344 = vector.load %arg20[%c7, %c0_224, %c0_225] : memref<16x64x32xf32, #tpu.memory_space<vmem>>, vector<1x64x32xf32>
    %345 = vector.shape_cast %344 : vector<1x64x32xf32> to vector<64x32xf32>
    %cst_226 = arith.constant dense<0.000000e+00> : vector<4x32xf32>
    %346 = tpu.matmul %221, %345, %cst_226 {dimension_numbers = #tpu.dot_dimension_numbers<[1], [0], [0], [1], [0, 0, 1, 1], [], []>} : vector<4x64xf32>, vector<64x32xf32>, vector<4x32xf32> -> vector<4x32xf32>
    %347 = arith.addf %343, %346 : vector<4x32xf32>
    %348 = arith.addf %340, %347 : vector<4x32xf32>
    %349 = vector.broadcast %298 : vector<1x32xf32> to vector<4x32xf32>
    %350 = arith.addf %348, %349 : vector<4x32xf32>
    %c8 = arith.constant 8 : index
    %c0_227 = arith.constant 0 : index
    %c0_228 = arith.constant 0 : index
    %351 = vector.load %arg20[%c8, %c0_227, %c0_228] : memref<16x64x32xf32, #tpu.memory_space<vmem>>, vector<1x64x32xf32>
    %352 = vector.shape_cast %351 : vector<1x64x32xf32> to vector<64x32xf32>
    %cst_229 = arith.constant dense<0.000000e+00> : vector<4x32xf32>
    %353 = tpu.matmul %297, %352, %cst_229 {dimension_numbers = #tpu.dot_dimension_numbers<[1], [0], [0], [1], [0, 0, 1, 1], [], []>} : vector<4x64xf32>, vector<64x32xf32>, vector<4x32xf32> -> vector<4x32xf32>
    %c9 = arith.constant 9 : index
    %c0_230 = arith.constant 0 : index
    %c0_231 = arith.constant 0 : index
    %354 = vector.load %arg20[%c9, %c0_230, %c0_231] : memref<16x64x32xf32, #tpu.memory_space<vmem>>, vector<1x64x32xf32>
    %355 = vector.shape_cast %354 : vector<1x64x32xf32> to vector<64x32xf32>
    %cst_232 = arith.constant dense<0.000000e+00> : vector<4x32xf32>
    %356 = tpu.matmul %221, %355, %cst_232 {dimension_numbers = #tpu.dot_dimension_numbers<[1], [0], [0], [1], [0, 0, 1, 1], [], []>} : vector<4x64xf32>, vector<64x32xf32>, vector<4x32xf32> -> vector<4x32xf32>
    %357 = arith.addf %353, %356 : vector<4x32xf32>
    %c10 = arith.constant 10 : index
    %c0_233 = arith.constant 0 : index
    %c0_234 = arith.constant 0 : index
    %358 = vector.load %arg20[%c10, %c0_233, %c0_234] : memref<16x64x32xf32, #tpu.memory_space<vmem>>, vector<1x64x32xf32>
    %359 = vector.shape_cast %358 : vector<1x64x32xf32> to vector<64x32xf32>
    %cst_235 = arith.constant dense<0.000000e+00> : vector<4x32xf32>
    %360 = tpu.matmul %297, %359, %cst_235 {dimension_numbers = #tpu.dot_dimension_numbers<[1], [0], [0], [1], [0, 0, 1, 1], [], []>} : vector<4x64xf32>, vector<64x32xf32>, vector<4x32xf32> -> vector<4x32xf32>
    %c11 = arith.constant 11 : index
    %c0_236 = arith.constant 0 : index
    %c0_237 = arith.constant 0 : index
    %361 = vector.load %arg20[%c11, %c0_236, %c0_237] : memref<16x64x32xf32, #tpu.memory_space<vmem>>, vector<1x64x32xf32>
    %362 = vector.shape_cast %361 : vector<1x64x32xf32> to vector<64x32xf32>
    %cst_238 = arith.constant dense<0.000000e+00> : vector<4x32xf32>
    %363 = tpu.matmul %221, %362, %cst_238 {dimension_numbers = #tpu.dot_dimension_numbers<[1], [0], [0], [1], [0, 0, 1, 1], [], []>} : vector<4x64xf32>, vector<64x32xf32>, vector<4x32xf32> -> vector<4x32xf32>
    %364 = arith.addf %360, %363 : vector<4x32xf32>
    %365 = tpu.iota {dimensions = array<i32: 0>} : vector<4x4xi32>
    %366 = tpu.iota {dimensions = array<i32: 1>} : vector<4x4xi32>
    %c1_i32_239 = arith.constant 1 : i32
    %367 = vector.broadcast %c1_i32_239 : i32 to vector<4x4xi32>
    %368 = arith.addi %365, %367 : vector<4x4xi32>
    %369 = arith.cmpi eq, %366, %368 : vector<4x4xi32>
    %cst_240 = arith.constant 1.000000e+00 : f32
    %cst_241 = arith.constant 0.000000e+00 : f32
    %370 = vector.broadcast %cst_240 : f32 to vector<4x4xf32>
    %371 = vector.broadcast %cst_241 : f32 to vector<4x4xf32>
    %372 = arith.select %369, %370, %371 : vector<4x4xi1>, vector<4x4xf32>
    %cst_242 = arith.constant dense<0.000000e+00> : vector<4x32xf32>
    %373 = tpu.matmul %372, %364, %cst_242 {dimension_numbers = #tpu.dot_dimension_numbers<[1], [0], [0], [1], [0, 0, 1, 1], [], []>} : vector<4x4xf32>, vector<4x32xf32>, vector<4x32xf32> -> vector<4x32xf32>
    %374 = arith.addf %357, %373 : vector<4x32xf32>
    %375 = vector.broadcast %298 : vector<1x32xf32> to vector<4x32xf32>
    %376 = arith.addf %374, %375 : vector<4x32xf32>
    %c12 = arith.constant 12 : index
    %c0_243 = arith.constant 0 : index
    %c0_244 = arith.constant 0 : index
    %377 = vector.load %arg20[%c12, %c0_243, %c0_244] : memref<16x64x32xf32, #tpu.memory_space<vmem>>, vector<1x64x32xf32>
    %378 = vector.shape_cast %377 : vector<1x64x32xf32> to vector<64x32xf32>
    %cst_245 = arith.constant dense<0.000000e+00> : vector<4x32xf32>
    %379 = tpu.matmul %297, %378, %cst_245 {dimension_numbers = #tpu.dot_dimension_numbers<[1], [0], [0], [1], [0, 0, 1, 1], [], []>} : vector<4x64xf32>, vector<64x32xf32>, vector<4x32xf32> -> vector<4x32xf32>
    %c13 = arith.constant 13 : index
    %c0_246 = arith.constant 0 : index
    %c0_247 = arith.constant 0 : index
    %380 = vector.load %arg20[%c13, %c0_246, %c0_247] : memref<16x64x32xf32, #tpu.memory_space<vmem>>, vector<1x64x32xf32>
    %381 = vector.shape_cast %380 : vector<1x64x32xf32> to vector<64x32xf32>
    %cst_248 = arith.constant dense<0.000000e+00> : vector<4x32xf32>
    %382 = tpu.matmul %221, %381, %cst_248 {dimension_numbers = #tpu.dot_dimension_numbers<[1], [0], [0], [1], [0, 0, 1, 1], [], []>} : vector<4x64xf32>, vector<64x32xf32>, vector<4x32xf32> -> vector<4x32xf32>
    %383 = arith.addf %379, %382 : vector<4x32xf32>
    %c14 = arith.constant 14 : index
    %c0_249 = arith.constant 0 : index
    %c0_250 = arith.constant 0 : index
    %384 = vector.load %arg20[%c14, %c0_249, %c0_250] : memref<16x64x32xf32, #tpu.memory_space<vmem>>, vector<1x64x32xf32>
    %385 = vector.shape_cast %384 : vector<1x64x32xf32> to vector<64x32xf32>
    %cst_251 = arith.constant dense<0.000000e+00> : vector<4x32xf32>
    %386 = tpu.matmul %297, %385, %cst_251 {dimension_numbers = #tpu.dot_dimension_numbers<[1], [0], [0], [1], [0, 0, 1, 1], [], []>} : vector<4x64xf32>, vector<64x32xf32>, vector<4x32xf32> -> vector<4x32xf32>
    %c15 = arith.constant 15 : index
    %c0_252 = arith.constant 0 : index
    %c0_253 = arith.constant 0 : index
    %387 = vector.load %arg20[%c15, %c0_252, %c0_253] : memref<16x64x32xf32, #tpu.memory_space<vmem>>, vector<1x64x32xf32>
    %388 = vector.shape_cast %387 : vector<1x64x32xf32> to vector<64x32xf32>
    %cst_254 = arith.constant dense<0.000000e+00> : vector<4x32xf32>
    %389 = tpu.matmul %221, %388, %cst_254 {dimension_numbers = #tpu.dot_dimension_numbers<[1], [0], [0], [1], [0, 0, 1, 1], [], []>} : vector<4x64xf32>, vector<64x32xf32>, vector<4x32xf32> -> vector<4x32xf32>
    %390 = arith.addf %386, %389 : vector<4x32xf32>
    %391 = tpu.iota {dimensions = array<i32: 0>} : vector<4x4xi32>
    %392 = tpu.iota {dimensions = array<i32: 1>} : vector<4x4xi32>
    %c1_i32_255 = arith.constant 1 : i32
    %393 = vector.broadcast %c1_i32_255 : i32 to vector<4x4xi32>
    %394 = arith.addi %391, %393 : vector<4x4xi32>
    %395 = arith.cmpi eq, %392, %394 : vector<4x4xi32>
    %cst_256 = arith.constant 1.000000e+00 : f32
    %cst_257 = arith.constant 0.000000e+00 : f32
    %396 = vector.broadcast %cst_256 : f32 to vector<4x4xf32>
    %397 = vector.broadcast %cst_257 : f32 to vector<4x4xf32>
    %398 = arith.select %395, %396, %397 : vector<4x4xi1>, vector<4x4xf32>
    %cst_258 = arith.constant dense<0.000000e+00> : vector<4x32xf32>
    %399 = tpu.matmul %398, %390, %cst_258 {dimension_numbers = #tpu.dot_dimension_numbers<[1], [0], [0], [1], [0, 0, 1, 1], [], []>} : vector<4x4xf32>, vector<4x32xf32>, vector<4x32xf32> -> vector<4x32xf32>
    %400 = arith.addf %383, %399 : vector<4x32xf32>
    %401 = vector.broadcast %298 : vector<1x32xf32> to vector<4x32xf32>
    %402 = arith.addf %400, %401 : vector<4x32xf32>
    %c0_259 = arith.constant 0 : index
    %c0_260 = arith.constant 0 : index
    %c0_261 = arith.constant 0 : index
    %403 = vector.load %arg22[%c0_259, %c0_260, %c0_261] : memref<2x32x64xf32, #tpu.memory_space<vmem>>, vector<1x32x64xf32>
    %404 = vector.shape_cast %403 : vector<1x32x64xf32> to vector<32x64xf32>
    %cst_262 = arith.constant dense<0.000000e+00> : vector<4x64xf32>
    %405 = tpu.matmul %324, %404, %cst_262 {dimension_numbers = #tpu.dot_dimension_numbers<[1], [0], [0], [1], [0, 0, 1, 1], [], []>} : vector<4x32xf32>, vector<32x64xf32>, vector<4x64xf32> -> vector<4x64xf32>
    %c1_263 = arith.constant 1 : index
    %c0_264 = arith.constant 0 : index
    %c0_265 = arith.constant 0 : index
    %406 = vector.load %arg22[%c1_263, %c0_264, %c0_265] : memref<2x32x64xf32, #tpu.memory_space<vmem>>, vector<1x32x64xf32>
    %407 = vector.shape_cast %406 : vector<1x32x64xf32> to vector<32x64xf32>
    %cst_266 = arith.constant dense<0.000000e+00> : vector<4x64xf32>
    %408 = tpu.matmul %350, %407, %cst_266 {dimension_numbers = #tpu.dot_dimension_numbers<[1], [0], [0], [1], [0, 0, 1, 1], [], []>} : vector<4x32xf32>, vector<32x64xf32>, vector<4x64xf32> -> vector<4x64xf32>
    %409 = arith.addf %405, %408 : vector<4x64xf32>
    %c0_267 = arith.constant 0 : index
    %c0_268 = arith.constant 0 : index
    %c0_269 = arith.constant 0 : index
    %410 = vector.load %arg22[%c0_267, %c0_268, %c0_269] : memref<2x32x64xf32, #tpu.memory_space<vmem>>, vector<1x32x64xf32>
    %411 = vector.shape_cast %410 : vector<1x32x64xf32> to vector<32x64xf32>
    %cst_270 = arith.constant dense<0.000000e+00> : vector<4x64xf32>
    %412 = tpu.matmul %376, %411, %cst_270 {dimension_numbers = #tpu.dot_dimension_numbers<[1], [0], [0], [1], [0, 0, 1, 1], [], []>} : vector<4x32xf32>, vector<32x64xf32>, vector<4x64xf32> -> vector<4x64xf32>
    %c1_271 = arith.constant 1 : index
    %c0_272 = arith.constant 0 : index
    %c0_273 = arith.constant 0 : index
    %413 = vector.load %arg22[%c1_271, %c0_272, %c0_273] : memref<2x32x64xf32, #tpu.memory_space<vmem>>, vector<1x32x64xf32>
    %414 = vector.shape_cast %413 : vector<1x32x64xf32> to vector<32x64xf32>
    %cst_274 = arith.constant dense<0.000000e+00> : vector<4x64xf32>
    %415 = tpu.matmul %402, %414, %cst_274 {dimension_numbers = #tpu.dot_dimension_numbers<[1], [0], [0], [1], [0, 0, 1, 1], [], []>} : vector<4x32xf32>, vector<32x64xf32>, vector<4x64xf32> -> vector<4x64xf32>
    %416 = arith.addf %412, %415 : vector<4x64xf32>
    %c0_275 = arith.constant 0 : index
    %c0_276 = arith.constant 0 : index
    %c0_277 = arith.constant 0 : index
    %417 = vector.load %arg23[%c0_275, %c0_276, %c0_277] : memref<2x8x4xf32, #tpu.memory_space<vmem>>, vector<1x8x4xf32>
    %418 = vector.shape_cast %417 : vector<1x8x4xf32> to vector<8x4xf32>
    %cst_278 = arith.constant dense<0.000000e+00> : vector<8x64xf32>
    %419 = tpu.matmul %418, %409, %cst_278 {dimension_numbers = #tpu.dot_dimension_numbers<[1], [0], [0], [1], [0, 0, 1, 1], [], []>} : vector<8x4xf32>, vector<4x64xf32>, vector<8x64xf32> -> vector<8x64xf32>
    %c1_279 = arith.constant 1 : index
    %c0_280 = arith.constant 0 : index
    %c0_281 = arith.constant 0 : index
    %420 = vector.load %arg23[%c1_279, %c0_280, %c0_281] : memref<2x8x4xf32, #tpu.memory_space<vmem>>, vector<1x8x4xf32>
    %421 = vector.shape_cast %420 : vector<1x8x4xf32> to vector<8x4xf32>
    %cst_282 = arith.constant dense<0.000000e+00> : vector<8x64xf32>
    %422 = tpu.matmul %421, %416, %cst_282 {dimension_numbers = #tpu.dot_dimension_numbers<[1], [0], [0], [1], [0, 0, 1, 1], [], []>} : vector<8x4xf32>, vector<4x64xf32>, vector<8x64xf32> -> vector<8x64xf32>
    %423 = arith.addf %419, %422 : vector<8x64xf32>
    %cst_283 = arith.constant 0.000000e+00 : f32
    %424 = vector.broadcast %cst_283 : f32 to vector<8x64xf32>
    %425 = arith.maximumf %423, %424 : vector<8x64xf32>
    %c0_284 = arith.constant 0 : index
    %c0_285 = arith.constant 0 : index
    %426 = vector.load %arg25[%c0_284, %c0_285] : memref<1x32xf32, #tpu.memory_space<vmem>>, vector<1x32xf32>
    %c0_286 = arith.constant 0 : index
    %c0_287 = arith.constant 0 : index
    %c0_288 = arith.constant 0 : index
    %427 = vector.load %arg24[%c0_286, %c0_287, %c0_288] : memref<16x64x32xf32, #tpu.memory_space<vmem>>, vector<1x64x32xf32>
    %428 = vector.shape_cast %427 : vector<1x64x32xf32> to vector<64x32xf32>
    %cst_289 = arith.constant dense<0.000000e+00> : vector<8x32xf32>
    %429 = tpu.matmul %425, %428, %cst_289 {dimension_numbers = #tpu.dot_dimension_numbers<[1], [0], [0], [1], [0, 0, 1, 1], [], []>} : vector<8x64xf32>, vector<64x32xf32>, vector<8x32xf32> -> vector<8x32xf32>
    %c1_290 = arith.constant 1 : index
    %c0_291 = arith.constant 0 : index
    %c0_292 = arith.constant 0 : index
    %430 = vector.load %arg24[%c1_290, %c0_291, %c0_292] : memref<16x64x32xf32, #tpu.memory_space<vmem>>, vector<1x64x32xf32>
    %431 = vector.shape_cast %430 : vector<1x64x32xf32> to vector<64x32xf32>
    %cst_293 = arith.constant dense<0.000000e+00> : vector<8x32xf32>
    %432 = tpu.matmul %111, %431, %cst_293 {dimension_numbers = #tpu.dot_dimension_numbers<[1], [0], [0], [1], [0, 0, 1, 1], [], []>} : vector<8x64xf32>, vector<64x32xf32>, vector<8x32xf32> -> vector<8x32xf32>
    %433 = arith.addf %429, %432 : vector<8x32xf32>
    %434 = tpu.iota {dimensions = array<i32: 0>} : vector<8x8xi32>
    %435 = tpu.iota {dimensions = array<i32: 1>} : vector<8x8xi32>
    %c-1_i32_294 = arith.constant -1 : i32
    %436 = vector.broadcast %c-1_i32_294 : i32 to vector<8x8xi32>
    %437 = arith.addi %434, %436 : vector<8x8xi32>
    %438 = arith.cmpi eq, %435, %437 : vector<8x8xi32>
    %cst_295 = arith.constant 1.000000e+00 : f32
    %cst_296 = arith.constant 0.000000e+00 : f32
    %439 = vector.broadcast %cst_295 : f32 to vector<8x8xf32>
    %440 = vector.broadcast %cst_296 : f32 to vector<8x8xf32>
    %441 = arith.select %438, %439, %440 : vector<8x8xi1>, vector<8x8xf32>
    %cst_297 = arith.constant dense<0.000000e+00> : vector<8x32xf32>
    %442 = tpu.matmul %441, %433, %cst_297 {dimension_numbers = #tpu.dot_dimension_numbers<[1], [0], [0], [1], [0, 0, 1, 1], [], []>} : vector<8x8xf32>, vector<8x32xf32>, vector<8x32xf32> -> vector<8x32xf32>
    %c2_298 = arith.constant 2 : index
    %c0_299 = arith.constant 0 : index
    %c0_300 = arith.constant 0 : index
    %443 = vector.load %arg24[%c2_298, %c0_299, %c0_300] : memref<16x64x32xf32, #tpu.memory_space<vmem>>, vector<1x64x32xf32>
    %444 = vector.shape_cast %443 : vector<1x64x32xf32> to vector<64x32xf32>
    %cst_301 = arith.constant dense<0.000000e+00> : vector<8x32xf32>
    %445 = tpu.matmul %425, %444, %cst_301 {dimension_numbers = #tpu.dot_dimension_numbers<[1], [0], [0], [1], [0, 0, 1, 1], [], []>} : vector<8x64xf32>, vector<64x32xf32>, vector<8x32xf32> -> vector<8x32xf32>
    %c3_302 = arith.constant 3 : index
    %c0_303 = arith.constant 0 : index
    %c0_304 = arith.constant 0 : index
    %446 = vector.load %arg24[%c3_302, %c0_303, %c0_304] : memref<16x64x32xf32, #tpu.memory_space<vmem>>, vector<1x64x32xf32>
    %447 = vector.shape_cast %446 : vector<1x64x32xf32> to vector<64x32xf32>
    %cst_305 = arith.constant dense<0.000000e+00> : vector<8x32xf32>
    %448 = tpu.matmul %111, %447, %cst_305 {dimension_numbers = #tpu.dot_dimension_numbers<[1], [0], [0], [1], [0, 0, 1, 1], [], []>} : vector<8x64xf32>, vector<64x32xf32>, vector<8x32xf32> -> vector<8x32xf32>
    %449 = arith.addf %445, %448 : vector<8x32xf32>
    %450 = arith.addf %442, %449 : vector<8x32xf32>
    %451 = vector.broadcast %426 : vector<1x32xf32> to vector<8x32xf32>
    %452 = arith.addf %450, %451 : vector<8x32xf32>
    %c4_306 = arith.constant 4 : index
    %c0_307 = arith.constant 0 : index
    %c0_308 = arith.constant 0 : index
    %453 = vector.load %arg24[%c4_306, %c0_307, %c0_308] : memref<16x64x32xf32, #tpu.memory_space<vmem>>, vector<1x64x32xf32>
    %454 = vector.shape_cast %453 : vector<1x64x32xf32> to vector<64x32xf32>
    %cst_309 = arith.constant dense<0.000000e+00> : vector<8x32xf32>
    %455 = tpu.matmul %425, %454, %cst_309 {dimension_numbers = #tpu.dot_dimension_numbers<[1], [0], [0], [1], [0, 0, 1, 1], [], []>} : vector<8x64xf32>, vector<64x32xf32>, vector<8x32xf32> -> vector<8x32xf32>
    %c5_310 = arith.constant 5 : index
    %c0_311 = arith.constant 0 : index
    %c0_312 = arith.constant 0 : index
    %456 = vector.load %arg24[%c5_310, %c0_311, %c0_312] : memref<16x64x32xf32, #tpu.memory_space<vmem>>, vector<1x64x32xf32>
    %457 = vector.shape_cast %456 : vector<1x64x32xf32> to vector<64x32xf32>
    %cst_313 = arith.constant dense<0.000000e+00> : vector<8x32xf32>
    %458 = tpu.matmul %111, %457, %cst_313 {dimension_numbers = #tpu.dot_dimension_numbers<[1], [0], [0], [1], [0, 0, 1, 1], [], []>} : vector<8x64xf32>, vector<64x32xf32>, vector<8x32xf32> -> vector<8x32xf32>
    %459 = arith.addf %455, %458 : vector<8x32xf32>
    %460 = tpu.iota {dimensions = array<i32: 0>} : vector<8x8xi32>
    %461 = tpu.iota {dimensions = array<i32: 1>} : vector<8x8xi32>
    %c-1_i32_314 = arith.constant -1 : i32
    %462 = vector.broadcast %c-1_i32_314 : i32 to vector<8x8xi32>
    %463 = arith.addi %460, %462 : vector<8x8xi32>
    %464 = arith.cmpi eq, %461, %463 : vector<8x8xi32>
    %cst_315 = arith.constant 1.000000e+00 : f32
    %cst_316 = arith.constant 0.000000e+00 : f32
    %465 = vector.broadcast %cst_315 : f32 to vector<8x8xf32>
    %466 = vector.broadcast %cst_316 : f32 to vector<8x8xf32>
    %467 = arith.select %464, %465, %466 : vector<8x8xi1>, vector<8x8xf32>
    %cst_317 = arith.constant dense<0.000000e+00> : vector<8x32xf32>
    %468 = tpu.matmul %467, %459, %cst_317 {dimension_numbers = #tpu.dot_dimension_numbers<[1], [0], [0], [1], [0, 0, 1, 1], [], []>} : vector<8x8xf32>, vector<8x32xf32>, vector<8x32xf32> -> vector<8x32xf32>
    %c6_318 = arith.constant 6 : index
    %c0_319 = arith.constant 0 : index
    %c0_320 = arith.constant 0 : index
    %469 = vector.load %arg24[%c6_318, %c0_319, %c0_320] : memref<16x64x32xf32, #tpu.memory_space<vmem>>, vector<1x64x32xf32>
    %470 = vector.shape_cast %469 : vector<1x64x32xf32> to vector<64x32xf32>
    %cst_321 = arith.constant dense<0.000000e+00> : vector<8x32xf32>
    %471 = tpu.matmul %425, %470, %cst_321 {dimension_numbers = #tpu.dot_dimension_numbers<[1], [0], [0], [1], [0, 0, 1, 1], [], []>} : vector<8x64xf32>, vector<64x32xf32>, vector<8x32xf32> -> vector<8x32xf32>
    %c7_322 = arith.constant 7 : index
    %c0_323 = arith.constant 0 : index
    %c0_324 = arith.constant 0 : index
    %472 = vector.load %arg24[%c7_322, %c0_323, %c0_324] : memref<16x64x32xf32, #tpu.memory_space<vmem>>, vector<1x64x32xf32>
    %473 = vector.shape_cast %472 : vector<1x64x32xf32> to vector<64x32xf32>
    %cst_325 = arith.constant dense<0.000000e+00> : vector<8x32xf32>
    %474 = tpu.matmul %111, %473, %cst_325 {dimension_numbers = #tpu.dot_dimension_numbers<[1], [0], [0], [1], [0, 0, 1, 1], [], []>} : vector<8x64xf32>, vector<64x32xf32>, vector<8x32xf32> -> vector<8x32xf32>
    %475 = arith.addf %471, %474 : vector<8x32xf32>
    %476 = arith.addf %468, %475 : vector<8x32xf32>
    %477 = vector.broadcast %426 : vector<1x32xf32> to vector<8x32xf32>
    %478 = arith.addf %476, %477 : vector<8x32xf32>
    %c8_326 = arith.constant 8 : index
    %c0_327 = arith.constant 0 : index
    %c0_328 = arith.constant 0 : index
    %479 = vector.load %arg24[%c8_326, %c0_327, %c0_328] : memref<16x64x32xf32, #tpu.memory_space<vmem>>, vector<1x64x32xf32>
    %480 = vector.shape_cast %479 : vector<1x64x32xf32> to vector<64x32xf32>
    %cst_329 = arith.constant dense<0.000000e+00> : vector<8x32xf32>
    %481 = tpu.matmul %425, %480, %cst_329 {dimension_numbers = #tpu.dot_dimension_numbers<[1], [0], [0], [1], [0, 0, 1, 1], [], []>} : vector<8x64xf32>, vector<64x32xf32>, vector<8x32xf32> -> vector<8x32xf32>
    %c9_330 = arith.constant 9 : index
    %c0_331 = arith.constant 0 : index
    %c0_332 = arith.constant 0 : index
    %482 = vector.load %arg24[%c9_330, %c0_331, %c0_332] : memref<16x64x32xf32, #tpu.memory_space<vmem>>, vector<1x64x32xf32>
    %483 = vector.shape_cast %482 : vector<1x64x32xf32> to vector<64x32xf32>
    %cst_333 = arith.constant dense<0.000000e+00> : vector<8x32xf32>
    %484 = tpu.matmul %111, %483, %cst_333 {dimension_numbers = #tpu.dot_dimension_numbers<[1], [0], [0], [1], [0, 0, 1, 1], [], []>} : vector<8x64xf32>, vector<64x32xf32>, vector<8x32xf32> -> vector<8x32xf32>
    %485 = arith.addf %481, %484 : vector<8x32xf32>
    %c10_334 = arith.constant 10 : index
    %c0_335 = arith.constant 0 : index
    %c0_336 = arith.constant 0 : index
    %486 = vector.load %arg24[%c10_334, %c0_335, %c0_336] : memref<16x64x32xf32, #tpu.memory_space<vmem>>, vector<1x64x32xf32>
    %487 = vector.shape_cast %486 : vector<1x64x32xf32> to vector<64x32xf32>
    %cst_337 = arith.constant dense<0.000000e+00> : vector<8x32xf32>
    %488 = tpu.matmul %425, %487, %cst_337 {dimension_numbers = #tpu.dot_dimension_numbers<[1], [0], [0], [1], [0, 0, 1, 1], [], []>} : vector<8x64xf32>, vector<64x32xf32>, vector<8x32xf32> -> vector<8x32xf32>
    %c11_338 = arith.constant 11 : index
    %c0_339 = arith.constant 0 : index
    %c0_340 = arith.constant 0 : index
    %489 = vector.load %arg24[%c11_338, %c0_339, %c0_340] : memref<16x64x32xf32, #tpu.memory_space<vmem>>, vector<1x64x32xf32>
    %490 = vector.shape_cast %489 : vector<1x64x32xf32> to vector<64x32xf32>
    %cst_341 = arith.constant dense<0.000000e+00> : vector<8x32xf32>
    %491 = tpu.matmul %111, %490, %cst_341 {dimension_numbers = #tpu.dot_dimension_numbers<[1], [0], [0], [1], [0, 0, 1, 1], [], []>} : vector<8x64xf32>, vector<64x32xf32>, vector<8x32xf32> -> vector<8x32xf32>
    %492 = arith.addf %488, %491 : vector<8x32xf32>
    %493 = tpu.iota {dimensions = array<i32: 0>} : vector<8x8xi32>
    %494 = tpu.iota {dimensions = array<i32: 1>} : vector<8x8xi32>
    %c1_i32_342 = arith.constant 1 : i32
    %495 = vector.broadcast %c1_i32_342 : i32 to vector<8x8xi32>
    %496 = arith.addi %493, %495 : vector<8x8xi32>
    %497 = arith.cmpi eq, %494, %496 : vector<8x8xi32>
    %cst_343 = arith.constant 1.000000e+00 : f32
    %cst_344 = arith.constant 0.000000e+00 : f32
    %498 = vector.broadcast %cst_343 : f32 to vector<8x8xf32>
    %499 = vector.broadcast %cst_344 : f32 to vector<8x8xf32>
    %500 = arith.select %497, %498, %499 : vector<8x8xi1>, vector<8x8xf32>
    %cst_345 = arith.constant dense<0.000000e+00> : vector<8x32xf32>
    %501 = tpu.matmul %500, %492, %cst_345 {dimension_numbers = #tpu.dot_dimension_numbers<[1], [0], [0], [1], [0, 0, 1, 1], [], []>} : vector<8x8xf32>, vector<8x32xf32>, vector<8x32xf32> -> vector<8x32xf32>
    %502 = arith.addf %485, %501 : vector<8x32xf32>
    %503 = vector.broadcast %426 : vector<1x32xf32> to vector<8x32xf32>
    %504 = arith.addf %502, %503 : vector<8x32xf32>
    %c12_346 = arith.constant 12 : index
    %c0_347 = arith.constant 0 : index
    %c0_348 = arith.constant 0 : index
    %505 = vector.load %arg24[%c12_346, %c0_347, %c0_348] : memref<16x64x32xf32, #tpu.memory_space<vmem>>, vector<1x64x32xf32>
    %506 = vector.shape_cast %505 : vector<1x64x32xf32> to vector<64x32xf32>
    %cst_349 = arith.constant dense<0.000000e+00> : vector<8x32xf32>
    %507 = tpu.matmul %425, %506, %cst_349 {dimension_numbers = #tpu.dot_dimension_numbers<[1], [0], [0], [1], [0, 0, 1, 1], [], []>} : vector<8x64xf32>, vector<64x32xf32>, vector<8x32xf32> -> vector<8x32xf32>
    %c13_350 = arith.constant 13 : index
    %c0_351 = arith.constant 0 : index
    %c0_352 = arith.constant 0 : index
    %508 = vector.load %arg24[%c13_350, %c0_351, %c0_352] : memref<16x64x32xf32, #tpu.memory_space<vmem>>, vector<1x64x32xf32>
    %509 = vector.shape_cast %508 : vector<1x64x32xf32> to vector<64x32xf32>
    %cst_353 = arith.constant dense<0.000000e+00> : vector<8x32xf32>
    %510 = tpu.matmul %111, %509, %cst_353 {dimension_numbers = #tpu.dot_dimension_numbers<[1], [0], [0], [1], [0, 0, 1, 1], [], []>} : vector<8x64xf32>, vector<64x32xf32>, vector<8x32xf32> -> vector<8x32xf32>
    %511 = arith.addf %507, %510 : vector<8x32xf32>
    %c14_354 = arith.constant 14 : index
    %c0_355 = arith.constant 0 : index
    %c0_356 = arith.constant 0 : index
    %512 = vector.load %arg24[%c14_354, %c0_355, %c0_356] : memref<16x64x32xf32, #tpu.memory_space<vmem>>, vector<1x64x32xf32>
    %513 = vector.shape_cast %512 : vector<1x64x32xf32> to vector<64x32xf32>
    %cst_357 = arith.constant dense<0.000000e+00> : vector<8x32xf32>
    %514 = tpu.matmul %425, %513, %cst_357 {dimension_numbers = #tpu.dot_dimension_numbers<[1], [0], [0], [1], [0, 0, 1, 1], [], []>} : vector<8x64xf32>, vector<64x32xf32>, vector<8x32xf32> -> vector<8x32xf32>
    %c15_358 = arith.constant 15 : index
    %c0_359 = arith.constant 0 : index
    %c0_360 = arith.constant 0 : index
    %515 = vector.load %arg24[%c15_358, %c0_359, %c0_360] : memref<16x64x32xf32, #tpu.memory_space<vmem>>, vector<1x64x32xf32>
    %516 = vector.shape_cast %515 : vector<1x64x32xf32> to vector<64x32xf32>
    %cst_361 = arith.constant dense<0.000000e+00> : vector<8x32xf32>
    %517 = tpu.matmul %111, %516, %cst_361 {dimension_numbers = #tpu.dot_dimension_numbers<[1], [0], [0], [1], [0, 0, 1, 1], [], []>} : vector<8x64xf32>, vector<64x32xf32>, vector<8x32xf32> -> vector<8x32xf32>
    %518 = arith.addf %514, %517 : vector<8x32xf32>
    %519 = tpu.iota {dimensions = array<i32: 0>} : vector<8x8xi32>
    %520 = tpu.iota {dimensions = array<i32: 1>} : vector<8x8xi32>
    %c1_i32_362 = arith.constant 1 : i32
    %521 = vector.broadcast %c1_i32_362 : i32 to vector<8x8xi32>
    %522 = arith.addi %519, %521 : vector<8x8xi32>
    %523 = arith.cmpi eq, %520, %522 : vector<8x8xi32>
    %cst_363 = arith.constant 1.000000e+00 : f32
    %cst_364 = arith.constant 0.000000e+00 : f32
    %524 = vector.broadcast %cst_363 : f32 to vector<8x8xf32>
    %525 = vector.broadcast %cst_364 : f32 to vector<8x8xf32>
    %526 = arith.select %523, %524, %525 : vector<8x8xi1>, vector<8x8xf32>
    %cst_365 = arith.constant dense<0.000000e+00> : vector<8x32xf32>
    %527 = tpu.matmul %526, %518, %cst_365 {dimension_numbers = #tpu.dot_dimension_numbers<[1], [0], [0], [1], [0, 0, 1, 1], [], []>} : vector<8x8xf32>, vector<8x32xf32>, vector<8x32xf32> -> vector<8x32xf32>
    %528 = arith.addf %511, %527 : vector<8x32xf32>
    %529 = vector.broadcast %426 : vector<1x32xf32> to vector<8x32xf32>
    %530 = arith.addf %528, %529 : vector<8x32xf32>
    %c0_366 = arith.constant 0 : index
    %c0_367 = arith.constant 0 : index
    %c0_368 = arith.constant 0 : index
    %531 = vector.load %arg26[%c0_366, %c0_367, %c0_368] : memref<2x32x64xf32, #tpu.memory_space<vmem>>, vector<1x32x64xf32>
    %532 = vector.shape_cast %531 : vector<1x32x64xf32> to vector<32x64xf32>
    %cst_369 = arith.constant dense<0.000000e+00> : vector<8x64xf32>
    %533 = tpu.matmul %452, %532, %cst_369 {dimension_numbers = #tpu.dot_dimension_numbers<[1], [0], [0], [1], [0, 0, 1, 1], [], []>} : vector<8x32xf32>, vector<32x64xf32>, vector<8x64xf32> -> vector<8x64xf32>
    %c1_370 = arith.constant 1 : index
    %c0_371 = arith.constant 0 : index
    %c0_372 = arith.constant 0 : index
    %534 = vector.load %arg26[%c1_370, %c0_371, %c0_372] : memref<2x32x64xf32, #tpu.memory_space<vmem>>, vector<1x32x64xf32>
    %535 = vector.shape_cast %534 : vector<1x32x64xf32> to vector<32x64xf32>
    %cst_373 = arith.constant dense<0.000000e+00> : vector<8x64xf32>
    %536 = tpu.matmul %478, %535, %cst_373 {dimension_numbers = #tpu.dot_dimension_numbers<[1], [0], [0], [1], [0, 0, 1, 1], [], []>} : vector<8x32xf32>, vector<32x64xf32>, vector<8x64xf32> -> vector<8x64xf32>
    %537 = arith.addf %533, %536 : vector<8x64xf32>
    %c0_374 = arith.constant 0 : index
    %c0_375 = arith.constant 0 : index
    %c0_376 = arith.constant 0 : index
    %538 = vector.load %arg26[%c0_374, %c0_375, %c0_376] : memref<2x32x64xf32, #tpu.memory_space<vmem>>, vector<1x32x64xf32>
    %539 = vector.shape_cast %538 : vector<1x32x64xf32> to vector<32x64xf32>
    %cst_377 = arith.constant dense<0.000000e+00> : vector<8x64xf32>
    %540 = tpu.matmul %504, %539, %cst_377 {dimension_numbers = #tpu.dot_dimension_numbers<[1], [0], [0], [1], [0, 0, 1, 1], [], []>} : vector<8x32xf32>, vector<32x64xf32>, vector<8x64xf32> -> vector<8x64xf32>
    %c1_378 = arith.constant 1 : index
    %c0_379 = arith.constant 0 : index
    %c0_380 = arith.constant 0 : index
    %541 = vector.load %arg26[%c1_378, %c0_379, %c0_380] : memref<2x32x64xf32, #tpu.memory_space<vmem>>, vector<1x32x64xf32>
    %542 = vector.shape_cast %541 : vector<1x32x64xf32> to vector<32x64xf32>
    %cst_381 = arith.constant dense<0.000000e+00> : vector<8x64xf32>
    %543 = tpu.matmul %530, %542, %cst_381 {dimension_numbers = #tpu.dot_dimension_numbers<[1], [0], [0], [1], [0, 0, 1, 1], [], []>} : vector<8x32xf32>, vector<32x64xf32>, vector<8x64xf32> -> vector<8x64xf32>
    %544 = arith.addf %540, %543 : vector<8x64xf32>
    %c0_382 = arith.constant 0 : index
    %c0_383 = arith.constant 0 : index
    %c0_384 = arith.constant 0 : index
    %545 = vector.load %arg27[%c0_382, %c0_383, %c0_384] : memref<2x16x8xf32, #tpu.memory_space<vmem>>, vector<1x16x8xf32>
    %546 = vector.shape_cast %545 : vector<1x16x8xf32> to vector<16x8xf32>
    %cst_385 = arith.constant dense<0.000000e+00> : vector<16x64xf32>
    %547 = tpu.matmul %546, %537, %cst_385 {dimension_numbers = #tpu.dot_dimension_numbers<[1], [0], [0], [1], [0, 0, 1, 1], [], []>} : vector<16x8xf32>, vector<8x64xf32>, vector<16x64xf32> -> vector<16x64xf32>
    %c1_386 = arith.constant 1 : index
    %c0_387 = arith.constant 0 : index
    %c0_388 = arith.constant 0 : index
    %548 = vector.load %arg27[%c1_386, %c0_387, %c0_388] : memref<2x16x8xf32, #tpu.memory_space<vmem>>, vector<1x16x8xf32>
    %549 = vector.shape_cast %548 : vector<1x16x8xf32> to vector<16x8xf32>
    %cst_389 = arith.constant dense<0.000000e+00> : vector<16x64xf32>
    %550 = tpu.matmul %549, %544, %cst_389 {dimension_numbers = #tpu.dot_dimension_numbers<[1], [0], [0], [1], [0, 0, 1, 1], [], []>} : vector<16x8xf32>, vector<8x64xf32>, vector<16x64xf32> -> vector<16x64xf32>
    %551 = arith.addf %547, %550 : vector<16x64xf32>
    %c0_390 = arith.constant 0 : index
    %c0_391 = arith.constant 0 : index
    %c0_392 = arith.constant 0 : index
    %552 = vector.load %arg28[%c0_390, %c0_391, %c0_392] : memref<1x16x64xf32, #tpu.memory_space<vmem>>, vector<1x16x64xf32>
    %553 = vector.shape_cast %552 : vector<1x16x64xf32> to vector<16x64xf32>
    %554 = vector.shape_cast %551 : vector<16x64xf32> to vector<1x16x64xf32>
    tpu.vector_store %arg28[%c0_390, %c0_391, %c0_392], %554 {strides = array<i32>} : memref<1x16x64xf32, #tpu.memory_space<vmem>>, vector<1x16x64xf32>,
    return
  }
  func.func @transform_0(%arg0: i32) -> (i32, i32, i32) {
    %c0_i32 = arith.constant 0 : i32
    %c0_i32_0 = arith.constant 0 : i32
    %c0_i32_1 = arith.constant 0 : i32
    return %arg0, %c0_i32, %c0_i32_0 : i32, i32, i32
  }
  func.func @transform_1(%arg0: i32) -> (i32, i32, i32) {
    %c0_i32 = arith.constant 0 : i32
    %c0_i32_0 = arith.constant 0 : i32
    %c0_i32_1 = arith.constant 0 : i32
    %c0_i32_2 = arith.constant 0 : i32
    return %c0_i32, %c0_i32_0, %c0_i32_1 : i32, i32, i32
  }
  func.func @transform_2(%arg0: i32) -> (i32, i32) {
    %c0_i32 = arith.constant 0 : i32
    %c0_i32_0 = arith.constant 0 : i32
    %c0_i32_1 = arith.constant 0 : i32
    return %c0_i32, %c0_i32_0 : i32, i32
  }
  func.func @transform_3(%arg0: i32) -> (i32, i32, i32) {
    %c0_i32 = arith.constant 0 : i32
    %c0_i32_0 = arith.constant 0 : i32
    %c0_i32_1 = arith.constant 0 : i32
    %c0_i32_2 = arith.constant 0 : i32
    return %c0_i32, %c0_i32_0, %c0_i32_1 : i32, i32, i32
  }
  func.func @transform_4(%arg0: i32) -> (i32, i32) {
    %c0_i32 = arith.constant 0 : i32
    %c0_i32_0 = arith.constant 0 : i32
    %c0_i32_1 = arith.constant 0 : i32
    return %c0_i32, %c0_i32_0 : i32, i32
  }
  func.func @transform_5(%arg0: i32) -> (i32, i32) {
    %c0_i32 = arith.constant 0 : i32
    %c0_i32_0 = arith.constant 0 : i32
    %c0_i32_1 = arith.constant 0 : i32
    return %c0_i32, %c0_i32_0 : i32, i32
  }
  func.func @transform_6(%arg0: i32) -> (i32, i32) {
    %c0_i32 = arith.constant 0 : i32
    %c0_i32_0 = arith.constant 0 : i32
    %c0_i32_1 = arith.constant 0 : i32
    return %c0_i32, %c0_i32_0 : i32, i32
  }
  func.func @transform_7(%arg0: i32) -> (i32, i32) {
    %c0_i32 = arith.constant 0 : i32
    %c0_i32_0 = arith.constant 0 : i32
    %c0_i32_1 = arith.constant 0 : i32
    return %c0_i32, %c0_i32_0 : i32, i32
  }
  func.func @transform_8(%arg0: i32) -> (i32, i32) {
    %c0_i32 = arith.constant 0 : i32
    %c0_i32_0 = arith.constant 0 : i32
    %c0_i32_1 = arith.constant 0 : i32
    return %c0_i32, %c0_i32_0 : i32, i32
  }
  func.func @transform_9(%arg0: i32) -> (i32, i32, i32) {
    %c0_i32 = arith.constant 0 : i32
    %c0_i32_0 = arith.constant 0 : i32
    %c0_i32_1 = arith.constant 0 : i32
    %c0_i32_2 = arith.constant 0 : i32
    return %c0_i32, %c0_i32_0, %c0_i32_1 : i32, i32, i32
  }
  func.func @transform_10(%arg0: i32) -> (i32, i32) {
    %c0_i32 = arith.constant 0 : i32
    %c0_i32_0 = arith.constant 0 : i32
    %c0_i32_1 = arith.constant 0 : i32
    return %c0_i32, %c0_i32_0 : i32, i32
  }
  func.func @transform_11(%arg0: i32) -> (i32, i32, i32) {
    %c0_i32 = arith.constant 0 : i32
    %c0_i32_0 = arith.constant 0 : i32
    %c0_i32_1 = arith.constant 0 : i32
    %c0_i32_2 = arith.constant 0 : i32
    return %c0_i32, %c0_i32_0, %c0_i32_1 : i32, i32, i32
  }
  func.func @transform_12(%arg0: i32) -> (i32, i32) {
    %c0_i32 = arith.constant 0 : i32
    %c0_i32_0 = arith.constant 0 : i32
    %c0_i32_1 = arith.constant 0 : i32
    return %c0_i32, %c0_i32_0 : i32, i32
  }
  func.func @transform_13(%arg0: i32) -> (i32, i32) {
    %c0_i32 = arith.constant 0 : i32
    %c0_i32_0 = arith.constant 0 : i32
    %c0_i32_1 = arith.constant 0 : i32
    return %c0_i32, %c0_i32_0 : i32, i32
  }
  func.func @transform_14(%arg0: i32) -> (i32, i32) {
    %c0_i32 = arith.constant 0 : i32
    %c0_i32_0 = arith.constant 0 : i32
    %c0_i32_1 = arith.constant 0 : i32
    return %c0_i32, %c0_i32_0 : i32, i32
  }
  func.func @transform_15(%arg0: i32) -> (i32, i32) {
    %c0_i32 = arith.constant 0 : i32
    %c0_i32_0 = arith.constant 0 : i32
    %c0_i32_1 = arith.constant 0 : i32
    return %c0_i32, %c0_i32_0 : i32, i32
  }
  func.func @transform_16(%arg0: i32) -> (i32, i32) {
    %c0_i32 = arith.constant 0 : i32
    %c0_i32_0 = arith.constant 0 : i32
    %c0_i32_1 = arith.constant 0 : i32
    return %c0_i32, %c0_i32_0 : i32, i32
  }
  func.func @transform_17(%arg0: i32) -> (i32, i32, i32) {
    %c0_i32 = arith.constant 0 : i32
    %c0_i32_0 = arith.constant 0 : i32
    %c0_i32_1 = arith.constant 0 : i32
    %c0_i32_2 = arith.constant 0 : i32
    return %c0_i32, %c0_i32_0, %c0_i32_1 : i32, i32, i32
  }
  func.func @transform_18(%arg0: i32) -> (i32, i32, i32) {
    %c0_i32 = arith.constant 0 : i32
    %c0_i32_0 = arith.constant 0 : i32
    %c0_i32_1 = arith.constant 0 : i32
    %c0_i32_2 = arith.constant 0 : i32
    return %c0_i32, %c0_i32_0, %c0_i32_1 : i32, i32, i32
  }
  func.func @transform_19(%arg0: i32) -> (i32, i32, i32) {
    %c0_i32 = arith.constant 0 : i32
    %c0_i32_0 = arith.constant 0 : i32
    %c0_i32_1 = arith.constant 0 : i32
    %c0_i32_2 = arith.constant 0 : i32
    return %c0_i32, %c0_i32_0, %c0_i32_1 : i32, i32, i32
  }
  func.func @transform_20(%arg0: i32) -> (i32, i32) {
    %c0_i32 = arith.constant 0 : i32
    %c0_i32_0 = arith.constant 0 : i32
    %c0_i32_1 = arith.constant 0 : i32
    return %c0_i32, %c0_i32_0 : i32, i32
  }
  func.func @transform_21(%arg0: i32) -> (i32, i32, i32) {
    %c0_i32 = arith.constant 0 : i32
    %c0_i32_0 = arith.constant 0 : i32
    %c0_i32_1 = arith.constant 0 : i32
    %c0_i32_2 = arith.constant 0 : i32
    return %c0_i32, %c0_i32_0, %c0_i32_1 : i32, i32, i32
  }
  func.func @transform_22(%arg0: i32) -> (i32, i32, i32) {
    %c0_i32 = arith.constant 0 : i32
    %c0_i32_0 = arith.constant 0 : i32
    %c0_i32_1 = arith.constant 0 : i32
    %c0_i32_2 = arith.constant 0 : i32
    return %c0_i32, %c0_i32_0, %c0_i32_1 : i32, i32, i32
  }
  func.func @transform_23(%arg0: i32) -> (i32, i32, i32) {
    %c0_i32 = arith.constant 0 : i32
    %c0_i32_0 = arith.constant 0 : i32
    %c0_i32_1 = arith.constant 0 : i32
    %c0_i32_2 = arith.constant 0 : i32
    return %c0_i32, %c0_i32_0, %c0_i32_1 : i32, i32, i32
  }
  func.func @transform_24(%arg0: i32) -> (i32, i32) {
    %c0_i32 = arith.constant 0 : i32
    %c0_i32_0 = arith.constant 0 : i32
    %c0_i32_1 = arith.constant 0 : i32
    return %c0_i32, %c0_i32_0 : i32, i32
  }
  func.func @transform_25(%arg0: i32) -> (i32, i32, i32) {
    %c0_i32 = arith.constant 0 : i32
    %c0_i32_0 = arith.constant 0 : i32
    %c0_i32_1 = arith.constant 0 : i32
    %c0_i32_2 = arith.constant 0 : i32
    return %c0_i32, %c0_i32_0, %c0_i32_1 : i32, i32, i32
  }
  func.func @transform_26(%arg0: i32) -> (i32, i32, i32) {
    %c0_i32 = arith.constant 0 : i32
    %c0_i32_0 = arith.constant 0 : i32
    %c0_i32_1 = arith.constant 0 : i32
    %c0_i32_2 = arith.constant 0 : i32
    return %c0_i32, %c0_i32_0, %c0_i32_1 : i32, i32, i32
  }
  func.func @transform_27(%arg0: i32) -> (i32, i32, i32) {
    %c0_i32 = arith.constant 0 : i32
    %c0_i32_0 = arith.constant 0 : i32
    %c0_i32_1 = arith.constant 0 : i32
    return %arg0, %c0_i32, %c0_i32_0 : i32, i32, i32
  }
}

</mosaic_0001>

<llo_original>
// kernel: simple_unet_pallas.1
$region0: #{simple_unet_pallas.1}
  #allocation0 [shape = 'u32[]', space=smem, size = 0x4, offset = 0x4, fixed_abs, tag = 'smem constant byte address 0x4 - core index']
  #allocation1 [shape = 'u32[72,128]{1,0:T(1,128)}', space=vmem, size = 0x9000, scoped, tag = 'internal scratch']
  %s0 = inlined_call_operand.vmem [shape: f32[2,16,64], index: 0, kind: input, shape index: {}]
  %s1 = inlined_call_operand.vmem [shape: f32[3,64,64], index: 1, kind: input, shape index: {}]
  %s2 = inlined_call_operand.vmem [shape: f32[1,64], index: 2, kind: input, shape index: {}]
  %s3 = inlined_call_operand.vmem [shape: f32[3,64,128], index: 3, kind: input, shape index: {}]
  %s4 = inlined_call_operand.vmem [shape: f32[1,128], index: 4, kind: input, shape index: {}]
  %s5 = inlined_call_operand.vmem [shape: f32[64,64], index: 5, kind: input, shape index: {}]
  %s6 = inlined_call_operand.vmem [shape: f32[128,128], index: 6, kind: input, shape index: {}]
  %s7 = inlined_call_operand.vmem [shape: f32[8,16], index: 7, kind: input, shape index: {}]
  %s8 = inlined_call_operand.vmem [shape: f32[128,64], index: 8, kind: input, shape index: {}]
  %s9 = inlined_call_operand.vmem [shape: f32[3,64,64], index: 9, kind: input, shape index: {}]
  %s10 = inlined_call_operand.vmem [shape: f32[1,64], index: 10, kind: input, shape index: {}]
  %s11 = inlined_call_operand.vmem [shape: f32[3,64,128], index: 11, kind: input, shape index: {}]
  %s12 = inlined_call_operand.vmem [shape: f32[1,128], index: 12, kind: input, shape index: {}]
  %s13 = inlined_call_operand.vmem [shape: f32[64,64], index: 13, kind: input, shape index: {}]
  %s14 = inlined_call_operand.vmem [shape: f32[128,128], index: 14, kind: input, shape index: {}]
  %s15 = inlined_call_operand.vmem [shape: f32[4,8], index: 15, kind: input, shape index: {}]
  %s16 = inlined_call_operand.vmem [shape: f32[128,64], index: 16, kind: input, shape index: {}]
  %s17 = inlined_call_operand.vmem [shape: f32[6,64,32], index: 17, kind: input, shape index: {}]
  %s18 = inlined_call_operand.vmem [shape: f32[2,32,64], index: 18, kind: input, shape index: {}]
  %s19 = inlined_call_operand.vmem [shape: f32[16,64,32], index: 19, kind: input, shape index: {}]
  %s20 = inlined_call_operand.vmem [shape: f32[1,32], index: 20, kind: input, shape index: {}]
  %s21 = inlined_call_operand.vmem [shape: f32[2,32,64], index: 21, kind: input, shape index: {}]
  %s22 = inlined_call_operand.vmem [shape: f32[2,8,4], index: 22, kind: input, shape index: {}]
  %s23 = inlined_call_operand.vmem [shape: f32[16,64,32], index: 23, kind: input, shape index: {}]
  %s24 = inlined_call_operand.vmem [shape: f32[1,32], index: 24, kind: input, shape index: {}]
  %s25 = inlined_call_operand.vmem [shape: f32[2,32,64], index: 25, kind: input, shape index: {}]
  %s26 = inlined_call_operand.vmem [shape: f32[2,16,8], index: 26, kind: input, shape index: {}]
  %s27 = inlined_call_operand.vmem [shape: f32[2,16,64], index: 27, kind: output, shape index: {}]
  %s28 = sld [smem:[#allocation0]]
  $region141: #{simple_unet_pallas.1} parent=0
    _
  %s30 = ssub.s32 1, %s28
  %s31 = scalar_select 0, %s30, %s28
  loop: start=0, step=1, limit=4
  $region2: #{simple_unet_pallas.1} parent=0 // loop_pre_header
    _
  $region3: #{simple_unet_pallas.1} parent=0 // loop_header
    %s33 = sphi 0, %s37
    %p34 = scmp.ge.s32.totalorder %s33, 4
    %s43 = sphi 0, %s45
    %s46 = sphi 0, %s43
    %s47 = sphi 0, %s46
    %s63 = sphi 0, %s47
    %s67 = sphi 0, %s67
    %s69 = sphi 0, %s67
    %s70 = sphi 0, %s69
    %s84 = sphi 0, %s70
    %s88 = sphi 0, %s88
    %s90 = sphi 0, %s88
    %s91 = sphi 0, %s90
    %s105 = sphi 0, %s91
    %s109 = sphi 0, %s109
    %s111 = sphi 0, %s109
    %s112 = sphi 0, %s111
    %s126 = sphi 0, %s112
    %s130 = sphi 0, %s130
    %s132 = sphi 0, %s130
    %s133 = sphi 0, %s132
    %s147 = sphi 0, %s133
    %s151 = sphi 0, %s151
    %s153 = sphi 0, %s151
    %s154 = sphi 0, %s153
    %s168 = sphi 0, %s154
    %s172 = sphi 0, %s172
    %s174 = sphi 0, %s172
    %s175 = sphi 0, %s174
    %s189 = sphi 0, %s175
    %s193 = sphi 0, %s193
    %s195 = sphi 0, %s193
    %s196 = sphi 0, %s195
    %s210 = sphi 0, %s196
    %s214 = sphi 0, %s214
    %s216 = sphi 0, %s214
    %s217 = sphi 0, %s216
    %s231 = sphi 0, %s217
    %s235 = sphi 0, %s235
    %s237 = sphi 0, %s235
    %s238 = sphi 0, %s237
    %s252 = sphi 0, %s238
    %s256 = sphi 0, %s256
    %s258 = sphi 0, %s256
    %s259 = sphi 0, %s258
    %s273 = sphi 0, %s259
    %s277 = sphi 0, %s277
    %s279 = sphi 0, %s277
    %s280 = sphi 0, %s279
    %s294 = sphi 0, %s280
    %s298 = sphi 0, %s298
    %s300 = sphi 0, %s298
    %s301 = sphi 0, %s300
    %s315 = sphi 0, %s301
    %s319 = sphi 0, %s319
    %s321 = sphi 0, %s319
    %s322 = sphi 0, %s321
    %s336 = sphi 0, %s322
    %s340 = sphi 0, %s340
    %s342 = sphi 0, %s340
    %s343 = sphi 0, %s342
    %s357 = sphi 0, %s343
    %s361 = sphi 0, %s361
    %s363 = sphi 0, %s361
    %s364 = sphi 0, %s363
    %s378 = sphi 0, %s364
    %s382 = sphi 0, %s382
    %s384 = sphi 0, %s382
    %s385 = sphi 0, %s384
    %s399 = sphi 0, %s385
    %s403 = sphi 0, %s403
    %s405 = sphi 0, %s403
    %s406 = sphi 0, %s405
    %s420 = sphi 0, %s406
    %s424 = sphi 0, %s424
    %s426 = sphi 0, %s424
    %s427 = sphi 0, %s426
    %s441 = sphi 0, %s427
    %s445 = sphi 0, %s445
    %s447 = sphi 0, %s445
    %s448 = sphi 0, %s447
    %s462 = sphi 0, %s448
    %s466 = sphi 0, %s466
    %s468 = sphi 0, %s466
    %s469 = sphi 0, %s468
    %s483 = sphi 0, %s469
    %s487 = sphi 0, %s487
    %s489 = sphi 0, %s487
    %s490 = sphi 0, %s489
    %s504 = sphi 0, %s490
    %s508 = sphi 0, %s508
    %s510 = sphi 0, %s508
    %s511 = sphi 0, %s510
    %s525 = sphi 0, %s511
    %s529 = sphi 0, %s529
    %s531 = sphi 0, %s529
    %s532 = sphi 0, %s531
    %s546 = sphi 0, %s532
    %s550 = sphi 0, %s550
    %s552 = sphi 0, %s550
    %s553 = sphi 0, %s552
    %s567 = sphi 0, %s553
    %s571 = sphi 0, %s571
    %s573 = sphi 0, %s571
    %s574 = sphi 0, %s573
    %s588 = sphi 0, %s574
    %s592 = sphi 0, %s592
    %s594 = sphi 0, %s592
    %s595 = sphi 0, %s594
    %s609 = sphi 0, %s595
    %s615 = sphi 0, %s617
    %s618 = sphi 0, %s615
    %s619 = sphi 0, %s618
    %s635 = sphi 0, %s619
  $region4: #{simple_unet_pallas.1} parent=0 // loop_header_branch
    %36 = sbr.rel (%p34) target = $region8
  $region5: #{simple_unet_pallas.1} parent=0 // loop_body
    %s38 = ssub.s32 %s33, 1
    %s39 = ssub.s32 %s33, 2
    %s40 = sadd.s32 %s33, 1
    %s41 = ssub.s32 %s33, %s40
    %p42 = scmp.eq.s32.totalorder %s41, 0
    %s44 = sadd.s32 %s43, 1
    %s45 = scalar_select %p42, %s43, %s44
    %p48 = pneg %p42
    %p49 = scmp.eq.s32.totalorder %s33, 1
    %p50 = por %p48, %p49
    %p51 = scmp.ne.s32.totalorder %s43, %s46
    %p52 = scmp.eq.s32.totalorder %s33, 0
    %p53 = por %p51, %p52
    %p54 = scmp.ne.s32.totalorder %s43, %s46
    %p55 = scmp.eq.s32.totalorder %s38, 1
    %p56 = por %p54, %p55
    %p57 = scmp.ne.s32.totalorder %s46, %s47
    %p58 = scmp.eq.s32.totalorder %s38, 0
    %p59 = por %p57, %p58
    %p60 = scmp.ne.s32.totalorder %s46, %s47
    %p61 = scmp.eq.s32.totalorder %s39, 1
    %p62 = por %p60, %p61
    %p64 = scmp.ne.s32.totalorder %s47, %s63
    %p65 = scmp.eq.s32.totalorder %s39, 0
    %p66 = por %p64, %p65
    %s68 = sadd.s32 %s67, 1
    %p71 = scmp.eq.s32.totalorder %s33, 1
    %p72 = scmp.ne.s32.totalorder %s67, %s69
    %p73 = scmp.eq.s32.totalorder %s33, 0
    %p74 = por %p72, %p73
    %p75 = scmp.ne.s32.totalorder %s67, %s69
    %p76 = scmp.eq.s32.totalorder %s38, 1
    %p77 = por %p75, %p76
    %p78 = scmp.ne.s32.totalorder %s69, %s70
    %p79 = scmp.eq.s32.totalorder %s38, 0
    %p80 = por %p78, %p79
    %p81 = scmp.ne.s32.totalorder %s69, %s70
    %p82 = scmp.eq.s32.totalorder %s39, 1
    %p83 = por %p81, %p82
    %p85 = scmp.ne.s32.totalorder %s70, %s84
    %p86 = scmp.eq.s32.totalorder %s39, 0
    %p87 = por %p85, %p86
    %s89 = sadd.s32 %s88, 1
    %p92 = scmp.eq.s32.totalorder %s33, 1
    %p93 = scmp.ne.s32.totalorder %s88, %s90
    %p94 = scmp.eq.s32.totalorder %s33, 0
    %p95 = por %p93, %p94
    %p96 = scmp.ne.s32.totalorder %s88, %s90
    %p97 = scmp.eq.s32.totalorder %s38, 1
    %p98 = por %p96, %p97
    %p99 = scmp.ne.s32.totalorder %s90, %s91
    %p100 = scmp.eq.s32.totalorder %s38, 0
    %p101 = por %p99, %p100
    %p102 = scmp.ne.s32.totalorder %s90, %s91
    %p103 = scmp.eq.s32.totalorder %s39, 1
    %p104 = por %p102, %p103
    %p106 = scmp.ne.s32.totalorder %s91, %s105
    %p107 = scmp.eq.s32.totalorder %s39, 0
    %p108 = por %p106, %p107
    %s110 = sadd.s32 %s109, 1
    %p113 = scmp.eq.s32.totalorder %s33, 1
    %p114 = scmp.ne.s32.totalorder %s109, %s111
    %p115 = scmp.eq.s32.totalorder %s33, 0
    %p116 = por %p114, %p115
    %p117 = scmp.ne.s32.totalorder %s109, %s111
    %p118 = scmp.eq.s32.totalorder %s38, 1
    %p119 = por %p117, %p118
    %p120 = scmp.ne.s32.totalorder %s111, %s112
    %p121 = scmp.eq.s32.totalorder %s38, 0
    %p122 = por %p120, %p121
    %p123 = scmp.ne.s32.totalorder %s111, %s112
    %p124 = scmp.eq.s32.totalorder %s39, 1
    %p125 = por %p123, %p124
    %p127 = scmp.ne.s32.totalorder %s112, %s126
    %p128 = scmp.eq.s32.totalorder %s39, 0
    %p129 = por %p127, %p128
    %s131 = sadd.s32 %s130, 1
    %p134 = scmp.eq.s32.totalorder %s33, 1
    %p135 = scmp.ne.s32.totalorder %s130, %s132
    %p136 = scmp.eq.s32.totalorder %s33, 0
    %p137 = por %p135, %p136
    %p138 = scmp.ne.s32.totalorder %s130, %s132
    %p139 = scmp.eq.s32.totalorder %s38, 1
    %p140 = por %p138, %p139
    %p141 = scmp.ne.s32.totalorder %s132, %s133
    %p142 = scmp.eq.s32.totalorder %s38, 0
    %p143 = por %p141, %p142
    %p144 = scmp.ne.s32.totalorder %s132, %s133
    %p145 = scmp.eq.s32.totalorder %s39, 1
    %p146 = por %p144, %p145
    %p148 = scmp.ne.s32.totalorder %s133, %s147
    %p149 = scmp.eq.s32.totalorder %s39, 0
    %p150 = por %p148, %p149
    %s152 = sadd.s32 %s151, 1
    %p155 = scmp.eq.s32.totalorder %s33, 1
    %p156 = scmp.ne.s32.totalorder %s151, %s153
    %p157 = scmp.eq.s32.totalorder %s33, 0
    %p158 = por %p156, %p157
    %p159 = scmp.ne.s32.totalorder %s151, %s153
    %p160 = scmp.eq.s32.totalorder %s38, 1
    %p161 = por %p159, %p160
    %p162 = scmp.ne.s32.totalorder %s153, %s154
    %p163 = scmp.eq.s32.totalorder %s38, 0
    %p164 = por %p162, %p163
    %p165 = scmp.ne.s32.totalorder %s153, %s154
    %p166 = scmp.eq.s32.totalorder %s39, 1
    %p167 = por %p165, %p166
    %p169 = scmp.ne.s32.totalorder %s154, %s168
    %p170 = scmp.eq.s32.totalorder %s39, 0
    %p171 = por %p169, %p170
    %s173 = sadd.s32 %s172, 1
    %p176 = scmp.eq.s32.totalorder %s33, 1
    %p177 = scmp.ne.s32.totalorder %s172, %s174
    %p178 = scmp.eq.s32.totalorder %s33, 0
    %p179 = por %p177, %p178
    %p180 = scmp.ne.s32.totalorder %s172, %s174
    %p181 = scmp.eq.s32.totalorder %s38, 1
    %p182 = por %p180, %p181
    %p183 = scmp.ne.s32.totalorder %s174, %s175
    %p184 = scmp.eq.s32.totalorder %s38, 0
    %p185 = por %p183, %p184
    %p186 = scmp.ne.s32.totalorder %s174, %s175
    %p187 = scmp.eq.s32.totalorder %s39, 1
    %p188 = por %p186, %p187
    %p190 = scmp.ne.s32.totalorder %s175, %s189
    %p191 = scmp.eq.s32.totalorder %s39, 0
    %p192 = por %p190, %p191
    %s194 = sadd.s32 %s193, 1
    %p197 = scmp.eq.s32.totalorder %s33, 1
    %p198 = scmp.ne.s32.totalorder %s193, %s195
    %p199 = scmp.eq.s32.totalorder %s33, 0
    %p200 = por %p198, %p199
    %p201 = scmp.ne.s32.totalorder %s193, %s195
    %p202 = scmp.eq.s32.totalorder %s38, 1
    %p203 = por %p201, %p202
    %p204 = scmp.ne.s32.totalorder %s195, %s196
    %p205 = scmp.eq.s32.totalorder %s38, 0
    %p206 = por %p204, %p205
    %p207 = scmp.ne.s32.totalorder %s195, %s196
    %p208 = scmp.eq.s32.totalorder %s39, 1
    %p209 = por %p207, %p208
    %p211 = scmp.ne.s32.totalorder %s196, %s210
    %p212 = scmp.eq.s32.totalorder %s39, 0
    %p213 = por %p211, %p212
    %s215 = sadd.s32 %s214, 1
    %p218 = scmp.eq.s32.totalorder %s33, 1
    %p219 = scmp.ne.s32.totalorder %s214, %s216
    %p220 = scmp.eq.s32.totalorder %s33, 0
    %p221 = por %p219, %p220
    %p222 = scmp.ne.s32.totalorder %s214, %s216
    %p223 = scmp.eq.s32.totalorder %s38, 1
    %p224 = por %p222, %p223
    %p225 = scmp.ne.s32.totalorder %s216, %s217
    %p226 = scmp.eq.s32.totalorder %s38, 0
    %p227 = por %p225, %p226
    %p228 = scmp.ne.s32.totalorder %s216, %s217
    %p229 = scmp.eq.s32.totalorder %s39, 1
    %p230 = por %p228, %p229
    %p232 = scmp.ne.s32.totalorder %s217, %s231
    %p233 = scmp.eq.s32.totalorder %s39, 0
    %p234 = por %p232, %p233
    %s236 = sadd.s32 %s235, 1
    %p239 = scmp.eq.s32.totalorder %s33, 1
    %p240 = scmp.ne.s32.totalorder %s235, %s237
    %p241 = scmp.eq.s32.totalorder %s33, 0
    %p242 = por %p240, %p241
    %p243 = scmp.ne.s32.totalorder %s235, %s237
    %p244 = scmp.eq.s32.totalorder %s38, 1
    %p245 = por %p243, %p244
    %p246 = scmp.ne.s32.totalorder %s237, %s238
    %p247 = scmp.eq.s32.totalorder %s38, 0
    %p248 = por %p246, %p247
    %p249 = scmp.ne.s32.totalorder %s237, %s238
    %p250 = scmp.eq.s32.totalorder %s39, 1
    %p251 = por %p249, %p250
    %p253 = scmp.ne.s32.totalorder %s238, %s252
    %p254 = scmp.eq.s32.totalorder %s39, 0
    %p255 = por %p253, %p254
    %s257 = sadd.s32 %s256, 1
    %p260 = scmp.eq.s32.totalorder %s33, 1
    %p261 = scmp.ne.s32.totalorder %s256, %s258
    %p262 = scmp.eq.s32.totalorder %s33, 0
    %p263 = por %p261, %p262
    %p264 = scmp.ne.s32.totalorder %s256, %s258
    %p265 = scmp.eq.s32.totalorder %s38, 1
    %p266 = por %p264, %p265
    %p267 = scmp.ne.s32.totalorder %s258, %s259
    %p268 = scmp.eq.s32.totalorder %s38, 0
    %p269 = por %p267, %p268
    %p270 = scmp.ne.s32.totalorder %s258, %s259
    %p271 = scmp.eq.s32.totalorder %s39, 1
    %p272 = por %p270, %p271
    %p274 = scmp.ne.s32.totalorder %s259, %s273
    %p275 = scmp.eq.s32.totalorder %s39, 0
    %p276 = por %p274, %p275
    %s278 = sadd.s32 %s277, 1
    %p281 = scmp.eq.s32.totalorder %s33, 1
    %p282 = scmp.ne.s32.totalorder %s277, %s279
    %p283 = scmp.eq.s32.totalorder %s33, 0
    %p284 = por %p282, %p283
    %p285 = scmp.ne.s32.totalorder %s277, %s279
    %p286 = scmp.eq.s32.totalorder %s38, 1
    %p287 = por %p285, %p286
    %p288 = scmp.ne.s32.totalorder %s279, %s280
    %p289 = scmp.eq.s32.totalorder %s38, 0
    %p290 = por %p288, %p289
    %p291 = scmp.ne.s32.totalorder %s279, %s280
    %p292 = scmp.eq.s32.totalorder %s39, 1
    %p293 = por %p291, %p292
    %p295 = scmp.ne.s32.totalorder %s280, %s294
    %p296 = scmp.eq.s32.totalorder %s39, 0
    %p297 = por %p295, %p296
    %s299 = sadd.s32 %s298, 1
    %p302 = scmp.eq.s32.totalorder %s33, 1
    %p303 = scmp.ne.s32.totalorder %s298, %s300
    %p304 = scmp.eq.s32.totalorder %s33, 0
    %p305 = por %p303, %p304
    %p306 = scmp.ne.s32.totalorder %s298, %s300
    %p307 = scmp.eq.s32.totalorder %s38, 1
    %p308 = por %p306, %p307
    %p309 = scmp.ne.s32.totalorder %s300, %s301
    %p310 = scmp.eq.s32.totalorder %s38, 0
    %p311 = por %p309, %p310
    %p312 = scmp.ne.s32.totalorder %s300, %s301
    %p313 = scmp.eq.s32.totalorder %s39, 1
    %p314 = por %p312, %p313
    %p316 = scmp.ne.s32.totalorder %s301, %s315
    %p317 = scmp.eq.s32.totalorder %s39, 0
    %p318 = por %p316, %p317
    %s320 = sadd.s32 %s319, 1
    %p323 = scmp.eq.s32.totalorder %s33, 1
    %p324 = scmp.ne.s32.totalorder %s319, %s321
    %p325 = scmp.eq.s32.totalorder %s33, 0
    %p326 = por %p324, %p325
    %p327 = scmp.ne.s32.totalorder %s319, %s321
    %p328 = scmp.eq.s32.totalorder %s38, 1
    %p329 = por %p327, %p328
    %p330 = scmp.ne.s32.totalorder %s321, %s322
    %p331 = scmp.eq.s32.totalorder %s38, 0
    %p332 = por %p330, %p331
    %p333 = scmp.ne.s32.totalorder %s321, %s322
    %p334 = scmp.eq.s32.totalorder %s39, 1
    %p335 = por %p333, %p334
    %p337 = scmp.ne.s32.totalorder %s322, %s336
    %p338 = scmp.eq.s32.totalorder %s39, 0
    %p339 = por %p337, %p338
    %s341 = sadd.s32 %s340, 1
    %p344 = scmp.eq.s32.totalorder %s33, 1
    %p345 = scmp.ne.s32.totalorder %s340, %s342
    %p346 = scmp.eq.s32.totalorder %s33, 0
    %p347 = por %p345, %p346
    %p348 = scmp.ne.s32.totalorder %s340, %s342
    %p349 = scmp.eq.s32.totalorder %s38, 1
    %p350 = por %p348, %p349
    %p351 = scmp.ne.s32.totalorder %s342, %s343
    %p352 = scmp.eq.s32.totalorder %s38, 0
    %p353 = por %p351, %p352
    %p354 = scmp.ne.s32.totalorder %s342, %s343
    %p355 = scmp.eq.s32.totalorder %s39, 1
    %p356 = por %p354, %p355
    %p358 = scmp.ne.s32.totalorder %s343, %s357
    %p359 = scmp.eq.s32.totalorder %s39, 0
    %p360 = por %p358, %p359
    %s362 = sadd.s32 %s361, 1
    %p365 = scmp.eq.s32.totalorder %s33, 1
    %p366 = scmp.ne.s32.totalorder %s361, %s363
    %p367 = scmp.eq.s32.totalorder %s33, 0
    %p368 = por %p366, %p367
    %p369 = scmp.ne.s32.totalorder %s361, %s363
    %p370 = scmp.eq.s32.totalorder %s38, 1
    %p371 = por %p369, %p370
    %p372 = scmp.ne.s32.totalorder %s363, %s364
    %p373 = scmp.eq.s32.totalorder %s38, 0
    %p374 = por %p372, %p373
    %p375 = scmp.ne.s32.totalorder %s363, %s364
    %p376 = scmp.eq.s32.totalorder %s39, 1
    %p377 = por %p375, %p376
    %p379 = scmp.ne.s32.totalorder %s364, %s378
    %p380 = scmp.eq.s32.totalorder %s39, 0
    %p381 = por %p379, %p380
    %s383 = sadd.s32 %s382, 1
    %p386 = scmp.eq.s32.totalorder %s33, 1
    %p387 = scmp.ne.s32.totalorder %s382, %s384
    %p388 = scmp.eq.s32.totalorder %s33, 0
    %p389 = por %p387, %p388
    %p390 = scmp.ne.s32.totalorder %s382, %s384
    %p391 = scmp.eq.s32.totalorder %s38, 1
    %p392 = por %p390, %p391
    %p393 = scmp.ne.s32.totalorder %s384, %s385
    %p394 = scmp.eq.s32.totalorder %s38, 0
    %p395 = por %p393, %p394
    %p396 = scmp.ne.s32.totalorder %s384, %s385
    %p397 = scmp.eq.s32.totalorder %s39, 1
    %p398 = por %p396, %p397
    %p400 = scmp.ne.s32.totalorder %s385, %s399
    %p401 = scmp.eq.s32.totalorder %s39, 0
    %p402 = por %p400, %p401
    %s404 = sadd.s32 %s403, 1
    %p407 = scmp.eq.s32.totalorder %s33, 1
    %p408 = scmp.ne.s32.totalorder %s403, %s405
    %p409 = scmp.eq.s32.totalorder %s33, 0
    %p410 = por %p408, %p409
    %p411 = scmp.ne.s32.totalorder %s403, %s405
    %p412 = scmp.eq.s32.totalorder %s38, 1
    %p413 = por %p411, %p412
    %p414 = scmp.ne.s32.totalorder %s405, %s406
    %p415 = scmp.eq.s32.totalorder %s38, 0
    %p416 = por %p414, %p415
    %p417 = scmp.ne.s32.totalorder %s405, %s406
    %p418 = scmp.eq.s32.totalorder %s39, 1
    %p419 = por %p417, %p418
    %p421 = scmp.ne.s32.totalorder %s406, %s420
    %p422 = scmp.eq.s32.totalorder %s39, 0
    %p423 = por %p421, %p422
    %s425 = sadd.s32 %s424, 1
    %p428 = scmp.eq.s32.totalorder %s33, 1
    %p429 = scmp.ne.s32.totalorder %s424, %s426
    %p430 = scmp.eq.s32.totalorder %s33, 0
    %p431 = por %p429, %p430
    %p432 = scmp.ne.s32.totalorder %s424, %s426
    %p433 = scmp.eq.s32.totalorder %s38, 1
    %p434 = por %p432, %p433
    %p435 = scmp.ne.s32.totalorder %s426, %s427
    %p436 = scmp.eq.s32.totalorder %s38, 0
    %p437 = por %p435, %p436
    %p438 = scmp.ne.s32.totalorder %s426, %s427
    %p439 = scmp.eq.s32.totalorder %s39, 1
    %p440 = por %p438, %p439
    %p442 = scmp.ne.s32.totalorder %s427, %s441
    %p443 = scmp.eq.s32.totalorder %s39, 0
    %p444 = por %p442, %p443
    %s446 = sadd.s32 %s445, 1
    %p449 = scmp.eq.s32.totalorder %s33, 1
    %p450 = scmp.ne.s32.totalorder %s445, %s447
    %p451 = scmp.eq.s32.totalorder %s33, 0
    %p452 = por %p450, %p451
    %p453 = scmp.ne.s32.totalorder %s445, %s447
    %p454 = scmp.eq.s32.totalorder %s38, 1
    %p455 = por %p453, %p454
    %p456 = scmp.ne.s32.totalorder %s447, %s448
    %p457 = scmp.eq.s32.totalorder %s38, 0
    %p458 = por %p456, %p457
    %p459 = scmp.ne.s32.totalorder %s447, %s448
    %p460 = scmp.eq.s32.totalorder %s39, 1
    %p461 = por %p459, %p460
    %p463 = scmp.ne.s32.totalorder %s448, %s462
    %p464 = scmp.eq.s32.totalorder %s39, 0
    %p465 = por %p463, %p464
    %s467 = sadd.s32 %s466, 1
    %p470 = scmp.eq.s32.totalorder %s33, 1
    %p471 = scmp.ne.s32.totalorder %s466, %s468
    %p472 = scmp.eq.s32.totalorder %s33, 0
    %p473 = por %p471, %p472
    %p474 = scmp.ne.s32.totalorder %s466, %s468
    %p475 = scmp.eq.s32.totalorder %s38, 1
    %p476 = por %p474, %p475
    %p477 = scmp.ne.s32.totalorder %s468, %s469
    %p478 = scmp.eq.s32.totalorder %s38, 0
    %p479 = por %p477, %p478
    %p480 = scmp.ne.s32.totalorder %s468, %s469
    %p481 = scmp.eq.s32.totalorder %s39, 1
    %p482 = por %p480, %p481
    %p484 = scmp.ne.s32.totalorder %s469, %s483
    %p485 = scmp.eq.s32.totalorder %s39, 0
    %p486 = por %p484, %p485
    %s488 = sadd.s32 %s487, 1
    %p491 = scmp.eq.s32.totalorder %s33, 1
    %p492 = scmp.ne.s32.totalorder %s487, %s489
    %p493 = scmp.eq.s32.totalorder %s33, 0
    %p494 = por %p492, %p493
    %p495 = scmp.ne.s32.totalorder %s487, %s489
    %p496 = scmp.eq.s32.totalorder %s38, 1
    %p497 = por %p495, %p496
    %p498 = scmp.ne.s32.totalorder %s489, %s490
    %p499 = scmp.eq.s32.totalorder %s38, 0
    %p500 = por %p498, %p499
    %p501 = scmp.ne.s32.totalorder %s489, %s490
    %p502 = scmp.eq.s32.totalorder %s39, 1
    %p503 = por %p501, %p502
    %p505 = scmp.ne.s32.totalorder %s490, %s504
    %p506 = scmp.eq.s32.totalorder %s39, 0
    %p507 = por %p505, %p506
    %s509 = sadd.s32 %s508, 1
    %p512 = scmp.eq.s32.totalorder %s33, 1
    %p513 = scmp.ne.s32.totalorder %s508, %s510
    %p514 = scmp.eq.s32.totalorder %s33, 0
    %p515 = por %p513, %p514
    %p516 = scmp.ne.s32.totalorder %s508, %s510
    %p517 = scmp.eq.s32.totalorder %s38, 1
    %p518 = por %p516, %p517
    %p519 = scmp.ne.s32.totalorder %s510, %s511
    %p520 = scmp.eq.s32.totalorder %s38, 0
    %p521 = por %p519, %p520
    %p522 = scmp.ne.s32.totalorder %s510, %s511
    %p523 = scmp.eq.s32.totalorder %s39, 1
    %p524 = por %p522, %p523
    %p526 = scmp.ne.s32.totalorder %s511, %s525
    %p527 = scmp.eq.s32.totalorder %s39, 0
    %p528 = por %p526, %p527
    %s530 = sadd.s32 %s529, 1
    %p533 = scmp.eq.s32.totalorder %s33, 1
    %p534 = scmp.ne.s32.totalorder %s529, %s531
    %p535 = scmp.eq.s32.totalorder %s33, 0
    %p536 = por %p534, %p535
    %p537 = scmp.ne.s32.totalorder %s529, %s531
    %p538 = scmp.eq.s32.totalorder %s38, 1
    %p539 = por %p537, %p538
    %p540 = scmp.ne.s32.totalorder %s531, %s532
    %p541 = scmp.eq.s32.totalorder %s38, 0
    %p542 = por %p540, %p541
    %p543 = scmp.ne.s32.totalorder %s531, %s532
    %p544 = scmp.eq.s32.totalorder %s39, 1
    %p545 = por %p543, %p544
    %p547 = scmp.ne.s32.totalorder %s532, %s546
    %p548 = scmp.eq.s32.totalorder %s39, 0
    %p549 = por %p547, %p548
    %s551 = sadd.s32 %s550, 1
    %p554 = scmp.eq.s32.totalorder %s33, 1
    %p555 = scmp.ne.s32.totalorder %s550, %s552
    %p556 = scmp.eq.s32.totalorder %s33, 0
    %p557 = por %p555, %p556
    %p558 = scmp.ne.s32.totalorder %s550, %s552
    %p559 = scmp.eq.s32.totalorder %s38, 1
    %p560 = por %p558, %p559
    %p561 = scmp.ne.s32.totalorder %s552, %s553
    %p562 = scmp.eq.s32.totalorder %s38, 0
    %p563 = por %p561, %p562
    %p564 = scmp.ne.s32.totalorder %s552, %s553
    %p565 = scmp.eq.s32.totalorder %s39, 1
    %p566 = por %p564, %p565
    %p568 = scmp.ne.s32.totalorder %s553, %s567
    %p569 = scmp.eq.s32.totalorder %s39, 0
    %p570 = por %p568, %p569
    %s572 = sadd.s32 %s571, 1
    %p575 = scmp.eq.s32.totalorder %s33, 1
    %p576 = scmp.ne.s32.totalorder %s571, %s573
    %p577 = scmp.eq.s32.totalorder %s33, 0
    %p578 = por %p576, %p577
    %p579 = scmp.ne.s32.totalorder %s571, %s573
    %p580 = scmp.eq.s32.totalorder %s38, 1
    %p581 = por %p579, %p580
    %p582 = scmp.ne.s32.totalorder %s573, %s574
    %p583 = scmp.eq.s32.totalorder %s38, 0
    %p584 = por %p582, %p583
    %p585 = scmp.ne.s32.totalorder %s573, %s574
    %p586 = scmp.eq.s32.totalorder %s39, 1
    %p587 = por %p585, %p586
    %p589 = scmp.ne.s32.totalorder %s574, %s588
    %p590 = scmp.eq.s32.totalorder %s39, 0
    %p591 = por %p589, %p590
    %s593 = sadd.s32 %s592, 1
    %p596 = scmp.eq.s32.totalorder %s33, 1
    %p597 = scmp.ne.s32.totalorder %s592, %s594
    %p598 = scmp.eq.s32.totalorder %s33, 0
    %p599 = por %p597, %p598
    %p600 = scmp.ne.s32.totalorder %s592, %s594
    %p601 = scmp.eq.s32.totalorder %s38, 1
    %p602 = por %p600, %p601
    %p603 = scmp.ne.s32.totalorder %s594, %s595
    %p604 = scmp.eq.s32.totalorder %s38, 0
    %p605 = por %p603, %p604
    %p606 = scmp.ne.s32.totalorder %s594, %s595
    %p607 = scmp.eq.s32.totalorder %s39, 1
    %p608 = por %p606, %p607
    %p610 = scmp.ne.s32.totalorder %s595, %s609
    %p611 = scmp.eq.s32.totalorder %s39, 0
    %p612 = por %p610, %p611
    %s613 = ssub.s32 %s33, %s40
    %p614 = scmp.eq.s32.totalorder %s613, 0
    %s616 = sadd.s32 %s615, 1
    %s617 = scalar_select %p614, %s615, %s616
    %p620 = pneg %p614
    %p621 = scmp.eq.s32.totalorder %s33, 1
    %p622 = por %p620, %p621
    %p623 = scmp.ne.s32.totalorder %s615, %s618
    %p624 = scmp.eq.s32.totalorder %s33, 0
    %p625 = por %p623, %p624
    %p626 = scmp.ne.s32.totalorder %s615, %s618
    %p627 = scmp.eq.s32.totalorder %s38, 1
    %p628 = por %p626, %p627
    %p629 = scmp.ne.s32.totalorder %s618, %s619
    %p630 = scmp.eq.s32.totalorder %s38, 0
    %p631 = por %p629, %p630
    %p632 = scmp.ne.s32.totalorder %s618, %s619
    %p633 = scmp.eq.s32.totalorder %s39, 1
    %p634 = por %p632, %p633
    %p636 = scmp.ne.s32.totalorder %s619, %s635
    %p637 = scmp.eq.s32.totalorder %s39, 0
    %p638 = por %p636, %p637
    %p639 = scmp.le.s32.totalorder 1, %s33
    %p640 = scmp.lt.s32.totalorder %s33, 3
    %p641 = pnand %p639, %p640
    %p642 = pneg %p641
    // Predicated region
    $region9: #{simple_unet_pallas.1} parent=5 // pred_check
      _
    $region10: #{simple_unet_pallas.1} parent=5 // pred_check_branch
      %644 = sbr.rel (%p641) target = $region12
    $region11: #{simple_unet_pallas.1} parent=5 // pred_region
      %s645 = ssub.s32 %s33, 1
      // Predicated region
      $region13: #{simple_unet_pallas.1} parent=11 // pred_check
        %p646 = pneg %p80
      $region14: #{simple_unet_pallas.1} parent=11 // pred_check_branch
        %648 = sbr.rel (%p646) target = $region16
      $region15: #{simple_unet_pallas.1} parent=11 // pred_region
        _
      $region16: #{simple_unet_pallas.1} parent=11 // pred_fallthru
        _
      // Predicated region
      $region17: #{simple_unet_pallas.1} parent=11 // pred_check
        %p649 = pneg %p101
      $region18: #{simple_unet_pallas.1} parent=11 // pred_check_branch
        %651 = sbr.rel (%p649) target = $region20
      $region19: #{simple_unet_pallas.1} parent=11 // pred_region
        _
      $region20: #{simple_unet_pallas.1} parent=11 // pred_fallthru
        _
      // Predicated region
      $region21: #{simple_unet_pallas.1} parent=11 // pred_check
        %p652 = pneg %p122
      $region22: #{simple_unet_pallas.1} parent=11 // pred_check_branch
        %654 = sbr.rel (%p652) target = $region24
      $region23: #{simple_unet_pallas.1} parent=11 // pred_region
        _
      $region24: #{simple_unet_pallas.1} parent=11 // pred_fallthru
        _
      // Predicated region
      $region25: #{simple_unet_pallas.1} parent=11 // pred_check
        %p655 = pneg %p143
      $region26: #{simple_unet_pallas.1} parent=11 // pred_check_branch
        %657 = sbr.rel (%p655) target = $region28
      $region27: #{simple_unet_pallas.1} parent=11 // pred_region
        _
      $region28: #{simple_unet_pallas.1} parent=11 // pred_fallthru
        _
      // Predicated region
      $region29: #{simple_unet_pallas.1} parent=11 // pred_check
        %p658 = pneg %p164
      $region30: #{simple_unet_pallas.1} parent=11 // pred_check_branch
        %660 = sbr.rel (%p658) target = $region32
      $region31: #{simple_unet_pallas.1} parent=11 // pred_region
        _
      $region32: #{simple_unet_pallas.1} parent=11 // pred_fallthru
        _
      // Predicated region
      $region33: #{simple_unet_pallas.1} parent=11 // pred_check
        %p661 = pneg %p185
      $region34: #{simple_unet_pallas.1} parent=11 // pred_check_branch
        %663 = sbr.rel (%p661) target = $region36
      $region35: #{simple_unet_pallas.1} parent=11 // pred_region
        _
      $region36: #{simple_unet_pallas.1} parent=11 // pred_fallthru
        _
      // Predicated region
      $region37: #{simple_unet_pallas.1} parent=11 // pred_check
        %p664 = pneg %p206
      $region38: #{simple_unet_pallas.1} parent=11 // pred_check_branch
        %666 = sbr.rel (%p664) target = $region40
      $region39: #{simple_unet_pallas.1} parent=11 // pred_region
        _
      $region40: #{simple_unet_pallas.1} parent=11 // pred_fallthru
        _
      // Predicated region
      $region41: #{simple_unet_pallas.1} parent=11 // pred_check
        %p667 = pneg %p227
      $region42: #{simple_unet_pallas.1} parent=11 // pred_check_branch
        %669 = sbr.rel (%p667) target = $region44
      $region43: #{simple_unet_pallas.1} parent=11 // pred_region
        _
      $region44: #{simple_unet_pallas.1} parent=11 // pred_fallthru
        _
      // Predicated region
      $region45: #{simple_unet_pallas.1} parent=11 // pred_check
        %p670 = pneg %p248
      $region46: #{simple_unet_pallas.1} parent=11 // pred_check_branch
        %672 = sbr.rel (%p670) target = $region48
      $region47: #{simple_unet_pallas.1} parent=11 // pred_region
        _
      $region48: #{simple_unet_pallas.1} parent=11 // pred_fallthru
        _
      // Predicated region
      $region49: #{simple_unet_pallas.1} parent=11 // pred_check
        %p673 = pneg %p269
      $region50: #{simple_unet_pallas.1} parent=11 // pred_check_branch
        %675 = sbr.rel (%p673) target = $region52
      $region51: #{simple_unet_pallas.1} parent=11 // pred_region
        _
      $region52: #{simple_unet_pallas.1} parent=11 // pred_fallthru
        _
      // Predicated region
      $region53: #{simple_unet_pallas.1} parent=11 // pred_check
        %p676 = pneg %p290
      $region54: #{simple_unet_pallas.1} parent=11 // pred_check_branch
        %678 = sbr.rel (%p676) target = $region56
      $region55: #{simple_unet_pallas.1} parent=11 // pred_region
        _
      $region56: #{simple_unet_pallas.1} parent=11 // pred_fallthru
        _
      // Predicated region
      $region57: #{simple_unet_pallas.1} parent=11 // pred_check
        %p679 = pneg %p311
      $region58: #{simple_unet_pallas.1} parent=11 // pred_check_branch
        %681 = sbr.rel (%p679) target = $region60
      $region59: #{simple_unet_pallas.1} parent=11 // pred_region
        _
      $region60: #{simple_unet_pallas.1} parent=11 // pred_fallthru
        _
      // Predicated region
      $region61: #{simple_unet_pallas.1} parent=11 // pred_check
        %p682 = pneg %p332
      $region62: #{simple_unet_pallas.1} parent=11 // pred_check_branch
        %684 = sbr.rel (%p682) target = $region64
      $region63: #{simple_unet_pallas.1} parent=11 // pred_region
        _
      $region64: #{simple_unet_pallas.1} parent=11 // pred_fallthru
        _
      // Predicated region
      $region65: #{simple_unet_pallas.1} parent=11 // pred_check
        %p685 = pneg %p353
      $region66: #{simple_unet_pallas.1} parent=11 // pred_check_branch
        %687 = sbr.rel (%p685) target = $region68
      $region67: #{simple_unet_pallas.1} parent=11 // pred_region
        _
      $region68: #{simple_unet_pallas.1} parent=11 // pred_fallthru
        _
      // Predicated region
      $region69: #{simple_unet_pallas.1} parent=11 // pred_check
        %p688 = pneg %p374
      $region70: #{simple_unet_pallas.1} parent=11 // pred_check_branch
        %690 = sbr.rel (%p688) target = $region72
      $region71: #{simple_unet_pallas.1} parent=11 // pred_region
        _
      $region72: #{simple_unet_pallas.1} parent=11 // pred_fallthru
        _
      // Predicated region
      $region73: #{simple_unet_pallas.1} parent=11 // pred_check
        %p691 = pneg %p395
      $region74: #{simple_unet_pallas.1} parent=11 // pred_check_branch
        %693 = sbr.rel (%p691) target = $region76
      $region75: #{simple_unet_pallas.1} parent=11 // pred_region
        _
      $region76: #{simple_unet_pallas.1} parent=11 // pred_fallthru
        _
      // Predicated region
      $region77: #{simple_unet_pallas.1} parent=11 // pred_check
        %p694 = pneg %p416
      $region78: #{simple_unet_pallas.1} parent=11 // pred_check_branch
        %696 = sbr.rel (%p694) target = $region80
      $region79: #{simple_unet_pallas.1} parent=11 // pred_region
        _
      $region80: #{simple_unet_pallas.1} parent=11 // pred_fallthru
        _
      // Predicated region
      $region81: #{simple_unet_pallas.1} parent=11 // pred_check
        %p697 = pneg %p437
      $region82: #{simple_unet_pallas.1} parent=11 // pred_check_branch
        %699 = sbr.rel (%p697) target = $region84
      $region83: #{simple_unet_pallas.1} parent=11 // pred_region
        _
      $region84: #{simple_unet_pallas.1} parent=11 // pred_fallthru
        _
      // Predicated region
      $region85: #{simple_unet_pallas.1} parent=11 // pred_check
        %p700 = pneg %p458
      $region86: #{simple_unet_pallas.1} parent=11 // pred_check_branch
        %702 = sbr.rel (%p700) target = $region88
      $region87: #{simple_unet_pallas.1} parent=11 // pred_region
        _
      $region88: #{simple_unet_pallas.1} parent=11 // pred_fallthru
        _
      // Predicated region
      $region89: #{simple_unet_pallas.1} parent=11 // pred_check
        %p703 = pneg %p479
      $region90: #{simple_unet_pallas.1} parent=11 // pred_check_branch
        %705 = sbr.rel (%p703) target = $region92
      $region91: #{simple_unet_pallas.1} parent=11 // pred_region
        _
      $region92: #{simple_unet_pallas.1} parent=11 // pred_fallthru
        _
      // Predicated region
      $region93: #{simple_unet_pallas.1} parent=11 // pred_check
        %p706 = pneg %p500
      $region94: #{simple_unet_pallas.1} parent=11 // pred_check_branch
        %708 = sbr.rel (%p706) target = $region96
      $region95: #{simple_unet_pallas.1} parent=11 // pred_region
        _
      $region96: #{simple_unet_pallas.1} parent=11 // pred_fallthru
        _
      // Predicated region
      $region97: #{simple_unet_pallas.1} parent=11 // pred_check
        %p709 = pneg %p521
      $region98: #{simple_unet_pallas.1} parent=11 // pred_check_branch
        %711 = sbr.rel (%p709) target = $region100
      $region99: #{simple_unet_pallas.1} parent=11 // pred_region
        _
      $region100: #{simple_unet_pallas.1} parent=11 // pred_fallthru
        _
      // Predicated region
      $region101: #{simple_unet_pallas.1} parent=11 // pred_check
        %p712 = pneg %p542
      $region102: #{simple_unet_pallas.1} parent=11 // pred_check_branch
        %714 = sbr.rel (%p712) target = $region104
      $region103: #{simple_unet_pallas.1} parent=11 // pred_region
        _
      $region104: #{simple_unet_pallas.1} parent=11 // pred_fallthru
        _
      // Predicated region
      $region105: #{simple_unet_pallas.1} parent=11 // pred_check
        %p715 = pneg %p563
      $region106: #{simple_unet_pallas.1} parent=11 // pred_check_branch
        %717 = sbr.rel (%p715) target = $region108
      $region107: #{simple_unet_pallas.1} parent=11 // pred_region
        _
      $region108: #{simple_unet_pallas.1} parent=11 // pred_fallthru
        _
      // Predicated region
      $region109: #{simple_unet_pallas.1} parent=11 // pred_check
        %p718 = pneg %p584
      $region110: #{simple_unet_pallas.1} parent=11 // pred_check_branch
        %720 = sbr.rel (%p718) target = $region112
      $region111: #{simple_unet_pallas.1} parent=11 // pred_region
        _
      $region112: #{simple_unet_pallas.1} parent=11 // pred_fallthru
        _
      // Predicated region
      $region113: #{simple_unet_pallas.1} parent=11 // pred_check
        %p721 = pneg %p605
      $region114: #{simple_unet_pallas.1} parent=11 // pred_check_branch
        %723 = sbr.rel (%p721) target = $region116
      $region115: #{simple_unet_pallas.1} parent=11 // pred_region
        _
      $region116: #{simple_unet_pallas.1} parent=11 // pred_fallthru
        _
    $region12: #{simple_unet_pallas.1} parent=5 // pred_fallthru
      _
    %p724 = scmp.lt.s32.totalorder %s33, 2
    // Predicated region
    $region117: #{simple_unet_pallas.1} parent=5 // pred_check
      %p725 = pneg %p724
    $region118: #{simple_unet_pallas.1} parent=5 // pred_check_branch
      %727 = sbr.rel (%p725) target = $region120
    $region119: #{simple_unet_pallas.1} parent=5 // pred_region
      // Predicated region
      $region121: #{simple_unet_pallas.1} parent=119 // pred_check
        %p728 = pneg %p53
      $region122: #{simple_unet_pallas.1} parent=119 // pred_check_branch
        %730 = sbr.rel (%p728) target = $region124
      $region123: #{simple_unet_pallas.1} parent=119 // pred_region
        %p731 = scmp.lt.s32.totalorder %s33, 1
        %s732 = scalar_select %p731, %s33, 1
        %s733 = smul.addr %s732, 2
        %s734 = smul.addr %s733, 8
        %s735 = scalar_lea.vmem %s0, %s734
      $region124: #{simple_unet_pallas.1} parent=119 // pred_fallthru
        _
    $region120: #{simple_unet_pallas.1} parent=5 // pred_fallthru
      _
    %p736 = scmp.le.s32.totalorder 1, %s33
    %p737 = scmp.lt.s32.totalorder %s33, 3
    %p738 = pnand %p736, %p737
    %p739 = pneg %p738
    // Predicated region
    $region125: #{simple_unet_pallas.1} parent=5 // pred_check
      _
    $region126: #{simple_unet_pallas.1} parent=5 // pred_check_branch
      %741 = sbr.rel (%p738) target = $region128
    $region127: #{simple_unet_pallas.1} parent=5 // pred_region
      %s742 = ssub.s32 %s33, 1
      %p743 = scmp.lt.s32.totalorder %s38, 1
      %s744 = scalar_select %p743, %s38, 1
      %s745 = smul.addr %s744, 2
      %s746 = smul.addr %s745, 8
      %s747 = scalar_lea.vmem %s0, %s746
      %p748 = pneg %p59
      %p749 = pneg %p56
      %p750 = pneg %p80
      %p751 = pneg %p77
      %p752 = pneg %p101
      %p753 = pneg %p98
      %p754 = pneg %p122
      %p755 = pneg %p119
      %p756 = pneg %p143
      %p757 = pneg %p140
      %p758 = pneg %p164
      %p759 = pneg %p161
      %p760 = pneg %p185
      %p761 = pneg %p182
      %p762 = pneg %p206
      %p763 = pneg %p203
      %p764 = pneg %p227
      %p765 = pneg %p224
      %p766 = pneg %p248
      %p767 = pneg %p245
      %p768 = pneg %p269
      %p769 = pneg %p266
      %p770 = pneg %p290
      %p771 = pneg %p287
      %p772 = pneg %p311
      %p773 = pneg %p308
      %p774 = pneg %p332
      %p775 = pneg %p329
      %p776 = pneg %p353
      %p777 = pneg %p350
      %p778 = pneg %p374
      %p779 = pneg %p371
      %p780 = pneg %p395
      %p781 = pneg %p392
      %p782 = pneg %p416
      %p783 = pneg %p413
      %p784 = pneg %p437
      %p785 = pneg %p434
      %p786 = pneg %p458
      %p787 = pneg %p455
      %p788 = pneg %p479
      %p789 = pneg %p476
      %p790 = pneg %p500
      %p791 = pneg %p497
      %p792 = pneg %p521
      %p793 = pneg %p518
      %p794 = pneg %p542
      %p795 = pneg %p539
      %p796 = pneg %p563
      %p797 = pneg %p560
      %p798 = pneg %p584
      %p799 = pneg %p581
      %p800 = pneg %p605
      %p801 = pneg %p602
      %p802 = pneg %p631
      %p803 = pneg %p628
      %p804 = scmp.lt.s32.totalorder %s38, 1
      %s805 = scalar_select %p804, %s38, 1
      %s806 = smul.addr %s805, 2
      %s807 = smul.addr %s806, 8
      %s808 = scalar_lea.vmem %s27, %s807
      %p809 = scmp.lt.s32.totalorder %s38, 1
      %s810 = scalar_select %p809, %s38, 1
      %s811 = smul.addr %s810, 2
      %s812 = smul.addr %s811, 8
      %s813 = scalar_lea.vmem %s0, %s812
      %p814 = scmp.lt.s32.totalorder %s38, 1
      %s815 = scalar_select %p814, %s38, 1
      %s816 = smul.addr %s815, 2
      %s817 = smul.addr %s816, 8
      %s818 = scalar_lea.vmem %s27, %s817
      %v819 = vld [vmem:[%s813] sm:$0xff]
      %v820 = vld [vmem:[%s813 + $0x8] sm:$0xff]
      %v821 = vld [vmem:[%s2] sm:$0x1]
      %v822 = vld [vmem:[%s1] sm:$0xff]
      %v823 = vld [vmem:[%s1 + $0x8] sm:$0xff]
      %v824 = vld [vmem:[%s1 + $0x10] sm:$0xff]
      %v825 = vld [vmem:[%s1 + $0x18] sm:$0xff]
      %v826 = vld [vmem:[%s1 + $0x20] sm:$0xff]
      %v827 = vld [vmem:[%s1 + $0x28] sm:$0xff]
      %v828 = vld [vmem:[%s1 + $0x30] sm:$0xff]
      %v829 = vld [vmem:[%s1 + $0x38] sm:$0xff]
      %vm830 = vcmask 523264
      %v832 = vsel %vm830, %v819, 0
      %v835 = vsel %vm830, %v820, 0
      %837 = vmatpush.msra.mxu0 0.0
      %838 = vmatpush.msra.mxu0 0.0
      %839 = vmatpush.msra.mxu0 0.0
      %840 = vmatpush.msra.mxu0 0.0
      %841 = vmatpush.msra.mxu0 0.0
      %842 = vmatpush.msra.mxu0 0.0
      %843 = vmatpush.msra.mxu0 0.0
      %844 = vmatpush.msra.mxu0 0.0
      %845 = vmatpush.msra.mxu0 %v829
      %846 = vmatpush.msra.mxu0 %v828
      %847 = vmatpush.msra.mxu0 %v827
      %848 = vmatpush.msra.mxu0 %v826
      %849 = vmatpush.msra.mxu0 %v825
      %850 = vmatpush.msra.mxu0 %v824
      %851 = vmatpush.msra.mxu0 %v823
      %852 = vmatpush.msra.mxu0 %v822
      %853 = vmatmul.f32.gmra.mxu0 %v832
      %v854 = vpop.f32.mrf.mxu0
      %v855 = vadd.f32 0.0, %v854
      %856 = vmatmul.f32.gmra.mxu0 %v835
      %v857 = vpop.f32.mrf.mxu0
      %v858 = vadd.f32 0.0, %v857
      %859 = vdwg.mxu0
      %v860 = vlaneseq
      %v861 = vshrl.u32 %v860, 7
      %v862 = vadd.s32 %v861, 8
      %v863 = vlaneseq
      %v864 = vand.u32 %v863, 127
      %v865 = vadd.s32 %v861, 4294967295
      %v866 = vadd.s32 %v862, 4294967295
      %vm867 = vcmp.eq.s32.totalorder %v864, %v865
      %vm868 = vcmp.eq.s32.totalorder %v864, %v866
      %v869 = vsel %vm867, 1.0, 0.0
      %v870 = vsel %vm868, 1.0, 0.0
      %s871 = scalar_lea.vmem %s1, 64
      %v872 = vld [vmem:[%s871] sm:$0xff]
      %v873 = vld [vmem:[%s871 + $0x8] sm:$0xff]
      %v874 = vld [vmem:[%s871 + $0x10] sm:$0xff]
      %v875 = vld [vmem:[%s871 + $0x18] sm:$0xff]
      %v876 = vld [vmem:[%s871 + $0x20] sm:$0xff]
      %v877 = vld [vmem:[%s871 + $0x28] sm:$0xff]
      %v878 = vld [vmem:[%s871 + $0x30] sm:$0xff]
      %v879 = vld [vmem:[%s871 + $0x38] sm:$0xff]
      %880 = vmatpush.msra.mxu0 0.0
      %881 = vmatpush.msra.mxu0 0.0
      %882 = vmatpush.msra.mxu0 0.0
      %883 = vmatpush.msra.mxu0 0.0
      %884 = vmatpush.msra.mxu0 0.0
      %885 = vmatpush.msra.mxu0 0.0
      %886 = vmatpush.msra.mxu0 0.0
      %887 = vmatpush.msra.mxu0 0.0
      %888 = vmatpush.msra.mxu0 %v879
      %889 = vmatpush.msra.mxu0 %v878
      %890 = vmatpush.msra.mxu0 %v877
      %891 = vmatpush.msra.mxu0 %v876
      %892 = vmatpush.msra.mxu0 %v875
      %893 = vmatpush.msra.mxu0 %v874
      %894 = vmatpush.msra.mxu0 %v873
      %895 = vmatpush.msra.mxu0 %v872
      %896 = vmatmul.f32.gmra.mxu0 %v832
      %v897 = vpop.f32.mrf.mxu0
      %v898 = vadd.f32 0.0, %v897
      %899 = vmatmul.f32.gmra.mxu0 %v835
      %v900 = vpop.f32.mrf.mxu0
      %v901 = vadd.f32 0.0, %v900
      %902 = vdwg.mxu0
      %vm903 = vcmask 130048
      %v905 = vsel %vm903, %v869, 0
      %v908 = vsel %vm903, %v870, 0
      %910 = vmatpush.msra.mxu0 0.0
      %911 = vmatpush.msra.mxu0 0.0
      %912 = vmatpush.msra.mxu0 0.0
      %913 = vmatpush.msra.mxu0 0.0
      %914 = vmatpush.msra.mxu0 0.0
      %915 = vmatpush.msra.mxu0 0.0
      %916 = vmatpush.msra.mxu0 0.0
      %917 = vmatpush.msra.mxu0 0.0
      %918 = vmatpush.msra.mxu0 0.0
      %919 = vmatpush.msra.mxu0 0.0
      %920 = vmatpush.msra.mxu0 0.0
      %921 = vmatpush.msra.mxu0 0.0
      %922 = vmatpush.msra.mxu0 0.0
      %923 = vmatpush.msra.mxu0 0.0
      %924 = vmatpush.msra.mxu0 %v858
      %925 = vmatpush.msra.mxu0 %v855
      %926 = vmatmul.f32.gmra.mxu0 %v905
      %v927 = vpop.f32.mrf.mxu0
      %v928 = vadd.f32 %v898, %v927
      %929 = vmatmul.f32.gmra.mxu0 %v908
      %v930 = vpop.f32.mrf.mxu0
      %v931 = vadd.f32 %v901, %v930
      %932 = vdwg.mxu0
      %s933 = scalar_lea.vmem %s1, 128
      %v934 = vld [vmem:[%s933] sm:$0xff]
      %v935 = vld [vmem:[%s933 + $0x8] sm:$0xff]
      %v936 = vld [vmem:[%s933 + $0x10] sm:$0xff]
      %v937 = vld [vmem:[%s933 + $0x18] sm:$0xff]
      %v938 = vld [vmem:[%s933 + $0x20] sm:$0xff]
      %v939 = vld [vmem:[%s933 + $0x28] sm:$0xff]
      %v940 = vld [vmem:[%s933 + $0x30] sm:$0xff]
      %v941 = vld [vmem:[%s933 + $0x38] sm:$0xff]
      %942 = vmatpush.msra.mxu0 0.0
      %943 = vmatpush.msra.mxu0 0.0
      %944 = vmatpush.msra.mxu0 0.0
      %945 = vmatpush.msra.mxu0 0.0
      %946 = vmatpush.msra.mxu0 0.0
      %947 = vmatpush.msra.mxu0 0.0
      %948 = vmatpush.msra.mxu0 0.0
      %949 = vmatpush.msra.mxu0 0.0
      %950 = vmatpush.msra.mxu0 %v941
      %951 = vmatpush.msra.mxu0 %v940
      %952 = vmatpush.msra.mxu0 %v939
      %953 = vmatpush.msra.mxu0 %v938
      %954 = vmatpush.msra.mxu0 %v937
      %955 = vmatpush.msra.mxu0 %v936
      %956 = vmatpush.msra.mxu0 %v935
      %957 = vmatpush.msra.mxu0 %v934
      %958 = vmatmul.f32.gmra.mxu0 %v832
      %v959 = vpop.f32.mrf.mxu0
      %v960 = vadd.f32 0.0, %v959
      %961 = vmatmul.f32.gmra.mxu0 %v835
      %v962 = vpop.f32.mrf.mxu0
      %v963 = vadd.f32 0.0, %v962
      %964 = vdwg.mxu0
      %v965 = vadd.s32 %v861, 1
      %v966 = vadd.s32 %v862, 1
      %vm967 = vcmp.eq.s32.totalorder %v864, %v965
      %vm968 = vcmp.eq.s32.totalorder %v864, %v966
      %v969 = vsel %vm967, 1.0, 0.0
      %v970 = vsel %vm968, 1.0, 0.0
      %v972 = vsel %vm903, %v969, 0
      %v975 = vsel %vm903, %v970, 0
      %977 = vmatpush.msra.mxu0 0.0
      %978 = vmatpush.msra.mxu0 0.0
      %979 = vmatpush.msra.mxu0 0.0
      %980 = vmatpush.msra.mxu0 0.0
      %981 = vmatpush.msra.mxu0 0.0
      %982 = vmatpush.msra.mxu0 0.0
      %983 = vmatpush.msra.mxu0 0.0
      %984 = vmatpush.msra.mxu0 0.0
      %985 = vmatpush.msra.mxu0 0.0
      %986 = vmatpush.msra.mxu0 0.0
      %987 = vmatpush.msra.mxu0 0.0
      %988 = vmatpush.msra.mxu0 0.0
      %989 = vmatpush.msra.mxu0 0.0
      %990 = vmatpush.msra.mxu0 0.0
      %991 = vmatpush.msra.mxu0 %v963
      %992 = vmatpush.msra.mxu0 %v960
      %993 = vmatmul.f32.gmra.mxu0 %v972
      %v994 = vpop.f32.mrf.mxu0
      %v995 = vadd.f32 0.0, %v994
      %996 = vmatmul.f32.gmra.mxu0 %v975
      %v997 = vpop.f32.mrf.mxu0
      %v998 = vadd.f32 0.0, %v997
      %999 = vdwg.mxu0
      %v1000 = vadd.f32 %v928, %v995
      %v1001 = vadd.f32 %v931, %v998
      %v1003 = vperm.slane %v821, 0
      %v1005 = vadd.f32 %v1000, %v1003
      %v1006 = vadd.f32 %v1001, %v1003
      %v1007 = vld [vmem:[%s5] sm:$0xff]
      %v1008 = vld [vmem:[%s5 + $0x8] sm:$0xff]
      %v1009 = vld [vmem:[%s5 + $0x10] sm:$0xff]
      %v1010 = vld [vmem:[%s5 + $0x18] sm:$0xff]
      %v1011 = vld [vmem:[%s5 + $0x20] sm:$0xff]
      %v1012 = vld [vmem:[%s5 + $0x28] sm:$0xff]
      %v1013 = vld [vmem:[%s5 + $0x30] sm:$0xff]
      %v1014 = vld [vmem:[%s5 + $0x38] sm:$0xff]
      %v1016 = vsel %vm830, %v1005, 0
      %v1019 = vsel %vm830, %v1006, 0
      %1021 = vmatpush.msra.mxu0 0.0
      %1022 = vmatpush.msra.mxu0 0.0
      %1023 = vmatpush.msra.mxu0 0.0
      %1024 = vmatpush.msra.mxu0 0.0
      %1025 = vmatpush.msra.mxu0 0.0
      %1026 = vmatpush.msra.mxu0 0.0
      %1027 = vmatpush.msra.mxu0 0.0
      %1028 = vmatpush.msra.mxu0 0.0
      %1029 = vmatpush.msra.mxu0 %v1014
      %1030 = vmatpush.msra.mxu0 %v1013
      %1031 = vmatpush.msra.mxu0 %v1012
      %1032 = vmatpush.msra.mxu0 %v1011
      %1033 = vmatpush.msra.mxu0 %v1010
      %1034 = vmatpush.msra.mxu0 %v1009
      %1035 = vmatpush.msra.mxu0 %v1008
      %1036 = vmatpush.msra.mxu0 %v1007
      %1037 = vmatmul.f32.gmra.mxu0 %v1016
      %v1038 = vpop.f32.mrf.mxu0
      %v1039 = vadd.f32 0.0, %v1038
      %1040 = vmatmul.f32.gmra.mxu0 %v1019
      %v1041 = vpop.f32.mrf.mxu0
      %v1042 = vadd.f32 0.0, %v1041
      %1043 = vdwg.mxu0
      %v1044 = vsel %vm830, %v1039, 0.0
      %v1045 = vsel %vm830, %v1042, 0.0
      %v1046 = vadd.f32 %v1044, %v1045
      %v1047 = vrot.slane %v1046, 4
      %v1048 = vadd.f32 %v1046, %v1047
      %v1049 = vrot.slane %v1048, 2
      %v1050 = vadd.f32 %v1048, %v1049
      %v1051 = vrot.slane %v1050, 1
      %v1052 = vadd.f32 %v1050, %v1051
      %v1053 = vrcp.pop 16.0
      %v1054 = vmul.f32 16.0, %v1053
      %v1055 = vsub.f32 1.0, %v1054
      %v1056 = vmul.f32 %v1053, %v1055
      %v1057 = vadd.f32 %v1053, %v1056
      %vm1058 = vweird.f32 %v1053
      %v1059 = vsel %vm1058, %v1053, %v1057
      %v1060 = vmul.f32 %v1052, %v1059
      %v1061 = vsub.f32 %v1005, %v1060
      %v1062 = vsub.f32 %v1006, %v1060
      %v1063 = vmul.f32 %v1061, %v1061
      %v1064 = vmul.f32 %v1062, %v1062
      %v1066 = vsel %vm830, %v1063, 0
      %v1069 = vsel %vm830, %v1064, 0
      %1071 = vmatpush.msra.mxu0 0.0
      %1072 = vmatpush.msra.mxu0 0.0
      %1073 = vmatpush.msra.mxu0 0.0
      %1074 = vmatpush.msra.mxu0 0.0
      %1075 = vmatpush.msra.mxu0 0.0
      %1076 = vmatpush.msra.mxu0 0.0
      %1077 = vmatpush.msra.mxu0 0.0
      %1078 = vmatpush.msra.mxu0 0.0
      %1079 = vmatpush.msra.mxu0 %v1014
      %1080 = vmatpush.msra.mxu0 %v1013
      %1081 = vmatpush.msra.mxu0 %v1012
      %1082 = vmatpush.msra.mxu0 %v1011
      %1083 = vmatpush.msra.mxu0 %v1010
      %1084 = vmatpush.msra.mxu0 %v1009
      %1085 = vmatpush.msra.mxu0 %v1008
      %1086 = vmatpush.msra.mxu0 %v1007
      %1087 = vmatmul.f32.gmra.mxu0 %v1066
      %v1088 = vpop.f32.mrf.mxu0
      %v1089 = vadd.f32 0.0, %v1088
      %1090 = vmatmul.f32.gmra.mxu0 %v1069
      %v1091 = vpop.f32.mrf.mxu0
      %v1092 = vadd.f32 0.0, %v1091
      %1093 = vdwg.mxu0
      %v1094 = vsel %vm830, %v1089, 0.0
      %v1095 = vsel %vm830, %v1092, 0.0
      %v1096 = vadd.f32 %v1094, %v1095
      %v1097 = vrot.slane %v1096, 4
      %v1098 = vadd.f32 %v1096, %v1097
      %v1099 = vrot.slane %v1098, 2
      %v1100 = vadd.f32 %v1098, %v1099
      %v1101 = vrot.slane %v1100, 1
      %v1102 = vadd.f32 %v1100, %v1101
      %v1103 = vmul.f32 %v1102, %v1059
      %v1104 = vadd.f32 %v1103, 1e-05
      %v1105 = vrsqrt.pop %v1104
      %v1106 = vmul.f32 %v1105, %v1104
      %v1107 = vmul.f32 %v1106, %v1105
      %v1108 = vmul.f32 0.5, %v1107
      %v1109 = vsub.f32 1.5, %v1108
      %v1110 = vmul.f32 %v1105, %v1109
      %vm1111 = vweird.f32 %v1104
      %vm1112 = vweird.f32 %v1105
      %vm1113 = vmor %vm1111, %vm1112
      %v1114 = vsel %vm1113, %v1105, %v1110
      %v1115 = vmul.f32 %v1061, %v1114
      %v1116 = vmul.f32 %v1062, %v1114
      %v1117 = vmax.f32 %v1115, 0.0
      %v1118 = vmax.f32 %v1116, 0.0
      %v1119 = vld [vmem:[%s4] sm:$0x1]
      %v1120 = vld [vmem:[%s3] sm:$0xff]
      %v1121 = vld [vmem:[%s3 + $0x8] sm:$0xff]
      %v1122 = vld [vmem:[%s3 + $0x10] sm:$0xff]
      %v1123 = vld [vmem:[%s3 + $0x18] sm:$0xff]
      %v1124 = vld [vmem:[%s3 + $0x20] sm:$0xff]
      %v1125 = vld [vmem:[%s3 + $0x28] sm:$0xff]
      %v1126 = vld [vmem:[%s3 + $0x30] sm:$0xff]
      %v1127 = vld [vmem:[%s3 + $0x38] sm:$0xff]
      %v1129 = vsel %vm830, %v1117, 0
      %v1132 = vsel %vm830, %v1118, 0
      %1134 = vmatpush.msra.mxu0 0.0
      %1135 = vmatpush.msra.mxu0 0.0
      %1136 = vmatpush.msra.mxu0 0.0
      %1137 = vmatpush.msra.mxu0 0.0
      %1138 = vmatpush.msra.mxu0 0.0
      %1139 = vmatpush.msra.mxu0 0.0
      %1140 = vmatpush.msra.mxu0 0.0
      %1141 = vmatpush.msra.mxu0 0.0
      %1142 = vmatpush.msra.mxu0 %v1127
      %1143 = vmatpush.msra.mxu0 %v1126
      %1144 = vmatpush.msra.mxu0 %v1125
      %1145 = vmatpush.msra.mxu0 %v1124
      %1146 = vmatpush.msra.mxu0 %v1123
      %1147 = vmatpush.msra.mxu0 %v1122
      %1148 = vmatpush.msra.mxu0 %v1121
      %1149 = vmatpush.msra.mxu0 %v1120
      %1150 = vmatmul.f32.gmra.mxu0 %v1129
      %v1151 = vpop.f32.mrf.mxu0
      %v1152 = vadd.f32 0.0, %v1151
      %1153 = vmatmul.f32.gmra.mxu0 %v1132
      %v1154 = vpop.f32.mrf.mxu0
      %v1155 = vadd.f32 0.0, %v1154
      %1156 = vdwg.mxu0
      %s1157 = scalar_lea.vmem %s3, 64
      %v1158 = vld [vmem:[%s1157] sm:$0xff]
      %v1159 = vld [vmem:[%s1157 + $0x8] sm:$0xff]
      %v1160 = vld [vmem:[%s1157 + $0x10] sm:$0xff]
      %v1161 = vld [vmem:[%s1157 + $0x18] sm:$0xff]
      %v1162 = vld [vmem:[%s1157 + $0x20] sm:$0xff]
      %v1163 = vld [vmem:[%s1157 + $0x28] sm:$0xff]
      %v1164 = vld [vmem:[%s1157 + $0x30] sm:$0xff]
      %v1165 = vld [vmem:[%s1157 + $0x38] sm:$0xff]
      %1166 = vmatpush.msra.mxu0 0.0
      %1167 = vmatpush.msra.mxu0 0.0
      %1168 = vmatpush.msra.mxu0 0.0
      %1169 = vmatpush.msra.mxu0 0.0
      %1170 = vmatpush.msra.mxu0 0.0
      %1171 = vmatpush.msra.mxu0 0.0
      %1172 = vmatpush.msra.mxu0 0.0
      %1173 = vmatpush.msra.mxu0 0.0
      %1174 = vmatpush.msra.mxu0 %v1165
      %1175 = vmatpush.msra.mxu0 %v1164
      %1176 = vmatpush.msra.mxu0 %v1163
      %1177 = vmatpush.msra.mxu0 %v1162
      %1178 = vmatpush.msra.mxu0 %v1161
      %1179 = vmatpush.msra.mxu0 %v1160
      %1180 = vmatpush.msra.mxu0 %v1159
      %1181 = vmatpush.msra.mxu0 %v1158
      %1182 = vmatmul.f32.gmra.mxu0 %v1129
      %v1183 = vpop.f32.mrf.mxu0
      %v1184 = vadd.f32 0.0, %v1183
      %1185 = vmatmul.f32.gmra.mxu0 %v1132
      %v1186 = vpop.f32.mrf.mxu0
      %v1187 = vadd.f32 0.0, %v1186
      %1188 = vdwg.mxu0
      %1189 = vmatpush.msra.mxu0 0.0
      %1190 = vmatpush.msra.mxu0 0.0
      %1191 = vmatpush.msra.mxu0 0.0
      %1192 = vmatpush.msra.mxu0 0.0
      %1193 = vmatpush.msra.mxu0 0.0
      %1194 = vmatpush.msra.mxu0 0.0
      %1195 = vmatpush.msra.mxu0 0.0
      %1196 = vmatpush.msra.mxu0 0.0
      %1197 = vmatpush.msra.mxu0 0.0
      %1198 = vmatpush.msra.mxu0 0.0
      %1199 = vmatpush.msra.mxu0 0.0
      %1200 = vmatpush.msra.mxu0 0.0
      %1201 = vmatpush.msra.mxu0 0.0
      %1202 = vmatpush.msra.mxu0 0.0
      %1203 = vmatpush.msra.mxu0 %v1155
      %1204 = vmatpush.msra.mxu0 %v1152
      %1205 = vmatmul.f32.gmra.mxu0 %v905
      %v1206 = vpop.f32.mrf.mxu0
      %v1207 = vadd.f32 %v1184, %v1206
      %1208 = vmatmul.f32.gmra.mxu0 %v908
      %v1209 = vpop.f32.mrf.mxu0
      %v1210 = vadd.f32 %v1187, %v1209
      %1211 = vdwg.mxu0
      %s1212 = scalar_lea.vmem %s3, 128
      %v1213 = vld [vmem:[%s1212] sm:$0xff]
      %v1214 = vld [vmem:[%s1212 + $0x8] sm:$0xff]
      %v1215 = vld [vmem:[%s1212 + $0x10] sm:$0xff]
      %v1216 = vld [vmem:[%s1212 + $0x18] sm:$0xff]
      %v1217 = vld [vmem:[%s1212 + $0x20] sm:$0xff]
      %v1218 = vld [vmem:[%s1212 + $0x28] sm:$0xff]
      %v1219 = vld [vmem:[%s1212 + $0x30] sm:$0xff]
      %v1220 = vld [vmem:[%s1212 + $0x38] sm:$0xff]
      %1221 = vmatpush.msra.mxu0 0.0
      %1222 = vmatpush.msra.mxu0 0.0
      %1223 = vmatpush.msra.mxu0 0.0
      %1224 = vmatpush.msra.mxu0 0.0
      %1225 = vmatpush.msra.mxu0 0.0
      %1226 = vmatpush.msra.mxu0 0.0
      %1227 = vmatpush.msra.mxu0 0.0
      %1228 = vmatpush.msra.mxu0 0.0
      %1229 = vmatpush.msra.mxu0 %v1220
      %1230 = vmatpush.msra.mxu0 %v1219
      %1231 = vmatpush.msra.mxu0 %v1218
      %1232 = vmatpush.msra.mxu0 %v1217
      %1233 = vmatpush.msra.mxu0 %v1216
      %1234 = vmatpush.msra.mxu0 %v1215
      %1235 = vmatpush.msra.mxu0 %v1214
      %1236 = vmatpush.msra.mxu0 %v1213
      %1237 = vmatmul.f32.gmra.mxu0 %v1129
      %v1238 = vpop.f32.mrf.mxu0
      %v1239 = vadd.f32 0.0, %v1238
      %1240 = vmatmul.f32.gmra.mxu0 %v1132
      %v1241 = vpop.f32.mrf.mxu0
      %v1242 = vadd.f32 0.0, %v1241
      %1243 = vdwg.mxu0
      %1244 = vmatpush.msra.mxu0 0.0
      %1245 = vmatpush.msra.mxu0 0.0
      %1246 = vmatpush.msra.mxu0 0.0
      %1247 = vmatpush.msra.mxu0 0.0
      %1248 = vmatpush.msra.mxu0 0.0
      %1249 = vmatpush.msra.mxu0 0.0
      %1250 = vmatpush.msra.mxu0 0.0
      %1251 = vmatpush.msra.mxu0 0.0
      %1252 = vmatpush.msra.mxu0 0.0
      %1253 = vmatpush.msra.mxu0 0.0
      %1254 = vmatpush.msra.mxu0 0.0
      %1255 = vmatpush.msra.mxu0 0.0
      %1256 = vmatpush.msra.mxu0 0.0
      %1257 = vmatpush.msra.mxu0 0.0
      %1258 = vmatpush.msra.mxu0 %v1242
      %1259 = vmatpush.msra.mxu0 %v1239
      %1260 = vmatmul.f32.gmra.mxu0 %v972
      %v1261 = vpop.f32.mrf.mxu0
      %v1262 = vadd.f32 0.0, %v1261
      %1263 = vmatmul.f32.gmra.mxu0 %v975
      %v1264 = vpop.f32.mrf.mxu0
      %v1265 = vadd.f32 0.0, %v1264
      %1266 = vdwg.mxu0
      %v1267 = vadd.f32 %v1207, %v1262
      %v1268 = vadd.f32 %v1210, %v1265
      %v1270 = vperm.slane %v1119, 0
      %v1272 = vadd.f32 %v1267, %v1270
      %v1273 = vadd.f32 %v1268, %v1270
      %v1274 = vld [vmem:[%s6] sm:$0xff]
      %v1275 = vld [vmem:[%s6 + $0x8] sm:$0xff]
      %v1276 = vld [vmem:[%s6 + $0x10] sm:$0xff]
      %v1277 = vld [vmem:[%s6 + $0x18] sm:$0xff]
      %v1278 = vld [vmem:[%s6 + $0x20] sm:$0xff]
      %v1279 = vld [vmem:[%s6 + $0x28] sm:$0xff]
      %v1280 = vld [vmem:[%s6 + $0x30] sm:$0xff]
      %v1281 = vld [vmem:[%s6 + $0x38] sm:$0xff]
      %v1282 = vld [vmem:[%s6 + $0x40] sm:$0xff]
      %v1283 = vld [vmem:[%s6 + $0x48] sm:$0xff]
      %v1284 = vld [vmem:[%s6 + $0x50] sm:$0xff]
      %v1285 = vld [vmem:[%s6 + $0x58] sm:$0xff]
      %v1286 = vld [vmem:[%s6 + $0x60] sm:$0xff]
      %v1287 = vld [vmem:[%s6 + $0x68] sm:$0xff]
      %v1288 = vld [vmem:[%s6 + $0x70] sm:$0xff]
      %v1289 = vld [vmem:[%s6 + $0x78] sm:$0xff]
      %1290 = vmatpush.msra.mxu0 %v1289
      %1291 = vmatpush.msra.mxu0 %v1288
      %1292 = vmatpush.msra.mxu0 %v1287
      %1293 = vmatpush.msra.mxu0 %v1286
      %1294 = vmatpush.msra.mxu0 %v1285
      %1295 = vmatpush.msra.mxu0 %v1284
      %1296 = vmatpush.msra.mxu0 %v1283
      %1297 = vmatpush.msra.mxu0 %v1282
      %1298 = vmatpush.msra.mxu0 %v1281
      %1299 = vmatpush.msra.mxu0 %v1280
      %1300 = vmatpush.msra.mxu0 %v1279
      %1301 = vmatpush.msra.mxu0 %v1278
      %1302 = vmatpush.msra.mxu0 %v1277
      %1303 = vmatpush.msra.mxu0 %v1276
      %1304 = vmatpush.msra.mxu0 %v1275
      %1305 = vmatpush.msra.mxu0 %v1274
      %1306 = vmatmul.f32.gmra.mxu0 %v1272
      %v1307 = vpop.f32.mrf.mxu0
      %v1308 = vadd.f32 0.0, %v1307
      %1309 = vmatmul.f32.gmra.mxu0 %v1273
      %v1310 = vpop.f32.mrf.mxu0
      %v1311 = vadd.f32 0.0, %v1310
      %1312 = vdwg.mxu0
      %v1313 = vadd.f32 %v1308, %v1311
      %v1314 = vrot.slane %v1313, 4
      %v1315 = vadd.f32 %v1313, %v1314
      %v1316 = vrot.slane %v1315, 2
      %v1317 = vadd.f32 %v1315, %v1316
      %v1318 = vrot.slane %v1317, 1
      %v1319 = vadd.f32 %v1317, %v1318
      %v1320 = vmul.f32 %v1319, %v1059
      %v1321 = vsub.f32 %v1272, %v1320
      %v1322 = vsub.f32 %v1273, %v1320
      %v1323 = vmul.f32 %v1321, %v1321
      %v1324 = vmul.f32 %v1322, %v1322
      %1325 = vmatpush.msra.mxu0 %v1289
      %1326 = vmatpush.msra.mxu0 %v1288
      %1327 = vmatpush.msra.mxu0 %v1287
      %1328 = vmatpush.msra.mxu0 %v1286
      %1329 = vmatpush.msra.mxu0 %v1285
      %1330 = vmatpush.msra.mxu0 %v1284
      %1331 = vmatpush.msra.mxu0 %v1283
      %1332 = vmatpush.msra.mxu0 %v1282
      %1333 = vmatpush.msra.mxu0 %v1281
      %1334 = vmatpush.msra.mxu0 %v1280
      %1335 = vmatpush.msra.mxu0 %v1279
      %1336 = vmatpush.msra.mxu0 %v1278
      %1337 = vmatpush.msra.mxu0 %v1277
      %1338 = vmatpush.msra.mxu0 %v1276
      %1339 = vmatpush.msra.mxu0 %v1275
      %1340 = vmatpush.msra.mxu0 %v1274
      %1341 = vmatmul.f32.gmra.mxu0 %v1323
      %v1342 = vpop.f32.mrf.mxu0
      %v1343 = vadd.f32 0.0, %v1342
      %1344 = vmatmul.f32.gmra.mxu0 %v1324
      %v1345 = vpop.f32.mrf.mxu0
      %v1346 = vadd.f32 0.0, %v1345
      %1347 = vdwg.mxu0
      %v1348 = vadd.f32 %v1343, %v1346
      %v1349 = vrot.slane %v1348, 4
      %v1350 = vadd.f32 %v1348, %v1349
      %v1351 = vrot.slane %v1350, 2
      %v1352 = vadd.f32 %v1350, %v1351
      %v1353 = vrot.slane %v1352, 1
      %v1354 = vadd.f32 %v1352, %v1353
      %v1355 = vmul.f32 %v1354, %v1059
      %v1356 = vadd.f32 %v1355, 1e-05
      %v1357 = vrsqrt.pop %v1356
      %v1358 = vmul.f32 %v1357, %v1356
      %v1359 = vmul.f32 %v1358, %v1357
      %v1360 = vmul.f32 0.5, %v1359
      %v1361 = vsub.f32 1.5, %v1360
      %v1362 = vmul.f32 %v1357, %v1361
      %vm1363 = vweird.f32 %v1356
      %vm1364 = vweird.f32 %v1357
      %vm1365 = vmor %vm1363, %vm1364
      %v1366 = vsel %vm1365, %v1357, %v1362
      %v1367 = vmul.f32 %v1321, %v1366
      %v1368 = vmul.f32 %v1322, %v1366
      %v1369 = vmax.f32 %v1367, 0.0
      %v1370 = vmax.f32 %v1368, 0.0
      %v1371 = vld [vmem:[%s7] sm:$0xff]
      %v1372 = vld [vmem:[%s8] sm:$0xff]
      %v1373 = vld [vmem:[%s8 + $0x8] sm:$0xff]
      %v1374 = vld [vmem:[%s8 + $0x10] sm:$0xff]
      %v1375 = vld [vmem:[%s8 + $0x18] sm:$0xff]
      %v1376 = vld [vmem:[%s8 + $0x20] sm:$0xff]
      %v1377 = vld [vmem:[%s8 + $0x28] sm:$0xff]
      %v1378 = vld [vmem:[%s8 + $0x30] sm:$0xff]
      %v1379 = vld [vmem:[%s8 + $0x38] sm:$0xff]
      %v1380 = vld [vmem:[%s8 + $0x40] sm:$0xff]
      %v1381 = vld [vmem:[%s8 + $0x48] sm:$0xff]
      %v1382 = vld [vmem:[%s8 + $0x50] sm:$0xff]
      %v1383 = vld [vmem:[%s8 + $0x58] sm:$0xff]
      %v1384 = vld [vmem:[%s8 + $0x60] sm:$0xff]
      %v1385 = vld [vmem:[%s8 + $0x68] sm:$0xff]
      %v1386 = vld [vmem:[%s8 + $0x70] sm:$0xff]
      %v1387 = vld [vmem:[%s8 + $0x78] sm:$0xff]
      %v1389 = vsel %vm903, %v1371, 0
      %1391 = vmatpush.msra.mxu0 0.0
      %1392 = vmatpush.msra.mxu0 0.0
      %1393 = vmatpush.msra.mxu0 0.0
      %1394 = vmatpush.msra.mxu0 0.0
      %1395 = vmatpush.msra.mxu0 0.0
      %1396 = vmatpush.msra.mxu0 0.0
      %1397 = vmatpush.msra.mxu0 0.0
      %1398 = vmatpush.msra.mxu0 0.0
      %1399 = vmatpush.msra.mxu0 0.0
      %1400 = vmatpush.msra.mxu0 0.0
      %1401 = vmatpush.msra.mxu0 0.0
      %1402 = vmatpush.msra.mxu0 0.0
      %1403 = vmatpush.msra.mxu0 0.0
      %1404 = vmatpush.msra.mxu0 0.0
      %1405 = vmatpush.msra.mxu0 %v1370
      %1406 = vmatpush.msra.mxu0 %v1369
      %1407 = vmatmul.f32.gmra.mxu0 %v1389
      %v1408 = vpop.f32.mrf.mxu0
      %v1409 = vadd.f32 0.0, %v1408
      %1410 = vdwg.mxu0
      %1411 = vmatpush.msra.mxu0 %v1387
      %1412 = vmatpush.msra.mxu0 %v1386
      %1413 = vmatpush.msra.mxu0 %v1385
      %1414 = vmatpush.msra.mxu0 %v1384
      %1415 = vmatpush.msra.mxu0 %v1383
      %1416 = vmatpush.msra.mxu0 %v1382
      %1417 = vmatpush.msra.mxu0 %v1381
      %1418 = vmatpush.msra.mxu0 %v1380
      %1419 = vmatpush.msra.mxu0 %v1379
      %1420 = vmatpush.msra.mxu0 %v1378
      %1421 = vmatpush.msra.mxu0 %v1377
      %1422 = vmatpush.msra.mxu0 %v1376
      %1423 = vmatpush.msra.mxu0 %v1375
      %1424 = vmatpush.msra.mxu0 %v1374
      %1425 = vmatpush.msra.mxu0 %v1373
      %1426 = vmatpush.msra.mxu0 %v1372
      %1427 = vmatmul.f32.gmra.mxu0 %v1409
      %v1428 = vpop.f32.mrf.mxu0
      %v1429 = vadd.f32 0.0, %v1428
      %1430 = vdwg.mxu0
      %v1431 = vld [vmem:[%s10] sm:$0x1]
      %v1432 = vld [vmem:[%s9] sm:$0xff]
      %v1433 = vld [vmem:[%s9 + $0x8] sm:$0xff]
      %v1434 = vld [vmem:[%s9 + $0x10] sm:$0xff]
      %v1435 = vld [vmem:[%s9 + $0x18] sm:$0xff]
      %v1436 = vld [vmem:[%s9 + $0x20] sm:$0xff]
      %v1437 = vld [vmem:[%s9 + $0x28] sm:$0xff]
      %v1438 = vld [vmem:[%s9 + $0x30] sm:$0xff]
      %v1439 = vld [vmem:[%s9 + $0x38] sm:$0xff]
      %v1441 = vsel %vm830, %v1429, 0
      %1443 = vmatpush.msra.mxu0 0.0
      %1444 = vmatpush.msra.mxu0 0.0
      %1445 = vmatpush.msra.mxu0 0.0
      %1446 = vmatpush.msra.mxu0 0.0
      %1447 = vmatpush.msra.mxu0 0.0
      %1448 = vmatpush.msra.mxu0 0.0
      %1449 = vmatpush.msra.mxu0 0.0
      %1450 = vmatpush.msra.mxu0 0.0
      %1451 = vmatpush.msra.mxu0 %v1439
      %1452 = vmatpush.msra.mxu0 %v1438
      %1453 = vmatpush.msra.mxu0 %v1437
      %1454 = vmatpush.msra.mxu0 %v1436
      %1455 = vmatpush.msra.mxu0 %v1435
      %1456 = vmatpush.msra.mxu0 %v1434
      %1457 = vmatpush.msra.mxu0 %v1433
      %1458 = vmatpush.msra.mxu0 %v1432
      %1459 = vmatmul.f32.gmra.mxu0 %v1441
      %v1460 = vpop.f32.mrf.mxu0
      %v1461 = vadd.f32 0.0, %v1460
      %1462 = vdwg.mxu0
      %s1463 = scalar_lea.vmem %s9, 64
      %v1464 = vld [vmem:[%s1463] sm:$0xff]
      %v1465 = vld [vmem:[%s1463 + $0x8] sm:$0xff]
      %v1466 = vld [vmem:[%s1463 + $0x10] sm:$0xff]
      %v1467 = vld [vmem:[%s1463 + $0x18] sm:$0xff]
      %v1468 = vld [vmem:[%s1463 + $0x20] sm:$0xff]
      %v1469 = vld [vmem:[%s1463 + $0x28] sm:$0xff]
      %v1470 = vld [vmem:[%s1463 + $0x30] sm:$0xff]
      %v1471 = vld [vmem:[%s1463 + $0x38] sm:$0xff]
      %1472 = vmatpush.msra.mxu0 0.0
      %1473 = vmatpush.msra.mxu0 0.0
      %1474 = vmatpush.msra.mxu0 0.0
      %1475 = vmatpush.msra.mxu0 0.0
      %1476 = vmatpush.msra.mxu0 0.0
      %1477 = vmatpush.msra.mxu0 0.0
      %1478 = vmatpush.msra.mxu0 0.0
      %1479 = vmatpush.msra.mxu0 0.0
      %1480 = vmatpush.msra.mxu0 %v1471
      %1481 = vmatpush.msra.mxu0 %v1470
      %1482 = vmatpush.msra.mxu0 %v1469
      %1483 = vmatpush.msra.mxu0 %v1468
      %1484 = vmatpush.msra.mxu0 %v1467
      %1485 = vmatpush.msra.mxu0 %v1466
      %1486 = vmatpush.msra.mxu0 %v1465
      %1487 = vmatpush.msra.mxu0 %v1464
      %1488 = vmatmul.f32.gmra.mxu0 %v1441
      %v1489 = vpop.f32.mrf.mxu0
      %v1490 = vadd.f32 0.0, %v1489
      %1491 = vdwg.mxu0
      %vm1492 = vcmask 64512
      %v1493 = vsel %vm1492, %v869, 0
      %1495 = vmatpush.msra.mxu0 0.0
      %1496 = vmatpush.msra.mxu0 0.0
      %1497 = vmatpush.msra.mxu0 0.0
      %1498 = vmatpush.msra.mxu0 0.0
      %1499 = vmatpush.msra.mxu0 0.0
      %1500 = vmatpush.msra.mxu0 0.0
      %1501 = vmatpush.msra.mxu0 0.0
      %1502 = vmatpush.msra.mxu0 0.0
      %1503 = vmatpush.msra.mxu0 0.0
      %1504 = vmatpush.msra.mxu0 0.0
      %1505 = vmatpush.msra.mxu0 0.0
      %1506 = vmatpush.msra.mxu0 0.0
      %1507 = vmatpush.msra.mxu0 0.0
      %1508 = vmatpush.msra.mxu0 0.0
      %1509 = vmatpush.msra.mxu0 0.0
      %1510 = vmatpush.msra.mxu0 %v1461
      %1511 = vmatmul.f32.gmra.mxu0 %v1493
      %v1512 = vpop.f32.mrf.mxu0
      %v1513 = vadd.f32 %v1490, %v1512
      %1514 = vdwg.mxu0
      %s1515 = scalar_lea.vmem %s9, 128
      %v1516 = vld [vmem:[%s1515] sm:$0xff]
      %v1517 = vld [vmem:[%s1515 + $0x8] sm:$0xff]
      %v1518 = vld [vmem:[%s1515 + $0x10] sm:$0xff]
      %v1519 = vld [vmem:[%s1515 + $0x18] sm:$0xff]
      %v1520 = vld [vmem:[%s1515 + $0x20] sm:$0xff]
      %v1521 = vld [vmem:[%s1515 + $0x28] sm:$0xff]
      %v1522 = vld [vmem:[%s1515 + $0x30] sm:$0xff]
      %v1523 = vld [vmem:[%s1515 + $0x38] sm:$0xff]
      %1524 = vmatpush.msra.mxu0 0.0
      %1525 = vmatpush.msra.mxu0 0.0
      %1526 = vmatpush.msra.mxu0 0.0
      %1527 = vmatpush.msra.mxu0 0.0
      %1528 = vmatpush.msra.mxu0 0.0
      %1529 = vmatpush.msra.mxu0 0.0
      %1530 = vmatpush.msra.mxu0 0.0
      %1531 = vmatpush.msra.mxu0 0.0
      %1532 = vmatpush.msra.mxu0 %v1523
      %1533 = vmatpush.msra.mxu0 %v1522
      %1534 = vmatpush.msra.mxu0 %v1521
      %1535 = vmatpush.msra.mxu0 %v1520
      %1536 = vmatpush.msra.mxu0 %v1519
      %1537 = vmatpush.msra.mxu0 %v1518
      %1538 = vmatpush.msra.mxu0 %v1517
      %1539 = vmatpush.msra.mxu0 %v1516
      %1540 = vmatmul.f32.gmra.mxu0 %v1441
      %v1541 = vpop.f32.mrf.mxu0
      %v1542 = vadd.f32 0.0, %v1541
      %1543 = vdwg.mxu0
      %v1544 = vsel %vm1492, %v969, 0
      %1546 = vmatpush.msra.mxu0 0.0
      %1547 = vmatpush.msra.mxu0 0.0
      %1548 = vmatpush.msra.mxu0 0.0
      %1549 = vmatpush.msra.mxu0 0.0
      %1550 = vmatpush.msra.mxu0 0.0
      %1551 = vmatpush.msra.mxu0 0.0
      %1552 = vmatpush.msra.mxu0 0.0
      %1553 = vmatpush.msra.mxu0 0.0
      %1554 = vmatpush.msra.mxu0 0.0
      %1555 = vmatpush.msra.mxu0 0.0
      %1556 = vmatpush.msra.mxu0 0.0
      %1557 = vmatpush.msra.mxu0 0.0
      %1558 = vmatpush.msra.mxu0 0.0
      %1559 = vmatpush.msra.mxu0 0.0
      %1560 = vmatpush.msra.mxu0 0.0
      %1561 = vmatpush.msra.mxu0 %v1542
      %1562 = vmatmul.f32.gmra.mxu0 %v1544
      %v1563 = vpop.f32.mrf.mxu0
      %v1564 = vadd.f32 0.0, %v1563
      %1565 = vdwg.mxu0
      %v1566 = vadd.f32 %v1513, %v1564
      %v1568 = vperm.slane %v1431, 0
      %v1570 = vadd.f32 %v1566, %v1568
      %v1571 = vld [vmem:[%s13] sm:$0xff]
      %v1572 = vld [vmem:[%s13 + $0x8] sm:$0xff]
      %v1573 = vld [vmem:[%s13 + $0x10] sm:$0xff]
      %v1574 = vld [vmem:[%s13 + $0x18] sm:$0xff]
      %v1575 = vld [vmem:[%s13 + $0x20] sm:$0xff]
      %v1576 = vld [vmem:[%s13 + $0x28] sm:$0xff]
      %v1577 = vld [vmem:[%s13 + $0x30] sm:$0xff]
      %v1578 = vld [vmem:[%s13 + $0x38] sm:$0xff]
      %v1580 = vsel %vm830, %v1570, 0
      %1582 = vmatpush.msra.mxu0 0.0
      %1583 = vmatpush.msra.mxu0 0.0
      %1584 = vmatpush.msra.mxu0 0.0
      %1585 = vmatpush.msra.mxu0 0.0
      %1586 = vmatpush.msra.mxu0 0.0
      %1587 = vmatpush.msra.mxu0 0.0
      %1588 = vmatpush.msra.mxu0 0.0
      %1589 = vmatpush.msra.mxu0 0.0
      %1590 = vmatpush.msra.mxu0 %v1578
      %1591 = vmatpush.msra.mxu0 %v1577
      %1592 = vmatpush.msra.mxu0 %v1576
      %1593 = vmatpush.msra.mxu0 %v1575
      %1594 = vmatpush.msra.mxu0 %v1574
      %1595 = vmatpush.msra.mxu0 %v1573
      %1596 = vmatpush.msra.mxu0 %v1572
      %1597 = vmatpush.msra.mxu0 %v1571
      %1598 = vmatmul.f32.gmra.mxu0 %v1580
      %v1599 = vpop.f32.mrf.mxu0
      %v1600 = vadd.f32 0.0, %v1599
      %1601 = vdwg.mxu0
      %v1602 = vsel %vm830, %v1600, 0.0
      %v1603 = vrot.slane %v1602, 4
      %v1604 = vadd.f32 %v1602, %v1603
      %v1605 = vrot.slane %v1604, 2
      %v1606 = vadd.f32 %v1604, %v1605
      %v1607 = vrot.slane %v1606, 1
      %v1608 = vadd.f32 %v1606, %v1607
      %v1609 = vrcp.pop 8.0
      %v1610 = vmul.f32 8.0, %v1609
      %v1611 = vsub.f32 1.0, %v1610
      %v1612 = vmul.f32 %v1609, %v1611
      %v1613 = vadd.f32 %v1609, %v1612
      %vm1614 = vweird.f32 %v1609
      %v1615 = vsel %vm1614, %v1609, %v1613
      %v1616 = vmul.f32 %v1608, %v1615
      %v1617 = vsub.f32 %v1570, %v1616
      %v1618 = vmul.f32 %v1617, %v1617
      %v1620 = vsel %vm830, %v1618, 0
      %1622 = vmatpush.msra.mxu0 0.0
      %1623 = vmatpush.msra.mxu0 0.0
      %1624 = vmatpush.msra.mxu0 0.0
      %1625 = vmatpush.msra.mxu0 0.0
      %1626 = vmatpush.msra.mxu0 0.0
      %1627 = vmatpush.msra.mxu0 0.0
      %1628 = vmatpush.msra.mxu0 0.0
      %1629 = vmatpush.msra.mxu0 0.0
      %1630 = vmatpush.msra.mxu0 %v1578
      %1631 = vmatpush.msra.mxu0 %v1577
      %1632 = vmatpush.msra.mxu0 %v1576
      %1633 = vmatpush.msra.mxu0 %v1575
      %1634 = vmatpush.msra.mxu0 %v1574
      %1635 = vmatpush.msra.mxu0 %v1573
      %1636 = vmatpush.msra.mxu0 %v1572
      %1637 = vmatpush.msra.mxu0 %v1571
      %1638 = vmatmul.f32.gmra.mxu0 %v1620
      %v1639 = vpop.f32.mrf.mxu0
      %v1640 = vadd.f32 0.0, %v1639
      %1641 = vdwg.mxu0
      %v1642 = vsel %vm830, %v1640, 0.0
      %v1643 = vrot.slane %v1642, 4
      %v1644 = vadd.f32 %v1642, %v1643
      %v1645 = vrot.slane %v1644, 2
      %v1646 = vadd.f32 %v1644, %v1645
      %v1647 = vrot.slane %v1646, 1
      %v1648 = vadd.f32 %v1646, %v1647
      %v1649 = vmul.f32 %v1648, %v1615
      %v1650 = vadd.f32 %v1649, 1e-05
      %v1651 = vrsqrt.pop %v1650
      %v1652 = vmul.f32 %v1651, %v1650
      %v1653 = vmul.f32 %v1652, %v1651
      %v1654 = vmul.f32 0.5, %v1653
      %v1655 = vsub.f32 1.5, %v1654
      %v1656 = vmul.f32 %v1651, %v1655
      %vm1657 = vweird.f32 %v1650
      %vm1658 = vweird.f32 %v1651
      %vm1659 = vmor %vm1657, %vm1658
      %v1660 = vsel %vm1659, %v1651, %v1656
      %v1661 = vmul.f32 %v1617, %v1660
      %v1662 = vmax.f32 %v1661, 0.0
      %v1663 = vld [vmem:[%s12] sm:$0x1]
      %v1664 = vld [vmem:[%s11] sm:$0xff]
      %v1665 = vld [vmem:[%s11 + $0x8] sm:$0xff]
      %v1666 = vld [vmem:[%s11 + $0x10] sm:$0xff]
      %v1667 = vld [vmem:[%s11 + $0x18] sm:$0xff]
      %v1668 = vld [vmem:[%s11 + $0x20] sm:$0xff]
      %v1669 = vld [vmem:[%s11 + $0x28] sm:$0xff]
      %v1670 = vld [vmem:[%s11 + $0x30] sm:$0xff]
      %v1671 = vld [vmem:[%s11 + $0x38] sm:$0xff]
      %v1673 = vsel %vm830, %v1662, 0
      %1675 = vmatpush.msra.mxu0 0.0
      %1676 = vmatpush.msra.mxu0 0.0
      %1677 = vmatpush.msra.mxu0 0.0
      %1678 = vmatpush.msra.mxu0 0.0
      %1679 = vmatpush.msra.mxu0 0.0
      %1680 = vmatpush.msra.mxu0 0.0
      %1681 = vmatpush.msra.mxu0 0.0
      %1682 = vmatpush.msra.mxu0 0.0
      %1683 = vmatpush.msra.mxu0 %v1671
      %1684 = vmatpush.msra.mxu0 %v1670
      %1685 = vmatpush.msra.mxu0 %v1669
      %1686 = vmatpush.msra.mxu0 %v1668
      %1687 = vmatpush.msra.mxu0 %v1667
      %1688 = vmatpush.msra.mxu0 %v1666
      %1689 = vmatpush.msra.mxu0 %v1665
      %1690 = vmatpush.msra.mxu0 %v1664
      %1691 = vmatmul.f32.gmra.mxu0 %v1673
      %v1692 = vpop.f32.mrf.mxu0
      %v1693 = vadd.f32 0.0, %v1692
      %1694 = vdwg.mxu0
      %s1695 = scalar_lea.vmem %s11, 64
      %v1696 = vld [vmem:[%s1695] sm:$0xff]
      %v1697 = vld [vmem:[%s1695 + $0x8] sm:$0xff]
      %v1698 = vld [vmem:[%s1695 + $0x10] sm:$0xff]
      %v1699 = vld [vmem:[%s1695 + $0x18] sm:$0xff]
      %v1700 = vld [vmem:[%s1695 + $0x20] sm:$0xff]
      %v1701 = vld [vmem:[%s1695 + $0x28] sm:$0xff]
      %v1702 = vld [vmem:[%s1695 + $0x30] sm:$0xff]
      %v1703 = vld [vmem:[%s1695 + $0x38] sm:$0xff]
      %1704 = vmatpush.msra.mxu0 0.0
      %1705 = vmatpush.msra.mxu0 0.0
      %1706 = vmatpush.msra.mxu0 0.0
      %1707 = vmatpush.msra.mxu0 0.0
      %1708 = vmatpush.msra.mxu0 0.0
      %1709 = vmatpush.msra.mxu0 0.0
      %1710 = vmatpush.msra.mxu0 0.0
      %1711 = vmatpush.msra.mxu0 0.0
      %1712 = vmatpush.msra.mxu0 %v1703
      %1713 = vmatpush.msra.mxu0 %v1702
      %1714 = vmatpush.msra.mxu0 %v1701
      %1715 = vmatpush.msra.mxu0 %v1700
      %1716 = vmatpush.msra.mxu0 %v1699
      %1717 = vmatpush.msra.mxu0 %v1698
      %1718 = vmatpush.msra.mxu0 %v1697
      %1719 = vmatpush.msra.mxu0 %v1696
      %1720 = vmatmul.f32.gmra.mxu0 %v1673
      %v1721 = vpop.f32.mrf.mxu0
      %v1722 = vadd.f32 0.0, %v1721
      %1723 = vdwg.mxu0
      %1724 = vmatpush.msra.mxu0 0.0
      %1725 = vmatpush.msra.mxu0 0.0
      %1726 = vmatpush.msra.mxu0 0.0
      %1727 = vmatpush.msra.mxu0 0.0
      %1728 = vmatpush.msra.mxu0 0.0
      %1729 = vmatpush.msra.mxu0 0.0
      %1730 = vmatpush.msra.mxu0 0.0
      %1731 = vmatpush.msra.mxu0 0.0
      %1732 = vmatpush.msra.mxu0 0.0
      %1733 = vmatpush.msra.mxu0 0.0
      %1734 = vmatpush.msra.mxu0 0.0
      %1735 = vmatpush.msra.mxu0 0.0
      %1736 = vmatpush.msra.mxu0 0.0
      %1737 = vmatpush.msra.mxu0 0.0
      %1738 = vmatpush.msra.mxu0 0.0
      %1739 = vmatpush.msra.mxu0 %v1693
      %1740 = vmatmul.f32.gmra.mxu0 %v1493
      %v1741 = vpop.f32.mrf.mxu0
      %v1742 = vadd.f32 %v1722, %v1741
      %1743 = vdwg.mxu0
      %s1744 = scalar_lea.vmem %s11, 128
      %v1745 = vld [vmem:[%s1744] sm:$0xff]
      %v1746 = vld [vmem:[%s1744 + $0x8] sm:$0xff]
      %v1747 = vld [vmem:[%s1744 + $0x10] sm:$0xff]
      %v1748 = vld [vmem:[%s1744 + $0x18] sm:$0xff]
      %v1749 = vld [vmem:[%s1744 + $0x20] sm:$0xff]
      %v1750 = vld [vmem:[%s1744 + $0x28] sm:$0xff]
      %v1751 = vld [vmem:[%s1744 + $0x30] sm:$0xff]
      %v1752 = vld [vmem:[%s1744 + $0x38] sm:$0xff]
      %1753 = vmatpush.msra.mxu0 0.0
      %1754 = vmatpush.msra.mxu0 0.0
      %1755 = vmatpush.msra.mxu0 0.0
      %1756 = vmatpush.msra.mxu0 0.0
      %1757 = vmatpush.msra.mxu0 0.0
      %1758 = vmatpush.msra.mxu0 0.0
      %1759 = vmatpush.msra.mxu0 0.0
      %1760 = vmatpush.msra.mxu0 0.0
      %1761 = vmatpush.msra.mxu0 %v1752
      %1762 = vmatpush.msra.mxu0 %v1751
      %1763 = vmatpush.msra.mxu0 %v1750
      %1764 = vmatpush.msra.mxu0 %v1749
      %1765 = vmatpush.msra.mxu0 %v1748
      %1766 = vmatpush.msra.mxu0 %v1747
      %1767 = vmatpush.msra.mxu0 %v1746
      %1768 = vmatpush.msra.mxu0 %v1745
      %1769 = vmatmul.f32.gmra.mxu0 %v1673
      %v1770 = vpop.f32.mrf.mxu0
      %v1771 = vadd.f32 0.0, %v1770
      %1772 = vdwg.mxu0
      %1773 = vmatpush.msra.mxu0 0.0
      %1774 = vmatpush.msra.mxu0 0.0
      %1775 = vmatpush.msra.mxu0 0.0
      %1776 = vmatpush.msra.mxu0 0.0
      %1777 = vmatpush.msra.mxu0 0.0
      %1778 = vmatpush.msra.mxu0 0.0
      %1779 = vmatpush.msra.mxu0 0.0
      %1780 = vmatpush.msra.mxu0 0.0
      %1781 = vmatpush.msra.mxu0 0.0
      %1782 = vmatpush.msra.mxu0 0.0
      %1783 = vmatpush.msra.mxu0 0.0
      %1784 = vmatpush.msra.mxu0 0.0
      %1785 = vmatpush.msra.mxu0 0.0
      %1786 = vmatpush.msra.mxu0 0.0
      %1787 = vmatpush.msra.mxu0 0.0
      %1788 = vmatpush.msra.mxu0 %v1771
      %1789 = vmatmul.f32.gmra.mxu0 %v1544
      %v1790 = vpop.f32.mrf.mxu0
      %v1791 = vadd.f32 0.0, %v1790
      %1792 = vdwg.mxu0
      %v1793 = vadd.f32 %v1742, %v1791
      %v1795 = vperm.slane %v1663, 0
      %v1797 = vadd.f32 %v1793, %v1795
      %v1798 = vld [vmem:[%s14] sm:$0xff]
      %v1799 = vld [vmem:[%s14 + $0x8] sm:$0xff]
      %v1800 = vld [vmem:[%s14 + $0x10] sm:$0xff]
      %v1801 = vld [vmem:[%s14 + $0x18] sm:$0xff]
      %v1802 = vld [vmem:[%s14 + $0x20] sm:$0xff]
      %v1803 = vld [vmem:[%s14 + $0x28] sm:$0xff]
      %v1804 = vld [vmem:[%s14 + $0x30] sm:$0xff]
      %v1805 = vld [vmem:[%s14 + $0x38] sm:$0xff]
      %v1806 = vld [vmem:[%s14 + $0x40] sm:$0xff]
      %v1807 = vld [vmem:[%s14 + $0x48] sm:$0xff]
      %v1808 = vld [vmem:[%s14 + $0x50] sm:$0xff]
      %v1809 = vld [vmem:[%s14 + $0x58] sm:$0xff]
      %v1810 = vld [vmem:[%s14 + $0x60] sm:$0xff]
      %v1811 = vld [vmem:[%s14 + $0x68] sm:$0xff]
      %v1812 = vld [vmem:[%s14 + $0x70] sm:$0xff]
      %v1813 = vld [vmem:[%s14 + $0x78] sm:$0xff]
      %1814 = vmatpush.msra.mxu0 %v1813
      %1815 = vmatpush.msra.mxu0 %v1812
      %1816 = vmatpush.msra.mxu0 %v1811
      %1817 = vmatpush.msra.mxu0 %v1810
      %1818 = vmatpush.msra.mxu0 %v1809
      %1819 = vmatpush.msra.mxu0 %v1808
      %1820 = vmatpush.msra.mxu0 %v1807
      %1821 = vmatpush.msra.mxu0 %v1806
      %1822 = vmatpush.msra.mxu0 %v1805
      %1823 = vmatpush.msra.mxu0 %v1804
      %1824 = vmatpush.msra.mxu0 %v1803
      %1825 = vmatpush.msra.mxu0 %v1802
      %1826 = vmatpush.msra.mxu0 %v1801
      %1827 = vmatpush.msra.mxu0 %v1800
      %1828 = vmatpush.msra.mxu0 %v1799
      %1829 = vmatpush.msra.mxu0 %v1798
      %1830 = vmatmul.f32.gmra.mxu0 %v1797
      %v1831 = vpop.f32.mrf.mxu0
      %v1832 = vadd.f32 0.0, %v1831
      %1833 = vdwg.mxu0
      %v1834 = vrot.slane %v1832, 4
      %v1835 = vadd.f32 %v1832, %v1834
      %v1836 = vrot.slane %v1835, 2
      %v1837 = vadd.f32 %v1835, %v1836
      %v1838 = vrot.slane %v1837, 1
      %v1839 = vadd.f32 %v1837, %v1838
      %v1840 = vmul.f32 %v1839, %v1615
      %v1841 = vsub.f32 %v1797, %v1840
      %v1842 = vmul.f32 %v1841, %v1841
      %1843 = vmatpush.msra.mxu0 %v1813
      %1844 = vmatpush.msra.mxu0 %v1812
      %1845 = vmatpush.msra.mxu0 %v1811
      %1846 = vmatpush.msra.mxu0 %v1810
      %1847 = vmatpush.msra.mxu0 %v1809
      %1848 = vmatpush.msra.mxu0 %v1808
      %1849 = vmatpush.msra.mxu0 %v1807
      %1850 = vmatpush.msra.mxu0 %v1806
      %1851 = vmatpush.msra.mxu0 %v1805
      %1852 = vmatpush.msra.mxu0 %v1804
      %1853 = vmatpush.msra.mxu0 %v1803
      %1854 = vmatpush.msra.mxu0 %v1802
      %1855 = vmatpush.msra.mxu0 %v1801
      %1856 = vmatpush.msra.mxu0 %v1800
      %1857 = vmatpush.msra.mxu0 %v1799
      %1858 = vmatpush.msra.mxu0 %v1798
      %1859 = vmatmul.f32.gmra.mxu0 %v1842
      %v1860 = vpop.f32.mrf.mxu0
      %v1861 = vadd.f32 0.0, %v1860
      %1862 = vdwg.mxu0
      %v1863 = vrot.slane %v1861, 4
      %v1864 = vadd.f32 %v1861, %v1863
      %v1865 = vrot.slane %v1864, 2
      %v1866 = vadd.f32 %v1864, %v1865
      %v1867 = vrot.slane %v1866, 1
      %v1868 = vadd.f32 %v1866, %v1867
      %v1869 = vmul.f32 %v1868, %v1615
      %v1870 = vadd.f32 %v1869, 1e-05
      %v1871 = vrsqrt.pop %v1870
      %v1872 = vmul.f32 %v1871, %v1870
      %v1873 = vmul.f32 %v1872, %v1871
      %v1874 = vmul.f32 0.5, %v1873
      %v1875 = vsub.f32 1.5, %v1874
      %v1876 = vmul.f32 %v1871, %v1875
      %vm1877 = vweird.f32 %v1870
      %vm1878 = vweird.f32 %v1871
      %vm1879 = vmor %vm1877, %vm1878
      %v1880 = vsel %vm1879, %v1871, %v1876
      %v1881 = vmul.f32 %v1841, %v1880
      %v1882 = vmax.f32 %v1881, 0.0
      %v1883 = vld [vmem:[%s15] sm:$0xf]
      %v1884 = vld [vmem:[%s16] sm:$0xff]
      %v1885 = vld [vmem:[%s16 + $0x8] sm:$0xff]
      %v1886 = vld [vmem:[%s16 + $0x10] sm:$0xff]
      %v1887 = vld [vmem:[%s16 + $0x18] sm:$0xff]
      %v1888 = vld [vmem:[%s16 + $0x20] sm:$0xff]
      %v1889 = vld [vmem:[%s16 + $0x28] sm:$0xff]
      %v1890 = vld [vmem:[%s16 + $0x30] sm:$0xff]
      %v1891 = vld [vmem:[%s16 + $0x38] sm:$0xff]
      %v1892 = vld [vmem:[%s16 + $0x40] sm:$0xff]
      %v1893 = vld [vmem:[%s16 + $0x48] sm:$0xff]
      %v1894 = vld [vmem:[%s16 + $0x50] sm:$0xff]
      %v1895 = vld [vmem:[%s16 + $0x58] sm:$0xff]
      %v1896 = vld [vmem:[%s16 + $0x60] sm:$0xff]
      %v1897 = vld [vmem:[%s16 + $0x68] sm:$0xff]
      %v1898 = vld [vmem:[%s16 + $0x70] sm:$0xff]
      %v1899 = vld [vmem:[%s16 + $0x78] sm:$0xff]
      %v1901 = vsel %vm1492, %v1883, 0
      %1903 = vmatpush.msra.mxu0 0.0
      %1904 = vmatpush.msra.mxu0 0.0
      %1905 = vmatpush.msra.mxu0 0.0
      %1906 = vmatpush.msra.mxu0 0.0
      %1907 = vmatpush.msra.mxu0 0.0
      %1908 = vmatpush.msra.mxu0 0.0
      %1909 = vmatpush.msra.mxu0 0.0
      %1910 = vmatpush.msra.mxu0 0.0
      %1911 = vmatpush.msra.mxu0 0.0
      %1912 = vmatpush.msra.mxu0 0.0
      %1913 = vmatpush.msra.mxu0 0.0
      %1914 = vmatpush.msra.mxu0 0.0
      %1915 = vmatpush.msra.mxu0 0.0
      %1916 = vmatpush.msra.mxu0 0.0
      %1917 = vmatpush.msra.mxu0 0.0
      %1918 = vmatpush.msra.mxu0 %v1882
      %1919 = vmatmul.f32.gmra.mxu0 %v1901
      %v1920 = vpop.f32.mrf.mxu0
      %v1921 = vadd.f32 0.0, %v1920
      %1922 = vdwg.mxu0
      %1923 = vmatpush.msra.mxu0 %v1899
      %1924 = vmatpush.msra.mxu0 %v1898
      %1925 = vmatpush.msra.mxu0 %v1897
      %1926 = vmatpush.msra.mxu0 %v1896
      %1927 = vmatpush.msra.mxu0 %v1895
      %1928 = vmatpush.msra.mxu0 %v1894
      %1929 = vmatpush.msra.mxu0 %v1893
      %1930 = vmatpush.msra.mxu0 %v1892
      %1931 = vmatpush.msra.mxu0 %v1891
      %1932 = vmatpush.msra.mxu0 %v1890
      %1933 = vmatpush.msra.mxu0 %v1889
      %1934 = vmatpush.msra.mxu0 %v1888
      %1935 = vmatpush.msra.mxu0 %v1887
      %1936 = vmatpush.msra.mxu0 %v1886
      %1937 = vmatpush.msra.mxu0 %v1885
      %1938 = vmatpush.msra.mxu0 %v1884
      %1939 = vmatmul.f32.gmra.mxu0 %v1921
      %v1940 = vpop.f32.mrf.mxu0
      %v1941 = vadd.f32 0.0, %v1940
      %1942 = vdwg.mxu0
      %v1943 = vmax.f32 %v1941, 0.0
      %v1944 = vld [vmem:[%s17] sm:$0xff]
      %v1945 = vld [vmem:[%s17 + $0x8] sm:$0xff]
      %v1946 = vld [vmem:[%s17 + $0x10] sm:$0xff]
      %v1947 = vld [vmem:[%s17 + $0x18] sm:$0xff]
      %v1948 = vld [vmem:[%s17 + $0x20] sm:$0xff]
      %v1949 = vld [vmem:[%s17 + $0x28] sm:$0xff]
      %v1950 = vld [vmem:[%s17 + $0x30] sm:$0xff]
      %v1951 = vld [vmem:[%s17 + $0x38] sm:$0xff]
      %v1953 = vsel %vm830, %v1943, 0
      %1955 = vmatpush.msra.mxu0 0.0
      %1956 = vmatpush.msra.mxu0 0.0
      %1957 = vmatpush.msra.mxu0 0.0
      %1958 = vmatpush.msra.mxu0 0.0
      %1959 = vmatpush.msra.mxu0 0.0
      %1960 = vmatpush.msra.mxu0 0.0
      %1961 = vmatpush.msra.mxu0 0.0
      %1962 = vmatpush.msra.mxu0 0.0
      %1963 = vmatpush.msra.mxu0 %v1951
      %1964 = vmatpush.msra.mxu0 %v1950
      %1965 = vmatpush.msra.mxu0 %v1949
      %1966 = vmatpush.msra.mxu0 %v1948
      %1967 = vmatpush.msra.mxu0 %v1947
      %1968 = vmatpush.msra.mxu0 %v1946
      %1969 = vmatpush.msra.mxu0 %v1945
      %1970 = vmatpush.msra.mxu0 %v1944
      %1971 = vmatmul.f32.gmra.mxu0 %v1953
      %v1972 = vpop.f32.mrf.mxu0
      %v1973 = vadd.f32 0.0, %v1972
      %1974 = vdwg.mxu0
      %s1975 = scalar_lea.vmem %s17, 64
      %v1976 = vld [vmem:[%s1975] sm:$0xff]
      %v1977 = vld [vmem:[%s1975 + $0x8] sm:$0xff]
      %v1978 = vld [vmem:[%s1975 + $0x10] sm:$0xff]
      %v1979 = vld [vmem:[%s1975 + $0x18] sm:$0xff]
      %v1980 = vld [vmem:[%s1975 + $0x20] sm:$0xff]
      %v1981 = vld [vmem:[%s1975 + $0x28] sm:$0xff]
      %v1982 = vld [vmem:[%s1975 + $0x30] sm:$0xff]
      %v1983 = vld [vmem:[%s1975 + $0x38] sm:$0xff]
      %1984 = vmatpush.msra.mxu0 0.0
      %1985 = vmatpush.msra.mxu0 0.0
      %1986 = vmatpush.msra.mxu0 0.0
      %1987 = vmatpush.msra.mxu0 0.0
      %1988 = vmatpush.msra.mxu0 0.0
      %1989 = vmatpush.msra.mxu0 0.0
      %1990 = vmatpush.msra.mxu0 0.0
      %1991 = vmatpush.msra.mxu0 0.0
      %1992 = vmatpush.msra.mxu0 %v1983
      %1993 = vmatpush.msra.mxu0 %v1982
      %1994 = vmatpush.msra.mxu0 %v1981
      %1995 = vmatpush.msra.mxu0 %v1980
      %1996 = vmatpush.msra.mxu0 %v1979
      %1997 = vmatpush.msra.mxu0 %v1978
      %1998 = vmatpush.msra.mxu0 %v1977
      %1999 = vmatpush.msra.mxu0 %v1976
      %2000 = vmatmul.f32.gmra.mxu0 %v1953
      %v2001 = vpop.f32.mrf.mxu0
      %v2002 = vadd.f32 0.0, %v2001
      %2003 = vdwg.mxu0
      %vm2004 = vcmask 31744
      %v2005 = vsel %vm2004, %v869, 0
      %vm2007 = vcmask 1043456
      %v2009 = vsel %vm2007, %v1973, 0
      %2011 = vmatpush.msra.mxu0 0.0
      %2012 = vmatpush.msra.mxu0 0.0
      %2013 = vmatpush.msra.mxu0 0.0
      %2014 = vmatpush.msra.mxu0 0.0
      %2015 = vmatpush.msra.mxu0 0.0
      %2016 = vmatpush.msra.mxu0 0.0
      %2017 = vmatpush.msra.mxu0 0.0
      %2018 = vmatpush.msra.mxu0 0.0
      %2019 = vmatpush.msra.mxu0 0.0
      %2020 = vmatpush.msra.mxu0 0.0
      %2021 = vmatpush.msra.mxu0 0.0
      %2022 = vmatpush.msra.mxu0 0.0
      %2023 = vmatpush.msra.mxu0 0.0
      %2024 = vmatpush.msra.mxu0 0.0
      %2025 = vmatpush.msra.mxu0 0.0
      %2026 = vmatpush.msra.mxu0 %v2009
      %2027 = vmatmul.f32.gmra.mxu0 %v2005
      %v2028 = vpop.f32.mrf.mxu0
      %v2029 = vadd.f32 %v2002, %v2028
      %2030 = vdwg.mxu0
      %s2031 = scalar_lea.vmem %s17, 128
      %v2032 = vld [vmem:[%s2031] sm:$0xff]
      %v2033 = vld [vmem:[%s2031 + $0x8] sm:$0xff]
      %v2034 = vld [vmem:[%s2031 + $0x10] sm:$0xff]
      %v2035 = vld [vmem:[%s2031 + $0x18] sm:$0xff]
      %v2036 = vld [vmem:[%s2031 + $0x20] sm:$0xff]
      %v2037 = vld [vmem:[%s2031 + $0x28] sm:$0xff]
      %v2038 = vld [vmem:[%s2031 + $0x30] sm:$0xff]
      %v2039 = vld [vmem:[%s2031 + $0x38] sm:$0xff]
      %2040 = vmatpush.msra.mxu0 0.0
      %2041 = vmatpush.msra.mxu0 0.0
      %2042 = vmatpush.msra.mxu0 0.0
      %2043 = vmatpush.msra.mxu0 0.0
      %2044 = vmatpush.msra.mxu0 0.0
      %2045 = vmatpush.msra.mxu0 0.0
      %2046 = vmatpush.msra.mxu0 0.0
      %2047 = vmatpush.msra.mxu0 0.0
      %2048 = vmatpush.msra.mxu0 %v2039
      %2049 = vmatpush.msra.mxu0 %v2038
      %2050 = vmatpush.msra.mxu0 %v2037
      %2051 = vmatpush.msra.mxu0 %v2036
      %2052 = vmatpush.msra.mxu0 %v2035
      %2053 = vmatpush.msra.mxu0 %v2034
      %2054 = vmatpush.msra.mxu0 %v2033
      %2055 = vmatpush.msra.mxu0 %v2032
      %2056 = vmatmul.f32.gmra.mxu0 %v1953
      %v2057 = vpop.f32.mrf.mxu0
      %v2058 = vadd.f32 0.0, %v2057
      %2059 = vdwg.mxu0
      %v2060 = vsel %vm2004, %v969, 0
      %v2063 = vsel %vm2007, %v2058, 0
      %2065 = vmatpush.msra.mxu0 0.0
      %2066 = vmatpush.msra.mxu0 0.0
      %2067 = vmatpush.msra.mxu0 0.0
      %2068 = vmatpush.msra.mxu0 0.0
      %2069 = vmatpush.msra.mxu0 0.0
      %2070 = vmatpush.msra.mxu0 0.0
      %2071 = vmatpush.msra.mxu0 0.0
      %2072 = vmatpush.msra.mxu0 0.0
      %2073 = vmatpush.msra.mxu0 0.0
      %2074 = vmatpush.msra.mxu0 0.0
      %2075 = vmatpush.msra.mxu0 0.0
      %2076 = vmatpush.msra.mxu0 0.0
      %2077 = vmatpush.msra.mxu0 0.0
      %2078 = vmatpush.msra.mxu0 0.0
      %2079 = vmatpush.msra.mxu0 0.0
      %2080 = vmatpush.msra.mxu0 %v2063
      %2081 = vmatmul.f32.gmra.mxu0 %v2060
      %v2082 = vpop.f32.mrf.mxu0
      %v2083 = vadd.f32 0.0, %v2082
      %2084 = vdwg.mxu0
      %v2085 = vadd.f32 %v2029, %v2083
      %v2086 = vmax.f32 %v2085, 0.0
      %v2087 = vld [vmem:[%s18] sm:$0xff]
      %v2088 = vld [vmem:[%s18 + $0x8] sm:$0xff]
      %v2089 = vld [vmem:[%s18 + $0x10] sm:$0xff]
      %v2090 = vld [vmem:[%s18 + $0x18] sm:$0xff]
      %vm2091 = vcmask 261120
      %v2093 = vsel %vm2091, %v2086, 0
      %2095 = vmatpush.msra.mxu0 0.0
      %2096 = vmatpush.msra.mxu0 0.0
      %2097 = vmatpush.msra.mxu0 0.0
      %2098 = vmatpush.msra.mxu0 0.0
      %2099 = vmatpush.msra.mxu0 0.0
      %2100 = vmatpush.msra.mxu0 0.0
      %2101 = vmatpush.msra.mxu0 0.0
      %2102 = vmatpush.msra.mxu0 0.0
      %2103 = vmatpush.msra.mxu0 0.0
      %2104 = vmatpush.msra.mxu0 0.0
      %2105 = vmatpush.msra.mxu0 0.0
      %2106 = vmatpush.msra.mxu0 0.0
      %2107 = vmatpush.msra.mxu0 %v2090
      %2108 = vmatpush.msra.mxu0 %v2089
      %2109 = vmatpush.msra.mxu0 %v2088
      %2110 = vmatpush.msra.mxu0 %v2087
      %2111 = vmatmul.f32.gmra.mxu0 %v2093
      %v2112 = vpop.f32.mrf.mxu0
      %v2113 = vadd.f32 0.0, %v2112
      %2114 = vdwg.mxu0
      %v2115 = vadd.f32 %v1941, %v2113
      %v2116 = vmax.f32 %v2115, 0.0
      %s2117 = scalar_lea.vmem %s17, 192
      %v2118 = vld [vmem:[%s2117] sm:$0xff]
      %v2119 = vld [vmem:[%s2117 + $0x8] sm:$0xff]
      %v2120 = vld [vmem:[%s2117 + $0x10] sm:$0xff]
      %v2121 = vld [vmem:[%s2117 + $0x18] sm:$0xff]
      %v2122 = vld [vmem:[%s2117 + $0x20] sm:$0xff]
      %v2123 = vld [vmem:[%s2117 + $0x28] sm:$0xff]
      %v2124 = vld [vmem:[%s2117 + $0x30] sm:$0xff]
      %v2125 = vld [vmem:[%s2117 + $0x38] sm:$0xff]
      %v2127 = vsel %vm830, %v2116, 0
      %2129 = vmatpush.msra.mxu0 0.0
      %2130 = vmatpush.msra.mxu0 0.0
      %2131 = vmatpush.msra.mxu0 0.0
      %2132 = vmatpush.msra.mxu0 0.0
      %2133 = vmatpush.msra.mxu0 0.0
      %2134 = vmatpush.msra.mxu0 0.0
      %2135 = vmatpush.msra.mxu0 0.0
      %2136 = vmatpush.msra.mxu0 0.0
      %2137 = vmatpush.msra.mxu0 %v2125
      %2138 = vmatpush.msra.mxu0 %v2124
      %2139 = vmatpush.msra.mxu0 %v2123
      %2140 = vmatpush.msra.mxu0 %v2122
      %2141 = vmatpush.msra.mxu0 %v2121
      %2142 = vmatpush.msra.mxu0 %v2120
      %2143 = vmatpush.msra.mxu0 %v2119
      %2144 = vmatpush.msra.mxu0 %v2118
      %2145 = vmatmul.f32.gmra.mxu0 %v2127
      %v2146 = vpop.f32.mrf.mxu0
      %v2147 = vadd.f32 0.0, %v2146
      %2148 = vdwg.mxu0
      %s2149 = scalar_lea.vmem %s17, 256
      %v2150 = vld [vmem:[%s2149] sm:$0xff]
      %v2151 = vld [vmem:[%s2149 + $0x8] sm:$0xff]
      %v2152 = vld [vmem:[%s2149 + $0x10] sm:$0xff]
      %v2153 = vld [vmem:[%s2149 + $0x18] sm:$0xff]
      %v2154 = vld [vmem:[%s2149 + $0x20] sm:$0xff]
      %v2155 = vld [vmem:[%s2149 + $0x28] sm:$0xff]
      %v2156 = vld [vmem:[%s2149 + $0x30] sm:$0xff]
      %v2157 = vld [vmem:[%s2149 + $0x38] sm:$0xff]
      %2158 = vmatpush.msra.mxu0 0.0
      %2159 = vmatpush.msra.mxu0 0.0
      %2160 = vmatpush.msra.mxu0 0.0
      %2161 = vmatpush.msra.mxu0 0.0
      %2162 = vmatpush.msra.mxu0 0.0
      %2163 = vmatpush.msra.mxu0 0.0
      %2164 = vmatpush.msra.mxu0 0.0
      %2165 = vmatpush.msra.mxu0 0.0
      %2166 = vmatpush.msra.mxu0 %v2157
      %2167 = vmatpush.msra.mxu0 %v2156
      %2168 = vmatpush.msra.mxu0 %v2155
      %2169 = vmatpush.msra.mxu0 %v2154
      %2170 = vmatpush.msra.mxu0 %v2153
      %2171 = vmatpush.msra.mxu0 %v2152
      %2172 = vmatpush.msra.mxu0 %v2151
      %2173 = vmatpush.msra.mxu0 %v2150
      %2174 = vmatmul.f32.gmra.mxu0 %v2127
      %v2175 = vpop.f32.mrf.mxu0
      %v2176 = vadd.f32 0.0, %v2175
      %2177 = vdwg.mxu0
      %v2179 = vsel %vm2007, %v2147, 0
      %2181 = vmatpush.msra.mxu0 0.0
      %2182 = vmatpush.msra.mxu0 0.0
      %2183 = vmatpush.msra.mxu0 0.0
      %2184 = vmatpush.msra.mxu0 0.0
      %2185 = vmatpush.msra.mxu0 0.0
      %2186 = vmatpush.msra.mxu0 0.0
      %2187 = vmatpush.msra.mxu0 0.0
      %2188 = vmatpush.msra.mxu0 0.0
      %2189 = vmatpush.msra.mxu0 0.0
      %2190 = vmatpush.msra.mxu0 0.0
      %2191 = vmatpush.msra.mxu0 0.0
      %2192 = vmatpush.msra.mxu0 0.0
      %2193 = vmatpush.msra.mxu0 0.0
      %2194 = vmatpush.msra.mxu0 0.0
      %2195 = vmatpush.msra.mxu0 0.0
      %2196 = vmatpush.msra.mxu0 %v2179
      %2197 = vmatmul.f32.gmra.mxu0 %v2005
      %v2198 = vpop.f32.mrf.mxu0
      %v2199 = vadd.f32 %v2176, %v2198
      %2200 = vdwg.mxu0
      %s2201 = scalar_lea.vmem %s17, 320
      %v2202 = vld [vmem:[%s2201] sm:$0xff]
      %v2203 = vld [vmem:[%s2201 + $0x8] sm:$0xff]
      %v2204 = vld [vmem:[%s2201 + $0x10] sm:$0xff]
      %v2205 = vld [vmem:[%s2201 + $0x18] sm:$0xff]
      %v2206 = vld [vmem:[%s2201 + $0x20] sm:$0xff]
      %v2207 = vld [vmem:[%s2201 + $0x28] sm:$0xff]
      %v2208 = vld [vmem:[%s2201 + $0x30] sm:$0xff]
      %v2209 = vld [vmem:[%s2201 + $0x38] sm:$0xff]
      %2210 = vmatpush.msra.mxu0 0.0
      %2211 = vmatpush.msra.mxu0 0.0
      %2212 = vmatpush.msra.mxu0 0.0
      %2213 = vmatpush.msra.mxu0 0.0
      %2214 = vmatpush.msra.mxu0 0.0
      %2215 = vmatpush.msra.mxu0 0.0
      %2216 = vmatpush.msra.mxu0 0.0
      %2217 = vmatpush.msra.mxu0 0.0
      %2218 = vmatpush.msra.mxu0 %v2209
      %2219 = vmatpush.msra.mxu0 %v2208
      %2220 = vmatpush.msra.mxu0 %v2207
      %2221 = vmatpush.msra.mxu0 %v2206
      %2222 = vmatpush.msra.mxu0 %v2205
      %2223 = vmatpush.msra.mxu0 %v2204
      %2224 = vmatpush.msra.mxu0 %v2203
      %2225 = vmatpush.msra.mxu0 %v2202
      %2226 = vmatmul.f32.gmra.mxu0 %v2127
      %v2227 = vpop.f32.mrf.mxu0
      %v2228 = vadd.f32 0.0, %v2227
      %2229 = vdwg.mxu0
      %v2231 = vsel %vm2007, %v2228, 0
      %2233 = vmatpush.msra.mxu0 0.0
      %2234 = vmatpush.msra.mxu0 0.0
      %2235 = vmatpush.msra.mxu0 0.0
      %2236 = vmatpush.msra.mxu0 0.0
      %2237 = vmatpush.msra.mxu0 0.0
      %2238 = vmatpush.msra.mxu0 0.0
      %2239 = vmatpush.msra.mxu0 0.0
      %2240 = vmatpush.msra.mxu0 0.0
      %2241 = vmatpush.msra.mxu0 0.0
      %2242 = vmatpush.msra.mxu0 0.0
      %2243 = vmatpush.msra.mxu0 0.0
      %2244 = vmatpush.msra.mxu0 0.0
      %2245 = vmatpush.msra.mxu0 0.0
      %2246 = vmatpush.msra.mxu0 0.0
      %2247 = vmatpush.msra.mxu0 0.0
      %2248 = vmatpush.msra.mxu0 %v2231
      %2249 = vmatmul.f32.gmra.mxu0 %v2060
      %v2250 = vpop.f32.mrf.mxu0
      %v2251 = vadd.f32 0.0, %v2250
      %2252 = vdwg.mxu0
      %v2253 = vadd.f32 %v2199, %v2251
      %v2254 = vmax.f32 %v2253, 0.0
      %s2255 = scalar_lea.vmem %s18, 32
      %v2256 = vld [vmem:[%s2255] sm:$0xff]
      %v2257 = vld [vmem:[%s2255 + $0x8] sm:$0xff]
      %v2258 = vld [vmem:[%s2255 + $0x10] sm:$0xff]
      %v2259 = vld [vmem:[%s2255 + $0x18] sm:$0xff]
      %v2261 = vsel %vm2091, %v2254, 0
      %2263 = vmatpush.msra.mxu0 0.0
      %2264 = vmatpush.msra.mxu0 0.0
      %2265 = vmatpush.msra.mxu0 0.0
      %2266 = vmatpush.msra.mxu0 0.0
      %2267 = vmatpush.msra.mxu0 0.0
      %2268 = vmatpush.msra.mxu0 0.0
      %2269 = vmatpush.msra.mxu0 0.0
      %2270 = vmatpush.msra.mxu0 0.0
      %2271 = vmatpush.msra.mxu0 0.0
      %2272 = vmatpush.msra.mxu0 0.0
      %2273 = vmatpush.msra.mxu0 0.0
      %2274 = vmatpush.msra.mxu0 0.0
      %2275 = vmatpush.msra.mxu0 %v2259
      %2276 = vmatpush.msra.mxu0 %v2258
      %2277 = vmatpush.msra.mxu0 %v2257
      %2278 = vmatpush.msra.mxu0 %v2256
      %2279 = vmatmul.f32.gmra.mxu0 %v2261
      %v2280 = vpop.f32.mrf.mxu0
      %v2281 = vadd.f32 0.0, %v2280
      %2282 = vdwg.mxu0
      %v2283 = vadd.f32 %v2115, %v2281
      %v2284 = vmax.f32 %v2283, 0.0
      %v2285 = vld [vmem:[%s20] sm:$0x1]
      %v2286 = vld [vmem:[%s19] sm:$0xff]
      %v2287 = vld [vmem:[%s19 + $0x8] sm:$0xff]
      %v2288 = vld [vmem:[%s19 + $0x10] sm:$0xff]
      %v2289 = vld [vmem:[%s19 + $0x18] sm:$0xff]
      %v2290 = vld [vmem:[%s19 + $0x20] sm:$0xff]
      %v2291 = vld [vmem:[%s19 + $0x28] sm:$0xff]
      %v2292 = vld [vmem:[%s19 + $0x30] sm:$0xff]
      %v2293 = vld [vmem:[%s19 + $0x38] sm:$0xff]
      %s2294 = scalar_lea.vmem %s19, 64
      %v2295 = vld [vmem:[%s2294] sm:$0xff]
      %v2296 = vld [vmem:[%s2294 + $0x8] sm:$0xff]
      %v2297 = vld [vmem:[%s2294 + $0x10] sm:$0xff]
      %v2298 = vld [vmem:[%s2294 + $0x18] sm:$0xff]
      %v2299 = vld [vmem:[%s2294 + $0x20] sm:$0xff]
      %v2300 = vld [vmem:[%s2294 + $0x28] sm:$0xff]
      %v2301 = vld [vmem:[%s2294 + $0x30] sm:$0xff]
      %v2302 = vld [vmem:[%s2294 + $0x38] sm:$0xff]
      %v2304 = vsel %vm830, %v1941, 0
      %2306 = vmatpush.msra.mxu0 0.0
      %2307 = vmatpush.msra.mxu0 0.0
      %2308 = vmatpush.msra.mxu0 0.0
      %2309 = vmatpush.msra.mxu0 0.0
      %2310 = vmatpush.msra.mxu0 0.0
      %2311 = vmatpush.msra.mxu0 0.0
      %2312 = vmatpush.msra.mxu0 0.0
      %2313 = vmatpush.msra.mxu0 0.0
      %2314 = vmatpush.msra.mxu0 %v2302
      %2315 = vmatpush.msra.mxu0 %v2301
      %2316 = vmatpush.msra.mxu0 %v2300
      %2317 = vmatpush.msra.mxu0 %v2299
      %2318 = vmatpush.msra.mxu0 %v2298
      %2319 = vmatpush.msra.mxu0 %v2297
      %2320 = vmatpush.msra.mxu0 %v2296
      %2321 = vmatpush.msra.mxu0 %v2295
      %2322 = vmatmul.f32.gmra.mxu0 %v2304
      %v2323 = vpop.f32.mrf.mxu0
      %v2324 = vadd.f32 0.0, %v2323
      %2325 = vdwg.mxu0
      %v2327 = vsel %vm830, %v2284, 0
      %2329 = vmatpush.msra.mxu0 0.0
      %2330 = vmatpush.msra.mxu0 0.0
      %2331 = vmatpush.msra.mxu0 0.0
      %2332 = vmatpush.msra.mxu0 0.0
      %2333 = vmatpush.msra.mxu0 0.0
      %2334 = vmatpush.msra.mxu0 0.0
      %2335 = vmatpush.msra.mxu0 0.0
      %2336 = vmatpush.msra.mxu0 0.0
      %2337 = vmatpush.msra.mxu0 %v2293
      %2338 = vmatpush.msra.mxu0 %v2292
      %2339 = vmatpush.msra.mxu0 %v2291
      %2340 = vmatpush.msra.mxu0 %v2290
      %2341 = vmatpush.msra.mxu0 %v2289
      %2342 = vmatpush.msra.mxu0 %v2288
      %2343 = vmatpush.msra.mxu0 %v2287
      %2344 = vmatpush.msra.mxu0 %v2286
      %2345 = vmatmul.f32.gmra.mxu0 %v2327
      %v2346 = vpop.f32.mrf.mxu0
      %v2347 = vadd.f32 %v2324, %v2346
      %2348 = vdwg.mxu0
      %s2349 = scalar_lea.vmem %s19, 128
      %v2350 = vld [vmem:[%s2349] sm:$0xff]
      %v2351 = vld [vmem:[%s2349 + $0x8] sm:$0xff]
      %v2352 = vld [vmem:[%s2349 + $0x10] sm:$0xff]
      %v2353 = vld [vmem:[%s2349 + $0x18] sm:$0xff]
      %v2354 = vld [vmem:[%s2349 + $0x20] sm:$0xff]
      %v2355 = vld [vmem:[%s2349 + $0x28] sm:$0xff]
      %v2356 = vld [vmem:[%s2349 + $0x30] sm:$0xff]
      %v2357 = vld [vmem:[%s2349 + $0x38] sm:$0xff]
      %s2358 = scalar_lea.vmem %s19, 192
      %v2359 = vld [vmem:[%s2358] sm:$0xff]
      %v2360 = vld [vmem:[%s2358 + $0x8] sm:$0xff]
      %v2361 = vld [vmem:[%s2358 + $0x10] sm:$0xff]
      %v2362 = vld [vmem:[%s2358 + $0x18] sm:$0xff]
      %v2363 = vld [vmem:[%s2358 + $0x20] sm:$0xff]
      %v2364 = vld [vmem:[%s2358 + $0x28] sm:$0xff]
      %v2365 = vld [vmem:[%s2358 + $0x30] sm:$0xff]
      %v2366 = vld [vmem:[%s2358 + $0x38] sm:$0xff]
      %2367 = vmatpush.msra.mxu0 0.0
      %2368 = vmatpush.msra.mxu0 0.0
      %2369 = vmatpush.msra.mxu0 0.0
      %2370 = vmatpush.msra.mxu0 0.0
      %2371 = vmatpush.msra.mxu0 0.0
      %2372 = vmatpush.msra.mxu0 0.0
      %2373 = vmatpush.msra.mxu0 0.0
      %2374 = vmatpush.msra.mxu0 0.0
      %2375 = vmatpush.msra.mxu0 %v2366
      %2376 = vmatpush.msra.mxu0 %v2365
      %2377 = vmatpush.msra.mxu0 %v2364
      %2378 = vmatpush.msra.mxu0 %v2363
      %2379 = vmatpush.msra.mxu0 %v2362
      %2380 = vmatpush.msra.mxu0 %v2361
      %2381 = vmatpush.msra.mxu0 %v2360
      %2382 = vmatpush.msra.mxu0 %v2359
      %2383 = vmatmul.f32.gmra.mxu0 %v2304
      %v2384 = vpop.f32.mrf.mxu0
      %v2385 = vadd.f32 0.0, %v2384
      %2386 = vdwg.mxu0
      %2387 = vmatpush.msra.mxu0 0.0
      %2388 = vmatpush.msra.mxu0 0.0
      %2389 = vmatpush.msra.mxu0 0.0
      %2390 = vmatpush.msra.mxu0 0.0
      %2391 = vmatpush.msra.mxu0 0.0
      %2392 = vmatpush.msra.mxu0 0.0
      %2393 = vmatpush.msra.mxu0 0.0
      %2394 = vmatpush.msra.mxu0 0.0
      %2395 = vmatpush.msra.mxu0 %v2357
      %2396 = vmatpush.msra.mxu0 %v2356
      %2397 = vmatpush.msra.mxu0 %v2355
      %2398 = vmatpush.msra.mxu0 %v2354
      %2399 = vmatpush.msra.mxu0 %v2353
      %2400 = vmatpush.msra.mxu0 %v2352
      %2401 = vmatpush.msra.mxu0 %v2351
      %2402 = vmatpush.msra.mxu0 %v2350
      %2403 = vmatmul.f32.gmra.mxu0 %v2327
      %v2404 = vpop.f32.mrf.mxu0
      %v2405 = vadd.f32 %v2385, %v2404
      %2406 = vdwg.mxu0
      %v2408 = vsel %vm2007, %v2347, 0
      %2410 = vmatpush.msra.mxu0 0.0
      %2411 = vmatpush.msra.mxu0 0.0
      %2412 = vmatpush.msra.mxu0 0.0
      %2413 = vmatpush.msra.mxu0 0.0
      %2414 = vmatpush.msra.mxu0 0.0
      %2415 = vmatpush.msra.mxu0 0.0
      %2416 = vmatpush.msra.mxu0 0.0
      %2417 = vmatpush.msra.mxu0 0.0
      %2418 = vmatpush.msra.mxu0 0.0
      %2419 = vmatpush.msra.mxu0 0.0
      %2420 = vmatpush.msra.mxu0 0.0
      %2421 = vmatpush.msra.mxu0 0.0
      %2422 = vmatpush.msra.mxu0 0.0
      %2423 = vmatpush.msra.mxu0 0.0
      %2424 = vmatpush.msra.mxu0 0.0
      %2425 = vmatpush.msra.mxu0 %v2408
      %2426 = vmatmul.f32.gmra.mxu0 %v2005
      %v2427 = vpop.f32.mrf.mxu0
      %v2428 = vadd.f32 %v2405, %v2427
      %2429 = vdwg.mxu0
      %v2431 = vperm.slane %v2285, 0
      %v2433 = vadd.f32 %v2428, %v2431
      %s2434 = scalar_lea.vmem %s19, 256
      %v2435 = vld [vmem:[%s2434] sm:$0xff]
      %v2436 = vld [vmem:[%s2434 + $0x8] sm:$0xff]
      %v2437 = vld [vmem:[%s2434 + $0x10] sm:$0xff]
      %v2438 = vld [vmem:[%s2434 + $0x18] sm:$0xff]
      %v2439 = vld [vmem:[%s2434 + $0x20] sm:$0xff]
      %v2440 = vld [vmem:[%s2434 + $0x28] sm:$0xff]
      %v2441 = vld [vmem:[%s2434 + $0x30] sm:$0xff]
      %v2442 = vld [vmem:[%s2434 + $0x38] sm:$0xff]
      %s2443 = scalar_lea.vmem %s19, 320
      %v2444 = vld [vmem:[%s2443] sm:$0xff]
      %v2445 = vld [vmem:[%s2443 + $0x8] sm:$0xff]
      %v2446 = vld [vmem:[%s2443 + $0x10] sm:$0xff]
      %v2447 = vld [vmem:[%s2443 + $0x18] sm:$0xff]
      %v2448 = vld [vmem:[%s2443 + $0x20] sm:$0xff]
      %v2449 = vld [vmem:[%s2443 + $0x28] sm:$0xff]
      %v2450 = vld [vmem:[%s2443 + $0x30] sm:$0xff]
      %v2451 = vld [vmem:[%s2443 + $0x38] sm:$0xff]
      %2452 = vmatpush.msra.mxu0 0.0
      %2453 = vmatpush.msra.mxu0 0.0
      %2454 = vmatpush.msra.mxu0 0.0
      %2455 = vmatpush.msra.mxu0 0.0
      %2456 = vmatpush.msra.mxu0 0.0
      %2457 = vmatpush.msra.mxu0 0.0
      %2458 = vmatpush.msra.mxu0 0.0
      %2459 = vmatpush.msra.mxu0 0.0
      %2460 = vmatpush.msra.mxu0 %v2451
      %2461 = vmatpush.msra.mxu0 %v2450
      %2462 = vmatpush.msra.mxu0 %v2449
      %2463 = vmatpush.msra.mxu0 %v2448
      %2464 = vmatpush.msra.mxu0 %v2447
      %2465 = vmatpush.msra.mxu0 %v2446
      %2466 = vmatpush.msra.mxu0 %v2445
      %2467 = vmatpush.msra.mxu0 %v2444
      %2468 = vmatmul.f32.gmra.mxu0 %v2304
      %v2469 = vpop.f32.mrf.mxu0
      %v2470 = vadd.f32 0.0, %v2469
      %2471 = vdwg.mxu0
      %2472 = vmatpush.msra.mxu0 0.0
      %2473 = vmatpush.msra.mxu0 0.0
      %2474 = vmatpush.msra.mxu0 0.0
      %2475 = vmatpush.msra.mxu0 0.0
      %2476 = vmatpush.msra.mxu0 0.0
      %2477 = vmatpush.msra.mxu0 0.0
      %2478 = vmatpush.msra.mxu0 0.0
      %2479 = vmatpush.msra.mxu0 0.0
      %2480 = vmatpush.msra.mxu0 %v2442
      %2481 = vmatpush.msra.mxu0 %v2441
      %2482 = vmatpush.msra.mxu0 %v2440
      %2483 = vmatpush.msra.mxu0 %v2439
      %2484 = vmatpush.msra.mxu0 %v2438
      %2485 = vmatpush.msra.mxu0 %v2437
      %2486 = vmatpush.msra.mxu0 %v2436
      %2487 = vmatpush.msra.mxu0 %v2435
      %2488 = vmatmul.f32.gmra.mxu0 %v2327
      %v2489 = vpop.f32.mrf.mxu0
      %v2490 = vadd.f32 %v2470, %v2489
      %2491 = vdwg.mxu0
      %s2492 = scalar_lea.vmem %s19, 384
      %v2493 = vld [vmem:[%s2492] sm:$0xff]
      %v2494 = vld [vmem:[%s2492 + $0x8] sm:$0xff]
      %v2495 = vld [vmem:[%s2492 + $0x10] sm:$0xff]
      %v2496 = vld [vmem:[%s2492 + $0x18] sm:$0xff]
      %v2497 = vld [vmem:[%s2492 + $0x20] sm:$0xff]
      %v2498 = vld [vmem:[%s2492 + $0x28] sm:$0xff]
      %v2499 = vld [vmem:[%s2492 + $0x30] sm:$0xff]
      %v2500 = vld [vmem:[%s2492 + $0x38] sm:$0xff]
      %s2501 = scalar_lea.vmem %s19, 448
      %v2502 = vld [vmem:[%s2501] sm:$0xff]
      %v2503 = vld [vmem:[%s2501 + $0x8] sm:$0xff]
      %v2504 = vld [vmem:[%s2501 + $0x10] sm:$0xff]
      %v2505 = vld [vmem:[%s2501 + $0x18] sm:$0xff]
      %v2506 = vld [vmem:[%s2501 + $0x20] sm:$0xff]
      %v2507 = vld [vmem:[%s2501 + $0x28] sm:$0xff]
      %v2508 = vld [vmem:[%s2501 + $0x30] sm:$0xff]
      %v2509 = vld [vmem:[%s2501 + $0x38] sm:$0xff]
      %2510 = vmatpush.msra.mxu0 0.0
      %2511 = vmatpush.msra.mxu0 0.0
      %2512 = vmatpush.msra.mxu0 0.0
      %2513 = vmatpush.msra.mxu0 0.0
      %2514 = vmatpush.msra.mxu0 0.0
      %2515 = vmatpush.msra.mxu0 0.0
      %2516 = vmatpush.msra.mxu0 0.0
      %2517 = vmatpush.msra.mxu0 0.0
      %2518 = vmatpush.msra.mxu0 %v2509
      %2519 = vmatpush.msra.mxu0 %v2508
      %2520 = vmatpush.msra.mxu0 %v2507
      %2521 = vmatpush.msra.mxu0 %v2506
      %2522 = vmatpush.msra.mxu0 %v2505
      %2523 = vmatpush.msra.mxu0 %v2504
      %2524 = vmatpush.msra.mxu0 %v2503
      %2525 = vmatpush.msra.mxu0 %v2502
      %2526 = vmatmul.f32.gmra.mxu0 %v2304
      %v2527 = vpop.f32.mrf.mxu0
      %v2528 = vadd.f32 0.0, %v2527
      %2529 = vdwg.mxu0
      %2530 = vmatpush.msra.mxu0 0.0
      %2531 = vmatpush.msra.mxu0 0.0
      %2532 = vmatpush.msra.mxu0 0.0
      %2533 = vmatpush.msra.mxu0 0.0
      %2534 = vmatpush.msra.mxu0 0.0
      %2535 = vmatpush.msra.mxu0 0.0
      %2536 = vmatpush.msra.mxu0 0.0
      %2537 = vmatpush.msra.mxu0 0.0
      %2538 = vmatpush.msra.mxu0 %v2500
      %2539 = vmatpush.msra.mxu0 %v2499
      %2540 = vmatpush.msra.mxu0 %v2498
      %2541 = vmatpush.msra.mxu0 %v2497
      %2542 = vmatpush.msra.mxu0 %v2496
      %2543 = vmatpush.msra.mxu0 %v2495
      %2544 = vmatpush.msra.mxu0 %v2494
      %2545 = vmatpush.msra.mxu0 %v2493
      %2546 = vmatmul.f32.gmra.mxu0 %v2327
      %v2547 = vpop.f32.mrf.mxu0
      %v2548 = vadd.f32 %v2528, %v2547
      %2549 = vdwg.mxu0
      %v2551 = vsel %vm2007, %v2490, 0
      %2553 = vmatpush.msra.mxu0 0.0
      %2554 = vmatpush.msra.mxu0 0.0
      %2555 = vmatpush.msra.mxu0 0.0
      %2556 = vmatpush.msra.mxu0 0.0
      %2557 = vmatpush.msra.mxu0 0.0
      %2558 = vmatpush.msra.mxu0 0.0
      %2559 = vmatpush.msra.mxu0 0.0
      %2560 = vmatpush.msra.mxu0 0.0
      %2561 = vmatpush.msra.mxu0 0.0
      %2562 = vmatpush.msra.mxu0 0.0
      %2563 = vmatpush.msra.mxu0 0.0
      %2564 = vmatpush.msra.mxu0 0.0
      %2565 = vmatpush.msra.mxu0 0.0
      %2566 = vmatpush.msra.mxu0 0.0
      %2567 = vmatpush.msra.mxu0 0.0
      %2568 = vmatpush.msra.mxu0 %v2551
      %2569 = vmatmul.f32.gmra.mxu0 %v2005
      %v2570 = vpop.f32.mrf.mxu0
      %v2571 = vadd.f32 %v2548, %v2570
      %2572 = vdwg.mxu0
      %v2573 = vadd.f32 %v2571, %v2431
      %s2574 = scalar_lea.vmem %s19, 512
      %v2575 = vld [vmem:[%s2574] sm:$0xff]
      %v2576 = vld [vmem:[%s2574 + $0x8] sm:$0xff]
      %v2577 = vld [vmem:[%s2574 + $0x10] sm:$0xff]
      %v2578 = vld [vmem:[%s2574 + $0x18] sm:$0xff]
      %v2579 = vld [vmem:[%s2574 + $0x20] sm:$0xff]
      %v2580 = vld [vmem:[%s2574 + $0x28] sm:$0xff]
      %v2581 = vld [vmem:[%s2574 + $0x30] sm:$0xff]
      %v2582 = vld [vmem:[%s2574 + $0x38] sm:$0xff]
      %s2583 = scalar_lea.vmem %s19, 576
      %v2584 = vld [vmem:[%s2583] sm:$0xff]
      %v2585 = vld [vmem:[%s2583 + $0x8] sm:$0xff]
      %v2586 = vld [vmem:[%s2583 + $0x10] sm:$0xff]
      %v2587 = vld [vmem:[%s2583 + $0x18] sm:$0xff]
      %v2588 = vld [vmem:[%s2583 + $0x20] sm:$0xff]
      %v2589 = vld [vmem:[%s2583 + $0x28] sm:$0xff]
      %v2590 = vld [vmem:[%s2583 + $0x30] sm:$0xff]
      %v2591 = vld [vmem:[%s2583 + $0x38] sm:$0xff]
      %2592 = vmatpush.msra.mxu0 0.0
      %2593 = vmatpush.msra.mxu0 0.0
      %2594 = vmatpush.msra.mxu0 0.0
      %2595 = vmatpush.msra.mxu0 0.0
      %2596 = vmatpush.msra.mxu0 0.0
      %2597 = vmatpush.msra.mxu0 0.0
      %2598 = vmatpush.msra.mxu0 0.0
      %2599 = vmatpush.msra.mxu0 0.0
      %2600 = vmatpush.msra.mxu0 %v2591
      %2601 = vmatpush.msra.mxu0 %v2590
      %2602 = vmatpush.msra.mxu0 %v2589
      %2603 = vmatpush.msra.mxu0 %v2588
      %2604 = vmatpush.msra.mxu0 %v2587
      %2605 = vmatpush.msra.mxu0 %v2586
      %2606 = vmatpush.msra.mxu0 %v2585
      %2607 = vmatpush.msra.mxu0 %v2584
      %2608 = vmatmul.f32.gmra.mxu0 %v2304
      %v2609 = vpop.f32.mrf.mxu0
      %v2610 = vadd.f32 0.0, %v2609
      %2611 = vdwg.mxu0
      %2612 = vmatpush.msra.mxu0 0.0
      %2613 = vmatpush.msra.mxu0 0.0
      %2614 = vmatpush.msra.mxu0 0.0
      %2615 = vmatpush.msra.mxu0 0.0
      %2616 = vmatpush.msra.mxu0 0.0
      %2617 = vmatpush.msra.mxu0 0.0
      %2618 = vmatpush.msra.mxu0 0.0
      %2619 = vmatpush.msra.mxu0 0.0
      %2620 = vmatpush.msra.mxu0 %v2582
      %2621 = vmatpush.msra.mxu0 %v2581
      %2622 = vmatpush.msra.mxu0 %v2580
      %2623 = vmatpush.msra.mxu0 %v2579
      %2624 = vmatpush.msra.mxu0 %v2578
      %2625 = vmatpush.msra.mxu0 %v2577
      %2626 = vmatpush.msra.mxu0 %v2576
      %2627 = vmatpush.msra.mxu0 %v2575
      %2628 = vmatmul.f32.gmra.mxu0 %v2327
      %v2629 = vpop.f32.mrf.mxu0
      %v2630 = vadd.f32 %v2610, %v2629
      %2631 = vdwg.mxu0
      %s2632 = scalar_lea.vmem %s19, 640
      %v2633 = vld [vmem:[%s2632] sm:$0xff]
      %v2634 = vld [vmem:[%s2632 + $0x8] sm:$0xff]
      %v2635 = vld [vmem:[%s2632 + $0x10] sm:$0xff]
      %v2636 = vld [vmem:[%s2632 + $0x18] sm:$0xff]
      %v2637 = vld [vmem:[%s2632 + $0x20] sm:$0xff]
      %v2638 = vld [vmem:[%s2632 + $0x28] sm:$0xff]
      %v2639 = vld [vmem:[%s2632 + $0x30] sm:$0xff]
      %v2640 = vld [vmem:[%s2632 + $0x38] sm:$0xff]
      %s2641 = scalar_lea.vmem %s19, 704
      %v2642 = vld [vmem:[%s2641] sm:$0xff]
      %v2643 = vld [vmem:[%s2641 + $0x8] sm:$0xff]
      %v2644 = vld [vmem:[%s2641 + $0x10] sm:$0xff]
      %v2645 = vld [vmem:[%s2641 + $0x18] sm:$0xff]
      %v2646 = vld [vmem:[%s2641 + $0x20] sm:$0xff]
      %v2647 = vld [vmem:[%s2641 + $0x28] sm:$0xff]
      %v2648 = vld [vmem:[%s2641 + $0x30] sm:$0xff]
      %v2649 = vld [vmem:[%s2641 + $0x38] sm:$0xff]
      %2650 = vmatpush.msra.mxu0 0.0
      %2651 = vmatpush.msra.mxu0 0.0
      %2652 = vmatpush.msra.mxu0 0.0
      %2653 = vmatpush.msra.mxu0 0.0
      %2654 = vmatpush.msra.mxu0 0.0
      %2655 = vmatpush.msra.mxu0 0.0
      %2656 = vmatpush.msra.mxu0 0.0
      %2657 = vmatpush.msra.mxu0 0.0
      %2658 = vmatpush.msra.mxu0 %v2649
      %2659 = vmatpush.msra.mxu0 %v2648
      %2660 = vmatpush.msra.mxu0 %v2647
      %2661 = vmatpush.msra.mxu0 %v2646
      %2662 = vmatpush.msra.mxu0 %v2645
      %2663 = vmatpush.msra.mxu0 %v2644
      %2664 = vmatpush.msra.mxu0 %v2643
      %2665 = vmatpush.msra.mxu0 %v2642
      %2666 = vmatmul.f32.gmra.mxu0 %v2304
      %v2667 = vpop.f32.mrf.mxu0
      %v2668 = vadd.f32 0.0, %v2667
      %2669 = vdwg.mxu0
      %2670 = vmatpush.msra.mxu0 0.0
      %2671 = vmatpush.msra.mxu0 0.0
      %2672 = vmatpush.msra.mxu0 0.0
      %2673 = vmatpush.msra.mxu0 0.0
      %2674 = vmatpush.msra.mxu0 0.0
      %2675 = vmatpush.msra.mxu0 0.0
      %2676 = vmatpush.msra.mxu0 0.0
      %2677 = vmatpush.msra.mxu0 0.0
      %2678 = vmatpush.msra.mxu0 %v2640
      %2679 = vmatpush.msra.mxu0 %v2639
      %2680 = vmatpush.msra.mxu0 %v2638
      %2681 = vmatpush.msra.mxu0 %v2637
      %2682 = vmatpush.msra.mxu0 %v2636
      %2683 = vmatpush.msra.mxu0 %v2635
      %2684 = vmatpush.msra.mxu0 %v2634
      %2685 = vmatpush.msra.mxu0 %v2633
      %2686 = vmatmul.f32.gmra.mxu0 %v2327
      %v2687 = vpop.f32.mrf.mxu0
      %v2688 = vadd.f32 %v2668, %v2687
      %2689 = vdwg.mxu0
      %v2691 = vsel %vm2007, %v2688, 0
      %2693 = vmatpush.msra.mxu0 0.0
      %2694 = vmatpush.msra.mxu0 0.0
      %2695 = vmatpush.msra.mxu0 0.0
      %2696 = vmatpush.msra.mxu0 0.0
      %2697 = vmatpush.msra.mxu0 0.0
      %2698 = vmatpush.msra.mxu0 0.0
      %2699 = vmatpush.msra.mxu0 0.0
      %2700 = vmatpush.msra.mxu0 0.0
      %2701 = vmatpush.msra.mxu0 0.0
      %2702 = vmatpush.msra.mxu0 0.0
      %2703 = vmatpush.msra.mxu0 0.0
      %2704 = vmatpush.msra.mxu0 0.0
      %2705 = vmatpush.msra.mxu0 0.0
      %2706 = vmatpush.msra.mxu0 0.0
      %2707 = vmatpush.msra.mxu0 0.0
      %2708 = vmatpush.msra.mxu0 %v2691
      %2709 = vmatmul.f32.gmra.mxu0 %v2060
      %v2710 = vpop.f32.mrf.mxu0
      %v2711 = vadd.f32 0.0, %v2710
      %2712 = vdwg.mxu0
      %v2713 = vadd.f32 %v2630, %v2711
      %v2714 = vadd.f32 %v2713, %v2431
      %s2715 = scalar_lea.vmem %s19, 768
      %v2716 = vld [vmem:[%s2715] sm:$0xff]
      %v2717 = vld [vmem:[%s2715 + $0x8] sm:$0xff]
      %v2718 = vld [vmem:[%s2715 + $0x10] sm:$0xff]
      %v2719 = vld [vmem:[%s2715 + $0x18] sm:$0xff]
      %v2720 = vld [vmem:[%s2715 + $0x20] sm:$0xff]
      %v2721 = vld [vmem:[%s2715 + $0x28] sm:$0xff]
      %v2722 = vld [vmem:[%s2715 + $0x30] sm:$0xff]
      %v2723 = vld [vmem:[%s2715 + $0x38] sm:$0xff]
      %s2724 = scalar_lea.vmem %s19, 832
      %v2725 = vld [vmem:[%s2724] sm:$0xff]
      %v2726 = vld [vmem:[%s2724 + $0x8] sm:$0xff]
      %v2727 = vld [vmem:[%s2724 + $0x10] sm:$0xff]
      %v2728 = vld [vmem:[%s2724 + $0x18] sm:$0xff]
      %v2729 = vld [vmem:[%s2724 + $0x20] sm:$0xff]
      %v2730 = vld [vmem:[%s2724 + $0x28] sm:$0xff]
      %v2731 = vld [vmem:[%s2724 + $0x30] sm:$0xff]
      %v2732 = vld [vmem:[%s2724 + $0x38] sm:$0xff]
      %2733 = vmatpush.msra.mxu0 0.0
      %2734 = vmatpush.msra.mxu0 0.0
      %2735 = vmatpush.msra.mxu0 0.0
      %2736 = vmatpush.msra.mxu0 0.0
      %2737 = vmatpush.msra.mxu0 0.0
      %2738 = vmatpush.msra.mxu0 0.0
      %2739 = vmatpush.msra.mxu0 0.0
      %2740 = vmatpush.msra.mxu0 0.0
      %2741 = vmatpush.msra.mxu0 %v2732
      %2742 = vmatpush.msra.mxu0 %v2731
      %2743 = vmatpush.msra.mxu0 %v2730
      %2744 = vmatpush.msra.mxu0 %v2729
      %2745 = vmatpush.msra.mxu0 %v2728
      %2746 = vmatpush.msra.mxu0 %v2727
      %2747 = vmatpush.msra.mxu0 %v2726
      %2748 = vmatpush.msra.mxu0 %v2725
      %2749 = vmatmul.f32.gmra.mxu0 %v2304
      %v2750 = vpop.f32.mrf.mxu0
      %v2751 = vadd.f32 0.0, %v2750
      %2752 = vdwg.mxu0
      %2753 = vmatpush.msra.mxu0 0.0
      %2754 = vmatpush.msra.mxu0 0.0
      %2755 = vmatpush.msra.mxu0 0.0
      %2756 = vmatpush.msra.mxu0 0.0
      %2757 = vmatpush.msra.mxu0 0.0
      %2758 = vmatpush.msra.mxu0 0.0
      %2759 = vmatpush.msra.mxu0 0.0
      %2760 = vmatpush.msra.mxu0 0.0
      %2761 = vmatpush.msra.mxu0 %v2723
      %2762 = vmatpush.msra.mxu0 %v2722
      %2763 = vmatpush.msra.mxu0 %v2721
      %2764 = vmatpush.msra.mxu0 %v2720
      %2765 = vmatpush.msra.mxu0 %v2719
      %2766 = vmatpush.msra.mxu0 %v2718
      %2767 = vmatpush.msra.mxu0 %v2717
      %2768 = vmatpush.msra.mxu0 %v2716
      %2769 = vmatmul.f32.gmra.mxu0 %v2327
      %v2770 = vpop.f32.mrf.mxu0
      %v2771 = vadd.f32 %v2751, %v2770
      %2772 = vdwg.mxu0
      %s2773 = scalar_lea.vmem %s19, 896
      %v2774 = vld [vmem:[%s2773] sm:$0xff]
      %v2775 = vld [vmem:[%s2773 + $0x8] sm:$0xff]
      %v2776 = vld [vmem:[%s2773 + $0x10] sm:$0xff]
      %v2777 = vld [vmem:[%s2773 + $0x18] sm:$0xff]
      %v2778 = vld [vmem:[%s2773 + $0x20] sm:$0xff]
      %v2779 = vld [vmem:[%s2773 + $0x28] sm:$0xff]
      %v2780 = vld [vmem:[%s2773 + $0x30] sm:$0xff]
      %v2781 = vld [vmem:[%s2773 + $0x38] sm:$0xff]
      %s2782 = scalar_lea.vmem %s19, 960
      %v2783 = vld [vmem:[%s2782] sm:$0xff]
      %v2784 = vld [vmem:[%s2782 + $0x8] sm:$0xff]
      %v2785 = vld [vmem:[%s2782 + $0x10] sm:$0xff]
      %v2786 = vld [vmem:[%s2782 + $0x18] sm:$0xff]
      %v2787 = vld [vmem:[%s2782 + $0x20] sm:$0xff]
      %v2788 = vld [vmem:[%s2782 + $0x28] sm:$0xff]
      %v2789 = vld [vmem:[%s2782 + $0x30] sm:$0xff]
      %v2790 = vld [vmem:[%s2782 + $0x38] sm:$0xff]
      %2791 = vmatpush.msra.mxu0 0.0
      %2792 = vmatpush.msra.mxu0 0.0
      %2793 = vmatpush.msra.mxu0 0.0
      %2794 = vmatpush.msra.mxu0 0.0
      %2795 = vmatpush.msra.mxu0 0.0
      %2796 = vmatpush.msra.mxu0 0.0
      %2797 = vmatpush.msra.mxu0 0.0
      %2798 = vmatpush.msra.mxu0 0.0
      %2799 = vmatpush.msra.mxu0 %v2790
      %2800 = vmatpush.msra.mxu0 %v2789
      %2801 = vmatpush.msra.mxu0 %v2788
      %2802 = vmatpush.msra.mxu0 %v2787
      %2803 = vmatpush.msra.mxu0 %v2786
      %2804 = vmatpush.msra.mxu0 %v2785
      %2805 = vmatpush.msra.mxu0 %v2784
      %2806 = vmatpush.msra.mxu0 %v2783
      %2807 = vmatmul.f32.gmra.mxu0 %v2304
      %v2808 = vpop.f32.mrf.mxu0
      %v2809 = vadd.f32 0.0, %v2808
      %2810 = vdwg.mxu0
      %2811 = vmatpush.msra.mxu0 0.0
      %2812 = vmatpush.msra.mxu0 0.0
      %2813 = vmatpush.msra.mxu0 0.0
      %2814 = vmatpush.msra.mxu0 0.0
      %2815 = vmatpush.msra.mxu0 0.0
      %2816 = vmatpush.msra.mxu0 0.0
      %2817 = vmatpush.msra.mxu0 0.0
      %2818 = vmatpush.msra.mxu0 0.0
      %2819 = vmatpush.msra.mxu0 %v2781
      %2820 = vmatpush.msra.mxu0 %v2780
      %2821 = vmatpush.msra.mxu0 %v2779
      %2822 = vmatpush.msra.mxu0 %v2778
      %2823 = vmatpush.msra.mxu0 %v2777
      %2824 = vmatpush.msra.mxu0 %v2776
      %2825 = vmatpush.msra.mxu0 %v2775
      %2826 = vmatpush.msra.mxu0 %v2774
      %2827 = vmatmul.f32.gmra.mxu0 %v2327
      %v2828 = vpop.f32.mrf.mxu0
      %v2829 = vadd.f32 %v2809, %v2828
      %2830 = vdwg.mxu0
      %v2832 = vsel %vm2007, %v2829, 0
      %2834 = vmatpush.msra.mxu0 0.0
      %2835 = vmatpush.msra.mxu0 0.0
      %2836 = vmatpush.msra.mxu0 0.0
      %2837 = vmatpush.msra.mxu0 0.0
      %2838 = vmatpush.msra.mxu0 0.0
      %2839 = vmatpush.msra.mxu0 0.0
      %2840 = vmatpush.msra.mxu0 0.0
      %2841 = vmatpush.msra.mxu0 0.0
      %2842 = vmatpush.msra.mxu0 0.0
      %2843 = vmatpush.msra.mxu0 0.0
      %2844 = vmatpush.msra.mxu0 0.0
      %2845 = vmatpush.msra.mxu0 0.0
      %2846 = vmatpush.msra.mxu0 0.0
      %2847 = vmatpush.msra.mxu0 0.0
      %2848 = vmatpush.msra.mxu0 0.0
      %2849 = vmatpush.msra.mxu0 %v2832
      %2850 = vmatmul.f32.gmra.mxu0 %v2060
      %v2851 = vpop.f32.mrf.mxu0
      %v2852 = vadd.f32 0.0, %v2851
      %2853 = vdwg.mxu0
      %v2854 = vadd.f32 %v2771, %v2852
      %v2855 = vadd.f32 %v2854, %v2431
      %v2856 = vld [vmem:[%s21] sm:$0xff]
      %v2857 = vld [vmem:[%s21 + $0x8] sm:$0xff]
      %v2858 = vld [vmem:[%s21 + $0x10] sm:$0xff]
      %v2859 = vld [vmem:[%s21 + $0x18] sm:$0xff]
      %s2860 = scalar_lea.vmem %s21, 32
      %v2861 = vld [vmem:[%s2860] sm:$0xff]
      %v2862 = vld [vmem:[%s2860 + $0x8] sm:$0xff]
      %v2863 = vld [vmem:[%s2860 + $0x10] sm:$0xff]
      %v2864 = vld [vmem:[%s2860 + $0x18] sm:$0xff]
      %v2866 = vsel %vm2091, %v2573, 0
      %2868 = vmatpush.msra.mxu0 0.0
      %2869 = vmatpush.msra.mxu0 0.0
      %2870 = vmatpush.msra.mxu0 0.0
      %2871 = vmatpush.msra.mxu0 0.0
      %2872 = vmatpush.msra.mxu0 0.0
      %2873 = vmatpush.msra.mxu0 0.0
      %2874 = vmatpush.msra.mxu0 0.0
      %2875 = vmatpush.msra.mxu0 0.0
      %2876 = vmatpush.msra.mxu0 0.0
      %2877 = vmatpush.msra.mxu0 0.0
      %2878 = vmatpush.msra.mxu0 0.0
      %2879 = vmatpush.msra.mxu0 0.0
      %2880 = vmatpush.msra.mxu0 %v2864
      %2881 = vmatpush.msra.mxu0 %v2863
      %2882 = vmatpush.msra.mxu0 %v2862
      %2883 = vmatpush.msra.mxu0 %v2861
      %2884 = vmatmul.f32.gmra.mxu0 %v2866
      %v2885 = vpop.f32.mrf.mxu0
      %v2886 = vadd.f32 0.0, %v2885
      %2887 = vdwg.mxu0
      %v2889 = vsel %vm2091, %v2433, 0
      %2891 = vmatpush.msra.mxu0 0.0
      %2892 = vmatpush.msra.mxu0 0.0
      %2893 = vmatpush.msra.mxu0 0.0
      %2894 = vmatpush.msra.mxu0 0.0
      %2895 = vmatpush.msra.mxu0 0.0
      %2896 = vmatpush.msra.mxu0 0.0
      %2897 = vmatpush.msra.mxu0 0.0
      %2898 = vmatpush.msra.mxu0 0.0
      %2899 = vmatpush.msra.mxu0 0.0
      %2900 = vmatpush.msra.mxu0 0.0
      %2901 = vmatpush.msra.mxu0 0.0
      %2902 = vmatpush.msra.mxu0 0.0
      %2903 = vmatpush.msra.mxu0 %v2859
      %2904 = vmatpush.msra.mxu0 %v2858
      %2905 = vmatpush.msra.mxu0 %v2857
      %2906 = vmatpush.msra.mxu0 %v2856
      %2907 = vmatmul.f32.gmra.mxu0 %v2889
      %v2908 = vpop.f32.mrf.mxu0
      %v2909 = vadd.f32 %v2886, %v2908
      %2910 = vdwg.mxu0
      %v2912 = vsel %vm2091, %v2855, 0
      %2914 = vmatpush.msra.mxu0 0.0
      %2915 = vmatpush.msra.mxu0 0.0
      %2916 = vmatpush.msra.mxu0 0.0
      %2917 = vmatpush.msra.mxu0 0.0
      %2918 = vmatpush.msra.mxu0 0.0
      %2919 = vmatpush.msra.mxu0 0.0
      %2920 = vmatpush.msra.mxu0 0.0
      %2921 = vmatpush.msra.mxu0 0.0
      %2922 = vmatpush.msra.mxu0 0.0
      %2923 = vmatpush.msra.mxu0 0.0
      %2924 = vmatpush.msra.mxu0 0.0
      %2925 = vmatpush.msra.mxu0 0.0
      %2926 = vmatpush.msra.mxu0 %v2864
      %2927 = vmatpush.msra.mxu0 %v2863
      %2928 = vmatpush.msra.mxu0 %v2862
      %2929 = vmatpush.msra.mxu0 %v2861
      %2930 = vmatmul.f32.gmra.mxu0 %v2912
      %v2931 = vpop.f32.mrf.mxu0
      %v2932 = vadd.f32 0.0, %v2931
      %2933 = vdwg.mxu0
      %v2935 = vsel %vm2091, %v2714, 0
      %2937 = vmatpush.msra.mxu0 0.0
      %2938 = vmatpush.msra.mxu0 0.0
      %2939 = vmatpush.msra.mxu0 0.0
      %2940 = vmatpush.msra.mxu0 0.0
      %2941 = vmatpush.msra.mxu0 0.0
      %2942 = vmatpush.msra.mxu0 0.0
      %2943 = vmatpush.msra.mxu0 0.0
      %2944 = vmatpush.msra.mxu0 0.0
      %2945 = vmatpush.msra.mxu0 0.0
      %2946 = vmatpush.msra.mxu0 0.0
      %2947 = vmatpush.msra.mxu0 0.0
      %2948 = vmatpush.msra.mxu0 0.0
      %2949 = vmatpush.msra.mxu0 %v2859
      %2950 = vmatpush.msra.mxu0 %v2858
      %2951 = vmatpush.msra.mxu0 %v2857
      %2952 = vmatpush.msra.mxu0 %v2856
      %2953 = vmatmul.f32.gmra.mxu0 %v2935
      %v2954 = vpop.f32.mrf.mxu0
      %v2955 = vadd.f32 %v2932, %v2954
      %2956 = vdwg.mxu0
      %v2957 = vld [vmem:[%s22] sm:$0xff]
      %s2958 = scalar_lea.vmem %s22, 8
      %v2959 = vld [vmem:[%s2958] sm:$0xff]
      %v2961 = vsel %vm2004, %v2959, 0
      %v2964 = vsel %vm2007, %v2955, 0
      %2966 = vmatpush.msra.mxu0 0.0
      %2967 = vmatpush.msra.mxu0 0.0
      %2968 = vmatpush.msra.mxu0 0.0
      %2969 = vmatpush.msra.mxu0 0.0
      %2970 = vmatpush.msra.mxu0 0.0
      %2971 = vmatpush.msra.mxu0 0.0
      %2972 = vmatpush.msra.mxu0 0.0
      %2973 = vmatpush.msra.mxu0 0.0
      %2974 = vmatpush.msra.mxu0 0.0
      %2975 = vmatpush.msra.mxu0 0.0
      %2976 = vmatpush.msra.mxu0 0.0
      %2977 = vmatpush.msra.mxu0 0.0
      %2978 = vmatpush.msra.mxu0 0.0
      %2979 = vmatpush.msra.mxu0 0.0
      %2980 = vmatpush.msra.mxu0 0.0
      %2981 = vmatpush.msra.mxu0 %v2964
      %2982 = vmatmul.f32.gmra.mxu0 %v2961
      %v2983 = vpop.f32.mrf.mxu0
      %v2984 = vadd.f32 0.0, %v2983
      %2985 = vdwg.mxu0
      %v2987 = vsel %vm2004, %v2957, 0
      %v2990 = vsel %vm2007, %v2909, 0
      %2992 = vmatpush.msra.mxu0 0.0
      %2993 = vmatpush.msra.mxu0 0.0
      %2994 = vmatpush.msra.mxu0 0.0
      %2995 = vmatpush.msra.mxu0 0.0
      %2996 = vmatpush.msra.mxu0 0.0
      %2997 = vmatpush.msra.mxu0 0.0
      %2998 = vmatpush.msra.mxu0 0.0
      %2999 = vmatpush.msra.mxu0 0.0
      %3000 = vmatpush.msra.mxu0 0.0
      %3001 = vmatpush.msra.mxu0 0.0
      %3002 = vmatpush.msra.mxu0 0.0
      %3003 = vmatpush.msra.mxu0 0.0
      %3004 = vmatpush.msra.mxu0 0.0
      %3005 = vmatpush.msra.mxu0 0.0
      %3006 = vmatpush.msra.mxu0 0.0
      %3007 = vmatpush.msra.mxu0 %v2990
      %3008 = vmatmul.f32.gmra.mxu0 %v2987
      %v3009 = vpop.f32.mrf.mxu0
      %v3010 = vadd.f32 %v2984, %v3009
      %3011 = vdwg.mxu0
      %v3012 = vmax.f32 %v3010, 0.0
      %v3013 = vld [vmem:[%s24] sm:$0x1]
      %v3014 = vld [vmem:[%s23] sm:$0xff]
      %v3015 = vld [vmem:[%s23 + $0x8] sm:$0xff]
      %v3016 = vld [vmem:[%s23 + $0x10] sm:$0xff]
      %v3017 = vld [vmem:[%s23 + $0x18] sm:$0xff]
      %v3018 = vld [vmem:[%s23 + $0x20] sm:$0xff]
      %v3019 = vld [vmem:[%s23 + $0x28] sm:$0xff]
      %v3020 = vld [vmem:[%s23 + $0x30] sm:$0xff]
      %v3021 = vld [vmem:[%s23 + $0x38] sm:$0xff]
      %s3022 = scalar_lea.vmem %s23, 64
      %v3023 = vld [vmem:[%s3022] sm:$0xff]
      %v3024 = vld [vmem:[%s3022 + $0x8] sm:$0xff]
      %v3025 = vld [vmem:[%s3022 + $0x10] sm:$0xff]
      %v3026 = vld [vmem:[%s3022 + $0x18] sm:$0xff]
      %v3027 = vld [vmem:[%s3022 + $0x20] sm:$0xff]
      %v3028 = vld [vmem:[%s3022 + $0x28] sm:$0xff]
      %v3029 = vld [vmem:[%s3022 + $0x30] sm:$0xff]
      %v3030 = vld [vmem:[%s3022 + $0x38] sm:$0xff]
      %3031 = vmatpush.msra.mxu0 0.0
      %3032 = vmatpush.msra.mxu0 0.0
      %3033 = vmatpush.msra.mxu0 0.0
      %3034 = vmatpush.msra.mxu0 0.0
      %3035 = vmatpush.msra.mxu0 0.0
      %3036 = vmatpush.msra.mxu0 0.0
      %3037 = vmatpush.msra.mxu0 0.0
      %3038 = vmatpush.msra.mxu0 0.0
      %3039 = vmatpush.msra.mxu0 %v3030
      %3040 = vmatpush.msra.mxu0 %v3029
      %3041 = vmatpush.msra.mxu0 %v3028
      %3042 = vmatpush.msra.mxu0 %v3027
      %3043 = vmatpush.msra.mxu0 %v3026
      %3044 = vmatpush.msra.mxu0 %v3025
      %3045 = vmatpush.msra.mxu0 %v3024
      %3046 = vmatpush.msra.mxu0 %v3023
      %3047 = vmatmul.f32.gmra.mxu0 %v1441
      %v3048 = vpop.f32.mrf.mxu0
      %v3049 = vadd.f32 0.0, %v3048
      %3050 = vdwg.mxu0
      %v3052 = vsel %vm830, %v3012, 0
      %3054 = vmatpush.msra.mxu0 0.0
      %3055 = vmatpush.msra.mxu0 0.0
      %3056 = vmatpush.msra.mxu0 0.0
      %3057 = vmatpush.msra.mxu0 0.0
      %3058 = vmatpush.msra.mxu0 0.0
      %3059 = vmatpush.msra.mxu0 0.0
      %3060 = vmatpush.msra.mxu0 0.0
      %3061 = vmatpush.msra.mxu0 0.0
      %3062 = vmatpush.msra.mxu0 %v3021
      %3063 = vmatpush.msra.mxu0 %v3020
      %3064 = vmatpush.msra.mxu0 %v3019
      %3065 = vmatpush.msra.mxu0 %v3018
      %3066 = vmatpush.msra.mxu0 %v3017
      %3067 = vmatpush.msra.mxu0 %v3016
      %3068 = vmatpush.msra.mxu0 %v3015
      %3069 = vmatpush.msra.mxu0 %v3014
      %3070 = vmatmul.f32.gmra.mxu0 %v3052
      %v3071 = vpop.f32.mrf.mxu0
      %v3072 = vadd.f32 %v3049, %v3071
      %3073 = vdwg.mxu0
      %s3074 = scalar_lea.vmem %s23, 128
      %v3075 = vld [vmem:[%s3074] sm:$0xff]
      %v3076 = vld [vmem:[%s3074 + $0x8] sm:$0xff]
      %v3077 = vld [vmem:[%s3074 + $0x10] sm:$0xff]
      %v3078 = vld [vmem:[%s3074 + $0x18] sm:$0xff]
      %v3079 = vld [vmem:[%s3074 + $0x20] sm:$0xff]
      %v3080 = vld [vmem:[%s3074 + $0x28] sm:$0xff]
      %v3081 = vld [vmem:[%s3074 + $0x30] sm:$0xff]
      %v3082 = vld [vmem:[%s3074 + $0x38] sm:$0xff]
      %s3083 = scalar_lea.vmem %s23, 192
      %v3084 = vld [vmem:[%s3083] sm:$0xff]
      %v3085 = vld [vmem:[%s3083 + $0x8] sm:$0xff]
      %v3086 = vld [vmem:[%s3083 + $0x10] sm:$0xff]
      %v3087 = vld [vmem:[%s3083 + $0x18] sm:$0xff]
      %v3088 = vld [vmem:[%s3083 + $0x20] sm:$0xff]
      %v3089 = vld [vmem:[%s3083 + $0x28] sm:$0xff]
      %v3090 = vld [vmem:[%s3083 + $0x30] sm:$0xff]
      %v3091 = vld [vmem:[%s3083 + $0x38] sm:$0xff]
      %3092 = vmatpush.msra.mxu0 0.0
      %3093 = vmatpush.msra.mxu0 0.0
      %3094 = vmatpush.msra.mxu0 0.0
      %3095 = vmatpush.msra.mxu0 0.0
      %3096 = vmatpush.msra.mxu0 0.0
      %3097 = vmatpush.msra.mxu0 0.0
      %3098 = vmatpush.msra.mxu0 0.0
      %3099 = vmatpush.msra.mxu0 0.0
      %3100 = vmatpush.msra.mxu0 %v3091
      %3101 = vmatpush.msra.mxu0 %v3090
      %3102 = vmatpush.msra.mxu0 %v3089
      %3103 = vmatpush.msra.mxu0 %v3088
      %3104 = vmatpush.msra.mxu0 %v3087
      %3105 = vmatpush.msra.mxu0 %v3086
      %3106 = vmatpush.msra.mxu0 %v3085
      %3107 = vmatpush.msra.mxu0 %v3084
      %3108 = vmatmul.f32.gmra.mxu0 %v1441
      %v3109 = vpop.f32.mrf.mxu0
      %v3110 = vadd.f32 0.0, %v3109
      %3111 = vdwg.mxu0
      %3112 = vmatpush.msra.mxu0 0.0
      %3113 = vmatpush.msra.mxu0 0.0
      %3114 = vmatpush.msra.mxu0 0.0
      %3115 = vmatpush.msra.mxu0 0.0
      %3116 = vmatpush.msra.mxu0 0.0
      %3117 = vmatpush.msra.mxu0 0.0
      %3118 = vmatpush.msra.mxu0 0.0
      %3119 = vmatpush.msra.mxu0 0.0
      %3120 = vmatpush.msra.mxu0 %v3082
      %3121 = vmatpush.msra.mxu0 %v3081
      %3122 = vmatpush.msra.mxu0 %v3080
      %3123 = vmatpush.msra.mxu0 %v3079
      %3124 = vmatpush.msra.mxu0 %v3078
      %3125 = vmatpush.msra.mxu0 %v3077
      %3126 = vmatpush.msra.mxu0 %v3076
      %3127 = vmatpush.msra.mxu0 %v3075
      %3128 = vmatmul.f32.gmra.mxu0 %v3052
      %v3129 = vpop.f32.mrf.mxu0
      %v3130 = vadd.f32 %v3110, %v3129
      %3131 = vdwg.mxu0
      %3132 = vmatpush.msra.mxu0 0.0
      %3133 = vmatpush.msra.mxu0 0.0
      %3134 = vmatpush.msra.mxu0 0.0
      %3135 = vmatpush.msra.mxu0 0.0
      %3136 = vmatpush.msra.mxu0 0.0
      %3137 = vmatpush.msra.mxu0 0.0
      %3138 = vmatpush.msra.mxu0 0.0
      %3139 = vmatpush.msra.mxu0 0.0
      %3140 = vmatpush.msra.mxu0 0.0
      %3141 = vmatpush.msra.mxu0 0.0
      %3142 = vmatpush.msra.mxu0 0.0
      %3143 = vmatpush.msra.mxu0 0.0
      %3144 = vmatpush.msra.mxu0 0.0
      %3145 = vmatpush.msra.mxu0 0.0
      %3146 = vmatpush.msra.mxu0 0.0
      %3147 = vmatpush.msra.mxu0 %v3072
      %3148 = vmatmul.f32.gmra.mxu0 %v1493
      %v3149 = vpop.f32.mrf.mxu0
      %v3150 = vadd.f32 %v3130, %v3149
      %3151 = vdwg.mxu0
      %v3153 = vperm.slane %v3013, 0
      %v3155 = vadd.f32 %v3150, %v3153
      %s3156 = scalar_lea.vmem %s23, 256
      %v3157 = vld [vmem:[%s3156] sm:$0xff]
      %v3158 = vld [vmem:[%s3156 + $0x8] sm:$0xff]
      %v3159 = vld [vmem:[%s3156 + $0x10] sm:$0xff]
      %v3160 = vld [vmem:[%s3156 + $0x18] sm:$0xff]
      %v3161 = vld [vmem:[%s3156 + $0x20] sm:$0xff]
      %v3162 = vld [vmem:[%s3156 + $0x28] sm:$0xff]
      %v3163 = vld [vmem:[%s3156 + $0x30] sm:$0xff]
      %v3164 = vld [vmem:[%s3156 + $0x38] sm:$0xff]
      %s3165 = scalar_lea.vmem %s23, 320
      %v3166 = vld [vmem:[%s3165] sm:$0xff]
      %v3167 = vld [vmem:[%s3165 + $0x8] sm:$0xff]
      %v3168 = vld [vmem:[%s3165 + $0x10] sm:$0xff]
      %v3169 = vld [vmem:[%s3165 + $0x18] sm:$0xff]
      %v3170 = vld [vmem:[%s3165 + $0x20] sm:$0xff]
      %v3171 = vld [vmem:[%s3165 + $0x28] sm:$0xff]
      %v3172 = vld [vmem:[%s3165 + $0x30] sm:$0xff]
      %v3173 = vld [vmem:[%s3165 + $0x38] sm:$0xff]
      %3174 = vmatpush.msra.mxu0 0.0
      %3175 = vmatpush.msra.mxu0 0.0
      %3176 = vmatpush.msra.mxu0 0.0
      %3177 = vmatpush.msra.mxu0 0.0
      %3178 = vmatpush.msra.mxu0 0.0
      %3179 = vmatpush.msra.mxu0 0.0
      %3180 = vmatpush.msra.mxu0 0.0
      %3181 = vmatpush.msra.mxu0 0.0
      %3182 = vmatpush.msra.mxu0 %v3173
      %3183 = vmatpush.msra.mxu0 %v3172
      %3184 = vmatpush.msra.mxu0 %v3171
      %3185 = vmatpush.msra.mxu0 %v3170
      %3186 = vmatpush.msra.mxu0 %v3169
      %3187 = vmatpush.msra.mxu0 %v3168
      %3188 = vmatpush.msra.mxu0 %v3167
      %3189 = vmatpush.msra.mxu0 %v3166
      %3190 = vmatmul.f32.gmra.mxu0 %v1441
      %v3191 = vpop.f32.mrf.mxu0
      %v3192 = vadd.f32 0.0, %v3191
      %3193 = vdwg.mxu0
      %3194 = vmatpush.msra.mxu0 0.0
      %3195 = vmatpush.msra.mxu0 0.0
      %3196 = vmatpush.msra.mxu0 0.0
      %3197 = vmatpush.msra.mxu0 0.0
      %3198 = vmatpush.msra.mxu0 0.0
      %3199 = vmatpush.msra.mxu0 0.0
      %3200 = vmatpush.msra.mxu0 0.0
      %3201 = vmatpush.msra.mxu0 0.0
      %3202 = vmatpush.msra.mxu0 %v3164
      %3203 = vmatpush.msra.mxu0 %v3163
      %3204 = vmatpush.msra.mxu0 %v3162
      %3205 = vmatpush.msra.mxu0 %v3161
      %3206 = vmatpush.msra.mxu0 %v3160
      %3207 = vmatpush.msra.mxu0 %v3159
      %3208 = vmatpush.msra.mxu0 %v3158
      %3209 = vmatpush.msra.mxu0 %v3157
      %3210 = vmatmul.f32.gmra.mxu0 %v3052
      %v3211 = vpop.f32.mrf.mxu0
      %v3212 = vadd.f32 %v3192, %v3211
      %3213 = vdwg.mxu0
      %s3214 = scalar_lea.vmem %s23, 384
      %v3215 = vld [vmem:[%s3214] sm:$0xff]
      %v3216 = vld [vmem:[%s3214 + $0x8] sm:$0xff]
      %v3217 = vld [vmem:[%s3214 + $0x10] sm:$0xff]
      %v3218 = vld [vmem:[%s3214 + $0x18] sm:$0xff]
      %v3219 = vld [vmem:[%s3214 + $0x20] sm:$0xff]
      %v3220 = vld [vmem:[%s3214 + $0x28] sm:$0xff]
      %v3221 = vld [vmem:[%s3214 + $0x30] sm:$0xff]
      %v3222 = vld [vmem:[%s3214 + $0x38] sm:$0xff]
      %s3223 = scalar_lea.vmem %s23, 448
      %v3224 = vld [vmem:[%s3223] sm:$0xff]
      %v3225 = vld [vmem:[%s3223 + $0x8] sm:$0xff]
      %v3226 = vld [vmem:[%s3223 + $0x10] sm:$0xff]
      %v3227 = vld [vmem:[%s3223 + $0x18] sm:$0xff]
      %v3228 = vld [vmem:[%s3223 + $0x20] sm:$0xff]
      %v3229 = vld [vmem:[%s3223 + $0x28] sm:$0xff]
      %v3230 = vld [vmem:[%s3223 + $0x30] sm:$0xff]
      %v3231 = vld [vmem:[%s3223 + $0x38] sm:$0xff]
      %3232 = vmatpush.msra.mxu0 0.0
      %3233 = vmatpush.msra.mxu0 0.0
      %3234 = vmatpush.msra.mxu0 0.0
      %3235 = vmatpush.msra.mxu0 0.0
      %3236 = vmatpush.msra.mxu0 0.0
      %3237 = vmatpush.msra.mxu0 0.0
      %3238 = vmatpush.msra.mxu0 0.0
      %3239 = vmatpush.msra.mxu0 0.0
      %3240 = vmatpush.msra.mxu0 %v3231
      %3241 = vmatpush.msra.mxu0 %v3230
      %3242 = vmatpush.msra.mxu0 %v3229
      %3243 = vmatpush.msra.mxu0 %v3228
      %3244 = vmatpush.msra.mxu0 %v3227
      %3245 = vmatpush.msra.mxu0 %v3226
      %3246 = vmatpush.msra.mxu0 %v3225
      %3247 = vmatpush.msra.mxu0 %v3224
      %3248 = vmatmul.f32.gmra.mxu0 %v1441
      %v3249 = vpop.f32.mrf.mxu0
      %v3250 = vadd.f32 0.0, %v3249
      %3251 = vdwg.mxu0
      %3252 = vmatpush.msra.mxu0 0.0
      %3253 = vmatpush.msra.mxu0 0.0
      %3254 = vmatpush.msra.mxu0 0.0
      %3255 = vmatpush.msra.mxu0 0.0
      %3256 = vmatpush.msra.mxu0 0.0
      %3257 = vmatpush.msra.mxu0 0.0
      %3258 = vmatpush.msra.mxu0 0.0
      %3259 = vmatpush.msra.mxu0 0.0
      %3260 = vmatpush.msra.mxu0 %v3222
      %3261 = vmatpush.msra.mxu0 %v3221
      %3262 = vmatpush.msra.mxu0 %v3220
      %3263 = vmatpush.msra.mxu0 %v3219
      %3264 = vmatpush.msra.mxu0 %v3218
      %3265 = vmatpush.msra.mxu0 %v3217
      %3266 = vmatpush.msra.mxu0 %v3216
      %3267 = vmatpush.msra.mxu0 %v3215
      %3268 = vmatmul.f32.gmra.mxu0 %v3052
      %v3269 = vpop.f32.mrf.mxu0
      %v3270 = vadd.f32 %v3250, %v3269
      %3271 = vdwg.mxu0
      %3272 = vmatpush.msra.mxu0 0.0
      %3273 = vmatpush.msra.mxu0 0.0
      %3274 = vmatpush.msra.mxu0 0.0
      %3275 = vmatpush.msra.mxu0 0.0
      %3276 = vmatpush.msra.mxu0 0.0
      %3277 = vmatpush.msra.mxu0 0.0
      %3278 = vmatpush.msra.mxu0 0.0
      %3279 = vmatpush.msra.mxu0 0.0
      %3280 = vmatpush.msra.mxu0 0.0
      %3281 = vmatpush.msra.mxu0 0.0
      %3282 = vmatpush.msra.mxu0 0.0
      %3283 = vmatpush.msra.mxu0 0.0
      %3284 = vmatpush.msra.mxu0 0.0
      %3285 = vmatpush.msra.mxu0 0.0
      %3286 = vmatpush.msra.mxu0 0.0
      %3287 = vmatpush.msra.mxu0 %v3212
      %3288 = vmatmul.f32.gmra.mxu0 %v1493
      %v3289 = vpop.f32.mrf.mxu0
      %v3290 = vadd.f32 %v3270, %v3289
      %3291 = vdwg.mxu0
      %v3292 = vadd.f32 %v3290, %v3153
      %s3293 = scalar_lea.vmem %s23, 512
      %v3294 = vld [vmem:[%s3293] sm:$0xff]
      %v3295 = vld [vmem:[%s3293 + $0x8] sm:$0xff]
      %v3296 = vld [vmem:[%s3293 + $0x10] sm:$0xff]
      %v3297 = vld [vmem:[%s3293 + $0x18] sm:$0xff]
      %v3298 = vld [vmem:[%s3293 + $0x20] sm:$0xff]
      %v3299 = vld [vmem:[%s3293 + $0x28] sm:$0xff]
      %v3300 = vld [vmem:[%s3293 + $0x30] sm:$0xff]
      %v3301 = vld [vmem:[%s3293 + $0x38] sm:$0xff]
      %s3302 = scalar_lea.vmem %s23, 576
      %v3303 = vld [vmem:[%s3302] sm:$0xff]
      %v3304 = vld [vmem:[%s3302 + $0x8] sm:$0xff]
      %v3305 = vld [vmem:[%s3302 + $0x10] sm:$0xff]
      %v3306 = vld [vmem:[%s3302 + $0x18] sm:$0xff]
      %v3307 = vld [vmem:[%s3302 + $0x20] sm:$0xff]
      %v3308 = vld [vmem:[%s3302 + $0x28] sm:$0xff]
      %v3309 = vld [vmem:[%s3302 + $0x30] sm:$0xff]
      %v3310 = vld [vmem:[%s3302 + $0x38] sm:$0xff]
      %3311 = vmatpush.msra.mxu0 0.0
      %3312 = vmatpush.msra.mxu0 0.0
      %3313 = vmatpush.msra.mxu0 0.0
      %3314 = vmatpush.msra.mxu0 0.0
      %3315 = vmatpush.msra.mxu0 0.0
      %3316 = vmatpush.msra.mxu0 0.0
      %3317 = vmatpush.msra.mxu0 0.0
      %3318 = vmatpush.msra.mxu0 0.0
      %3319 = vmatpush.msra.mxu0 %v3310
      %3320 = vmatpush.msra.mxu0 %v3309
      %3321 = vmatpush.msra.mxu0 %v3308
      %3322 = vmatpush.msra.mxu0 %v3307
      %3323 = vmatpush.msra.mxu0 %v3306
      %3324 = vmatpush.msra.mxu0 %v3305
      %3325 = vmatpush.msra.mxu0 %v3304
      %3326 = vmatpush.msra.mxu0 %v3303
      %3327 = vmatmul.f32.gmra.mxu0 %v1441
      %v3328 = vpop.f32.mrf.mxu0
      %v3329 = vadd.f32 0.0, %v3328
      %3330 = vdwg.mxu0
      %3331 = vmatpush.msra.mxu0 0.0
      %3332 = vmatpush.msra.mxu0 0.0
      %3333 = vmatpush.msra.mxu0 0.0
      %3334 = vmatpush.msra.mxu0 0.0
      %3335 = vmatpush.msra.mxu0 0.0
      %3336 = vmatpush.msra.mxu0 0.0
      %3337 = vmatpush.msra.mxu0 0.0
      %3338 = vmatpush.msra.mxu0 0.0
      %3339 = vmatpush.msra.mxu0 %v3301
      %3340 = vmatpush.msra.mxu0 %v3300
      %3341 = vmatpush.msra.mxu0 %v3299
      %3342 = vmatpush.msra.mxu0 %v3298
      %3343 = vmatpush.msra.mxu0 %v3297
      %3344 = vmatpush.msra.mxu0 %v3296
      %3345 = vmatpush.msra.mxu0 %v3295
      %3346 = vmatpush.msra.mxu0 %v3294
      %3347 = vmatmul.f32.gmra.mxu0 %v3052
      %v3348 = vpop.f32.mrf.mxu0
      %v3349 = vadd.f32 %v3329, %v3348
      %3350 = vdwg.mxu0
      %s3351 = scalar_lea.vmem %s23, 640
      %v3352 = vld [vmem:[%s3351] sm:$0xff]
      %v3353 = vld [vmem:[%s3351 + $0x8] sm:$0xff]
      %v3354 = vld [vmem:[%s3351 + $0x10] sm:$0xff]
      %v3355 = vld [vmem:[%s3351 + $0x18] sm:$0xff]
      %v3356 = vld [vmem:[%s3351 + $0x20] sm:$0xff]
      %v3357 = vld [vmem:[%s3351 + $0x28] sm:$0xff]
      %v3358 = vld [vmem:[%s3351 + $0x30] sm:$0xff]
      %v3359 = vld [vmem:[%s3351 + $0x38] sm:$0xff]
      %s3360 = scalar_lea.vmem %s23, 704
      %v3361 = vld [vmem:[%s3360] sm:$0xff]
      %v3362 = vld [vmem:[%s3360 + $0x8] sm:$0xff]
      %v3363 = vld [vmem:[%s3360 + $0x10] sm:$0xff]
      %v3364 = vld [vmem:[%s3360 + $0x18] sm:$0xff]
      %v3365 = vld [vmem:[%s3360 + $0x20] sm:$0xff]
      %v3366 = vld [vmem:[%s3360 + $0x28] sm:$0xff]
      %v3367 = vld [vmem:[%s3360 + $0x30] sm:$0xff]
      %v3368 = vld [vmem:[%s3360 + $0x38] sm:$0xff]
      %3369 = vmatpush.msra.mxu0 0.0
      %3370 = vmatpush.msra.mxu0 0.0
      %3371 = vmatpush.msra.mxu0 0.0
      %3372 = vmatpush.msra.mxu0 0.0
      %3373 = vmatpush.msra.mxu0 0.0
      %3374 = vmatpush.msra.mxu0 0.0
      %3375 = vmatpush.msra.mxu0 0.0
      %3376 = vmatpush.msra.mxu0 0.0
      %3377 = vmatpush.msra.mxu0 %v3368
      %3378 = vmatpush.msra.mxu0 %v3367
      %3379 = vmatpush.msra.mxu0 %v3366
      %3380 = vmatpush.msra.mxu0 %v3365
      %3381 = vmatpush.msra.mxu0 %v3364
      %3382 = vmatpush.msra.mxu0 %v3363
      %3383 = vmatpush.msra.mxu0 %v3362
      %3384 = vmatpush.msra.mxu0 %v3361
      %3385 = vmatmul.f32.gmra.mxu0 %v1441
      %v3386 = vpop.f32.mrf.mxu0
      %v3387 = vadd.f32 0.0, %v3386
      %3388 = vdwg.mxu0
      %3389 = vmatpush.msra.mxu0 0.0
      %3390 = vmatpush.msra.mxu0 0.0
      %3391 = vmatpush.msra.mxu0 0.0
      %3392 = vmatpush.msra.mxu0 0.0
      %3393 = vmatpush.msra.mxu0 0.0
      %3394 = vmatpush.msra.mxu0 0.0
      %3395 = vmatpush.msra.mxu0 0.0
      %3396 = vmatpush.msra.mxu0 0.0
      %3397 = vmatpush.msra.mxu0 %v3359
      %3398 = vmatpush.msra.mxu0 %v3358
      %3399 = vmatpush.msra.mxu0 %v3357
      %3400 = vmatpush.msra.mxu0 %v3356
      %3401 = vmatpush.msra.mxu0 %v3355
      %3402 = vmatpush.msra.mxu0 %v3354
      %3403 = vmatpush.msra.mxu0 %v3353
      %3404 = vmatpush.msra.mxu0 %v3352
      %3405 = vmatmul.f32.gmra.mxu0 %v3052
      %v3406 = vpop.f32.mrf.mxu0
      %v3407 = vadd.f32 %v3387, %v3406
      %3408 = vdwg.mxu0
      %3409 = vmatpush.msra.mxu0 0.0
      %3410 = vmatpush.msra.mxu0 0.0
      %3411 = vmatpush.msra.mxu0 0.0
      %3412 = vmatpush.msra.mxu0 0.0
      %3413 = vmatpush.msra.mxu0 0.0
      %3414 = vmatpush.msra.mxu0 0.0
      %3415 = vmatpush.msra.mxu0 0.0
      %3416 = vmatpush.msra.mxu0 0.0
      %3417 = vmatpush.msra.mxu0 0.0
      %3418 = vmatpush.msra.mxu0 0.0
      %3419 = vmatpush.msra.mxu0 0.0
      %3420 = vmatpush.msra.mxu0 0.0
      %3421 = vmatpush.msra.mxu0 0.0
      %3422 = vmatpush.msra.mxu0 0.0
      %3423 = vmatpush.msra.mxu0 0.0
      %3424 = vmatpush.msra.mxu0 %v3407
      %3425 = vmatmul.f32.gmra.mxu0 %v1544
      %v3426 = vpop.f32.mrf.mxu0
      %v3427 = vadd.f32 0.0, %v3426
      %3428 = vdwg.mxu0
      %v3429 = vadd.f32 %v3349, %v3427
      %v3430 = vadd.f32 %v3429, %v3153
      %s3431 = scalar_lea.vmem %s23, 768
      %v3432 = vld [vmem:[%s3431] sm:$0xff]
      %v3433 = vld [vmem:[%s3431 + $0x8] sm:$0xff]
      %v3434 = vld [vmem:[%s3431 + $0x10] sm:$0xff]
      %v3435 = vld [vmem:[%s3431 + $0x18] sm:$0xff]
      %v3436 = vld [vmem:[%s3431 + $0x20] sm:$0xff]
      %v3437 = vld [vmem:[%s3431 + $0x28] sm:$0xff]
      %v3438 = vld [vmem:[%s3431 + $0x30] sm:$0xff]
      %v3439 = vld [vmem:[%s3431 + $0x38] sm:$0xff]
      %s3440 = scalar_lea.vmem %s23, 832
      %v3441 = vld [vmem:[%s3440] sm:$0xff]
      %v3442 = vld [vmem:[%s3440 + $0x8] sm:$0xff]
      %v3443 = vld [vmem:[%s3440 + $0x10] sm:$0xff]
      %v3444 = vld [vmem:[%s3440 + $0x18] sm:$0xff]
      %v3445 = vld [vmem:[%s3440 + $0x20] sm:$0xff]
      %v3446 = vld [vmem:[%s3440 + $0x28] sm:$0xff]
      %v3447 = vld [vmem:[%s3440 + $0x30] sm:$0xff]
      %v3448 = vld [vmem:[%s3440 + $0x38] sm:$0xff]
      %3449 = vmatpush.msra.mxu0 0.0
      %3450 = vmatpush.msra.mxu0 0.0
      %3451 = vmatpush.msra.mxu0 0.0
      %3452 = vmatpush.msra.mxu0 0.0
      %3453 = vmatpush.msra.mxu0 0.0
      %3454 = vmatpush.msra.mxu0 0.0
      %3455 = vmatpush.msra.mxu0 0.0
      %3456 = vmatpush.msra.mxu0 0.0
      %3457 = vmatpush.msra.mxu0 %v3448
      %3458 = vmatpush.msra.mxu0 %v3447
      %3459 = vmatpush.msra.mxu0 %v3446
      %3460 = vmatpush.msra.mxu0 %v3445
      %3461 = vmatpush.msra.mxu0 %v3444
      %3462 = vmatpush.msra.mxu0 %v3443
      %3463 = vmatpush.msra.mxu0 %v3442
      %3464 = vmatpush.msra.mxu0 %v3441
      %3465 = vmatmul.f32.gmra.mxu0 %v1441
      %v3466 = vpop.f32.mrf.mxu0
      %v3467 = vadd.f32 0.0, %v3466
      %3468 = vdwg.mxu0
      %3469 = vmatpush.msra.mxu0 0.0
      %3470 = vmatpush.msra.mxu0 0.0
      %3471 = vmatpush.msra.mxu0 0.0
      %3472 = vmatpush.msra.mxu0 0.0
      %3473 = vmatpush.msra.mxu0 0.0
      %3474 = vmatpush.msra.mxu0 0.0
      %3475 = vmatpush.msra.mxu0 0.0
      %3476 = vmatpush.msra.mxu0 0.0
      %3477 = vmatpush.msra.mxu0 %v3439
      %3478 = vmatpush.msra.mxu0 %v3438
      %3479 = vmatpush.msra.mxu0 %v3437
      %3480 = vmatpush.msra.mxu0 %v3436
      %3481 = vmatpush.msra.mxu0 %v3435
      %3482 = vmatpush.msra.mxu0 %v3434
      %3483 = vmatpush.msra.mxu0 %v3433
      %3484 = vmatpush.msra.mxu0 %v3432
      %3485 = vmatmul.f32.gmra.mxu0 %v3052
      %v3486 = vpop.f32.mrf.mxu0
      %v3487 = vadd.f32 %v3467, %v3486
      %3488 = vdwg.mxu0
      %s3489 = scalar_lea.vmem %s23, 896
      %v3490 = vld [vmem:[%s3489] sm:$0xff]
      %v3491 = vld [vmem:[%s3489 + $0x8] sm:$0xff]
      %v3492 = vld [vmem:[%s3489 + $0x10] sm:$0xff]
      %v3493 = vld [vmem:[%s3489 + $0x18] sm:$0xff]
      %v3494 = vld [vmem:[%s3489 + $0x20] sm:$0xff]
      %v3495 = vld [vmem:[%s3489 + $0x28] sm:$0xff]
      %v3496 = vld [vmem:[%s3489 + $0x30] sm:$0xff]
      %v3497 = vld [vmem:[%s3489 + $0x38] sm:$0xff]
      %s3498 = scalar_lea.vmem %s23, 960
      %v3499 = vld [vmem:[%s3498] sm:$0xff]
      %v3500 = vld [vmem:[%s3498 + $0x8] sm:$0xff]
      %v3501 = vld [vmem:[%s3498 + $0x10] sm:$0xff]
      %v3502 = vld [vmem:[%s3498 + $0x18] sm:$0xff]
      %v3503 = vld [vmem:[%s3498 + $0x20] sm:$0xff]
      %v3504 = vld [vmem:[%s3498 + $0x28] sm:$0xff]
      %v3505 = vld [vmem:[%s3498 + $0x30] sm:$0xff]
      %v3506 = vld [vmem:[%s3498 + $0x38] sm:$0xff]
      %3507 = vmatpush.msra.mxu0 0.0
      %3508 = vmatpush.msra.mxu0 0.0
      %3509 = vmatpush.msra.mxu0 0.0
      %3510 = vmatpush.msra.mxu0 0.0
      %3511 = vmatpush.msra.mxu0 0.0
      %3512 = vmatpush.msra.mxu0 0.0
      %3513 = vmatpush.msra.mxu0 0.0
      %3514 = vmatpush.msra.mxu0 0.0
      %3515 = vmatpush.msra.mxu0 %v3506
      %3516 = vmatpush.msra.mxu0 %v3505
      %3517 = vmatpush.msra.mxu0 %v3504
      %3518 = vmatpush.msra.mxu0 %v3503
      %3519 = vmatpush.msra.mxu0 %v3502
      %3520 = vmatpush.msra.mxu0 %v3501
      %3521 = vmatpush.msra.mxu0 %v3500
      %3522 = vmatpush.msra.mxu0 %v3499
      %3523 = vmatmul.f32.gmra.mxu0 %v1441
      %v3524 = vpop.f32.mrf.mxu0
      %v3525 = vadd.f32 0.0, %v3524
      %3526 = vdwg.mxu0
      %3527 = vmatpush.msra.mxu0 0.0
      %3528 = vmatpush.msra.mxu0 0.0
      %3529 = vmatpush.msra.mxu0 0.0
      %3530 = vmatpush.msra.mxu0 0.0
      %3531 = vmatpush.msra.mxu0 0.0
      %3532 = vmatpush.msra.mxu0 0.0
      %3533 = vmatpush.msra.mxu0 0.0
      %3534 = vmatpush.msra.mxu0 0.0
      %3535 = vmatpush.msra.mxu0 %v3497
      %3536 = vmatpush.msra.mxu0 %v3496
      %3537 = vmatpush.msra.mxu0 %v3495
      %3538 = vmatpush.msra.mxu0 %v3494
      %3539 = vmatpush.msra.mxu0 %v3493
      %3540 = vmatpush.msra.mxu0 %v3492
      %3541 = vmatpush.msra.mxu0 %v3491
      %3542 = vmatpush.msra.mxu0 %v3490
      %3543 = vmatmul.f32.gmra.mxu0 %v3052
      %v3544 = vpop.f32.mrf.mxu0
      %v3545 = vadd.f32 %v3525, %v3544
      %3546 = vdwg.mxu0
      %3547 = vmatpush.msra.mxu0 0.0
      %3548 = vmatpush.msra.mxu0 0.0
      %3549 = vmatpush.msra.mxu0 0.0
      %3550 = vmatpush.msra.mxu0 0.0
      %3551 = vmatpush.msra.mxu0 0.0
      %3552 = vmatpush.msra.mxu0 0.0
      %3553 = vmatpush.msra.mxu0 0.0
      %3554 = vmatpush.msra.mxu0 0.0
      %3555 = vmatpush.msra.mxu0 0.0
      %3556 = vmatpush.msra.mxu0 0.0
      %3557 = vmatpush.msra.mxu0 0.0
      %3558 = vmatpush.msra.mxu0 0.0
      %3559 = vmatpush.msra.mxu0 0.0
      %3560 = vmatpush.msra.mxu0 0.0
      %3561 = vmatpush.msra.mxu0 0.0
      %3562 = vmatpush.msra.mxu0 %v3545
      %3563 = vmatmul.f32.gmra.mxu0 %v1544
      %v3564 = vpop.f32.mrf.mxu0
      %v3565 = vadd.f32 0.0, %v3564
      %3566 = vdwg.mxu0
      %v3567 = vadd.f32 %v3487, %v3565
      %v3568 = vadd.f32 %v3567, %v3153
      %v3569 = vld [vmem:[%s25] sm:$0xff]
      %v3570 = vld [vmem:[%s25 + $0x8] sm:$0xff]
      %v3571 = vld [vmem:[%s25 + $0x10] sm:$0xff]
      %v3572 = vld [vmem:[%s25 + $0x18] sm:$0xff]
      %s3573 = scalar_lea.vmem %s25, 32
      %v3574 = vld [vmem:[%s3573] sm:$0xff]
      %v3575 = vld [vmem:[%s3573 + $0x8] sm:$0xff]
      %v3576 = vld [vmem:[%s3573 + $0x10] sm:$0xff]
      %v3577 = vld [vmem:[%s3573 + $0x18] sm:$0xff]
      %v3579 = vsel %vm2091, %v3292, 0
      %3581 = vmatpush.msra.mxu0 0.0
      %3582 = vmatpush.msra.mxu0 0.0
      %3583 = vmatpush.msra.mxu0 0.0
      %3584 = vmatpush.msra.mxu0 0.0
      %3585 = vmatpush.msra.mxu0 0.0
      %3586 = vmatpush.msra.mxu0 0.0
      %3587 = vmatpush.msra.mxu0 0.0
      %3588 = vmatpush.msra.mxu0 0.0
      %3589 = vmatpush.msra.mxu0 0.0
      %3590 = vmatpush.msra.mxu0 0.0
      %3591 = vmatpush.msra.mxu0 0.0
      %3592 = vmatpush.msra.mxu0 0.0
      %3593 = vmatpush.msra.mxu0 %v3577
      %3594 = vmatpush.msra.mxu0 %v3576
      %3595 = vmatpush.msra.mxu0 %v3575
      %3596 = vmatpush.msra.mxu0 %v3574
      %3597 = vmatmul.f32.gmra.mxu0 %v3579
      %v3598 = vpop.f32.mrf.mxu0
      %v3599 = vadd.f32 0.0, %v3598
      %3600 = vdwg.mxu0
      %v3602 = vsel %vm2091, %v3155, 0
      %3604 = vmatpush.msra.mxu0 0.0
      %3605 = vmatpush.msra.mxu0 0.0
      %3606 = vmatpush.msra.mxu0 0.0
      %3607 = vmatpush.msra.mxu0 0.0
      %3608 = vmatpush.msra.mxu0 0.0
      %3609 = vmatpush.msra.mxu0 0.0
      %3610 = vmatpush.msra.mxu0 0.0
      %3611 = vmatpush.msra.mxu0 0.0
      %3612 = vmatpush.msra.mxu0 0.0
      %3613 = vmatpush.msra.mxu0 0.0
      %3614 = vmatpush.msra.mxu0 0.0
      %3615 = vmatpush.msra.mxu0 0.0
      %3616 = vmatpush.msra.mxu0 %v3572
      %3617 = vmatpush.msra.mxu0 %v3571
      %3618 = vmatpush.msra.mxu0 %v3570
      %3619 = vmatpush.msra.mxu0 %v3569
      %3620 = vmatmul.f32.gmra.mxu0 %v3602
      %v3621 = vpop.f32.mrf.mxu0
      %v3622 = vadd.f32 %v3599, %v3621
      %3623 = vdwg.mxu0
      %v3625 = vsel %vm2091, %v3568, 0
      %3627 = vmatpush.msra.mxu0 0.0
      %3628 = vmatpush.msra.mxu0 0.0
      %3629 = vmatpush.msra.mxu0 0.0
      %3630 = vmatpush.msra.mxu0 0.0
      %3631 = vmatpush.msra.mxu0 0.0
      %3632 = vmatpush.msra.mxu0 0.0
      %3633 = vmatpush.msra.mxu0 0.0
      %3634 = vmatpush.msra.mxu0 0.0
      %3635 = vmatpush.msra.mxu0 0.0
      %3636 = vmatpush.msra.mxu0 0.0
      %3637 = vmatpush.msra.mxu0 0.0
      %3638 = vmatpush.msra.mxu0 0.0
      %3639 = vmatpush.msra.mxu0 %v3577
      %3640 = vmatpush.msra.mxu0 %v3576
      %3641 = vmatpush.msra.mxu0 %v3575
      %3642 = vmatpush.msra.mxu0 %v3574
      %3643 = vmatmul.f32.gmra.mxu0 %v3625
      %v3644 = vpop.f32.mrf.mxu0
      %v3645 = vadd.f32 0.0, %v3644
      %3646 = vdwg.mxu0
      %v3648 = vsel %vm2091, %v3430, 0
      %3650 = vmatpush.msra.mxu0 0.0
      %3651 = vmatpush.msra.mxu0 0.0
      %3652 = vmatpush.msra.mxu0 0.0
      %3653 = vmatpush.msra.mxu0 0.0
      %3654 = vmatpush.msra.mxu0 0.0
      %3655 = vmatpush.msra.mxu0 0.0
      %3656 = vmatpush.msra.mxu0 0.0
      %3657 = vmatpush.msra.mxu0 0.0
      %3658 = vmatpush.msra.mxu0 0.0
      %3659 = vmatpush.msra.mxu0 0.0
      %3660 = vmatpush.msra.mxu0 0.0
      %3661 = vmatpush.msra.mxu0 0.0
      %3662 = vmatpush.msra.mxu0 %v3572
      %3663 = vmatpush.msra.mxu0 %v3571
      %3664 = vmatpush.msra.mxu0 %v3570
      %3665 = vmatpush.msra.mxu0 %v3569
      %3666 = vmatmul.f32.gmra.mxu0 %v3648
      %v3667 = vpop.f32.mrf.mxu0
      %v3668 = vadd.f32 %v3645, %v3667
      %3669 = vdwg.mxu0
      %v3670 = vld [vmem:[%s26] sm:$0xff]
      %v3671 = vld [vmem:[%s26 + $0x8] sm:$0xff]
      %s3672 = scalar_lea.vmem %s26, 16
      %v3673 = vld [vmem:[%s3672] sm:$0xff]
      %v3674 = vld [vmem:[%s3672 + $0x8] sm:$0xff]
      %v3676 = vsel %vm1492, %v3673, 0
      %v3679 = vsel %vm1492, %v3674, 0
      %3681 = vmatpush.msra.mxu0 0.0
      %3682 = vmatpush.msra.mxu0 0.0
      %3683 = vmatpush.msra.mxu0 0.0
      %3684 = vmatpush.msra.mxu0 0.0
      %3685 = vmatpush.msra.mxu0 0.0
      %3686 = vmatpush.msra.mxu0 0.0
      %3687 = vmatpush.msra.mxu0 0.0
      %3688 = vmatpush.msra.mxu0 0.0
      %3689 = vmatpush.msra.mxu0 0.0
      %3690 = vmatpush.msra.mxu0 0.0
      %3691 = vmatpush.msra.mxu0 0.0
      %3692 = vmatpush.msra.mxu0 0.0
      %3693 = vmatpush.msra.mxu0 0.0
      %3694 = vmatpush.msra.mxu0 0.0
      %3695 = vmatpush.msra.mxu0 0.0
      %3696 = vmatpush.msra.mxu0 %v3668
      %3697 = vmatmul.f32.gmra.mxu0 %v3676
      %v3698 = vpop.f32.mrf.mxu0
      %v3699 = vadd.f32 0.0, %v3698
      %3700 = vmatmul.f32.gmra.mxu0 %v3679
      %v3701 = vpop.f32.mrf.mxu0
      %v3702 = vadd.f32 0.0, %v3701
      %3703 = vdwg.mxu0
      %v3705 = vsel %vm1492, %v3670, 0
      %v3708 = vsel %vm1492, %v3671, 0
      %3710 = vmatpush.msra.mxu0 0.0
      %3711 = vmatpush.msra.mxu0 0.0
      %3712 = vmatpush.msra.mxu0 0.0
      %3713 = vmatpush.msra.mxu0 0.0
      %3714 = vmatpush.msra.mxu0 0.0
      %3715 = vmatpush.msra.mxu0 0.0
      %3716 = vmatpush.msra.mxu0 0.0
      %3717 = vmatpush.msra.mxu0 0.0
      %3718 = vmatpush.msra.mxu0 0.0
      %3719 = vmatpush.msra.mxu0 0.0
      %3720 = vmatpush.msra.mxu0 0.0
      %3721 = vmatpush.msra.mxu0 0.0
      %3722 = vmatpush.msra.mxu0 0.0
      %3723 = vmatpush.msra.mxu0 0.0
      %3724 = vmatpush.msra.mxu0 0.0
      %3725 = vmatpush.msra.mxu0 %v3622
      %3726 = vmatmul.f32.gmra.mxu0 %v3705
      %v3727 = vpop.f32.mrf.mxu0
      %v3728 = vadd.f32 %v3699, %v3727
      %3729 = vmatmul.f32.gmra.mxu0 %v3708
      %v3730 = vpop.f32.mrf.mxu0
      %v3731 = vadd.f32 %v3702, %v3730
      %3732 = vdwg.mxu0
      %3733 = vst.msk [vmem:[%s818] sm:$0xff] %vm830, %v3728
      %3734 = vst.msk [vmem:[%s818 + $0x8] sm:$0xff] %vm830, %v3731
      %p3735 = scmp.lt.s32.totalorder %s38, 1
      %s3736 = scalar_select %p3735, %s38, 1
      %s3737 = smul.addr %s3736, 2
      %s3738 = smul.addr %s3737, 8
      %s3739 = scalar_lea.vmem %s27, %s3738
      // Predicated region
      $region129: #{simple_unet_pallas.1} parent=127 // pred_check
        %p3740 = pneg %p628
      $region130: #{simple_unet_pallas.1} parent=127 // pred_check_branch
        %3742 = sbr.rel (%p3740) target = $region132
      $region131: #{simple_unet_pallas.1} parent=127 // pred_region
        _
      $region132: #{simple_unet_pallas.1} parent=127 // pred_fallthru
        _
    $region128: #{simple_unet_pallas.1} parent=5 // pred_fallthru
      _
    %p3743 = scmp.le.s32.totalorder 2, %s33
    // Predicated region
    $region133: #{simple_unet_pallas.1} parent=5 // pred_check
      %p3744 = pneg %p3743
    $region134: #{simple_unet_pallas.1} parent=5 // pred_check_branch
      %3746 = sbr.rel (%p3744) target = $region136
    $region135: #{simple_unet_pallas.1} parent=5 // pred_region
      %s3747 = ssub.s32 %s33, 2
      // Predicated region
      $region137: #{simple_unet_pallas.1} parent=135 // pred_check
        %p3748 = pneg %p634
      $region138: #{simple_unet_pallas.1} parent=135 // pred_check_branch
        %3750 = sbr.rel (%p3748) target = $region140
      $region139: #{simple_unet_pallas.1} parent=135 // pred_region
        %p3751 = scmp.lt.s32.totalorder %s39, 1
        %s3752 = scalar_select %p3751, %s39, 1
        %s3753 = smul.addr %s3752, 2
        %s3754 = smul.addr %s3753, 8
        %s3755 = scalar_lea.vmem %s27, %s3754
      $region140: #{simple_unet_pallas.1} parent=135 // pred_fallthru
        _
    $region136: #{simple_unet_pallas.1} parent=5 // pred_fallthru
      _
  $region6: #{simple_unet_pallas.1} parent=0 // loop_footer
    %s37 = sadd.s32 1, %s33
  $region7: #{simple_unet_pallas.1} parent=0 // loop_footer_branch
    %32 = sbr.rel target = $region3
  $region8: #{simple_unet_pallas.1} parent=0 // loop_exit
    _

</llo_original>
